<compile_context>
chip_gen: v7x
topology: tpu7x:2x2x1
jax: 0.10.0
libtpu: 0.0.40
codegen_flags: <defaults>
</compile_context>

<pallas_src>
import jax
import jax.numpy as jnp
from jax.experimental import pallas as pl
from jax.experimental.pallas import tpu as pltpu

# ---------------- small synthetic DistilBERT-like config ----------------
B = 2            # batch
S = 16           # sequence length
H = 128          # hidden size
NH = 2           # attention heads
DH = H // NH     # head dim
FF = 256         # FFN intermediate size
L = 2            # transformer layers
VOCAB = 100
NUM_LABELS = 2
LN_EPS = 1e-12

W3 = 3 * H       # fused qkv width
PROWS = 8        # f32 param rows per layer in the packed block
GOFF = L * PROWS # offset of the global (non-layer) rows


def _layer_norm(x, g, b):
    mu = jnp.mean(x, axis=-1, keepdims=True)
    xc = x - mu
    var = jnp.mean(xc * xc, axis=-1, keepdims=True)
    return xc * jax.lax.rsqrt(var + LN_EPS) * g + b


def _gelu(x):
    # tanh approximation of GELU (HF "gelu" is exact erf-based; tiny drift).
    c = 0.7978845608028654  # sqrt(2/pi)
    return 0.5 * x * (1.0 + jnp.tanh(c * (x + 0.044715 * x * x * x)))


def distilbert_kernel(neg_ref, emb_ref, wattn_ref, w1_ref, w2_ref,
                      headw_ref, pvec_ref, out_ref):
    # neg_ref: [B, S, NH*S] additive key-padding bias, already tiled per head
    #          and broadcast over queries in the wrapper (no in-kernel bcast).
    neg = neg_ref[...]

    # embedding LayerNorm (f32); embeddings arrive pre-flattened [B*S, H]
    x = _layer_norm(emb_ref[...],
                    pvec_ref[GOFF + 0:GOFF + 1, 0:H],
                    pvec_ref[GOFF + 1:GOFF + 2, 0:H])

    # full-lane head masks (hoisted, layer-independent). Masking K / V with
    # these (and concatenating along the key axis) makes attention exactly the
    # per-head math but with one scores matmul and one context matmul.
    lane = jax.lax.broadcasted_iota(jnp.int32, (1, H), 1)
    head_masks = [
        ((lane >= h * DH) & (lane < (h + 1) * DH)).astype(jnp.float32)
        for h in range(NH)
    ]

    for l in range(L):
        base = l * PROWS
        w_l = wattn_ref[l]                                  # [H, 4H] bf16
        xb = x.astype(jnp.bfloat16)

        # fused Q/K/V projection (N = 3H = 384), bf16 operands, f32 accumulate.
        # Wq / bq already carry the 1/sqrt(DH) scale (folded in the wrapper).
        qkv = jnp.dot(xb, w_l[:, 0:W3],
                      preferred_element_type=jnp.float32) \
            + pvec_ref[base + 0:base + 1, 0:W3]             # [B*S, 3H]
        q3 = qkv[:, 0:H].reshape(B, S, H)
        k3 = qkv[:, H:2 * H].reshape(B, S, H)
        v3 = qkv[:, 2 * H:3 * H].reshape(B, S, H)

        # fused multi-head attention: mask K and V per head, concatenate along
        # the key axis -> single scores / context matmuls for all heads.
        k_cat = jnp.concatenate([k3 * head_masks[h] for h in range(NH)],
                                axis=1)                     # [B, NH*S, H]
        v_cat = jnp.concatenate([v3 * head_masks[h] for h in range(NH)],
                                axis=1)                     # [B, NH*S, H]
        s_cat = jnp.einsum('bqd,bkd->bqk', q3, k_cat,
                           preferred_element_type=jnp.float32)  # [B, S, NH*S]
        s_cat = s_cat + neg

        # grouped softmax: per-head segments of the concatenated key axis
        p_parts = []
        for h in range(NH):
            sh = s_cat[:, :, h * S:(h + 1) * S]
            m = jnp.max(sh, axis=-1, keepdims=True)
            p = jnp.exp(sh - m)
            p = p * pl.reciprocal(jnp.sum(p, axis=-1, keepdims=True),
                                  approx=True)
            p_parts.append(p)
        p_cat = jnp.concatenate(p_parts, axis=-1)           # [B, S, NH*S]

        ctx = jnp.einsum('bqk,bkd->bqd', p_cat, v_cat,
                         preferred_element_type=jnp.float32)  # [B, S, H]

        attn = jnp.dot(ctx.reshape(B * S, H).astype(jnp.bfloat16),
                       w_l[:, 3 * H:4 * H],
                       preferred_element_type=jnp.float32) \
             + pvec_ref[base + 1:base + 2, 0:H]
        x = _layer_norm(x + attn,
                        pvec_ref[base + 2:base + 3, 0:H],
                        pvec_ref[base + 3:base + 4, 0:H])

        # feed-forward (f32 elementwise, bf16 matmul operands)
        hdd = jnp.dot(x.astype(jnp.bfloat16), w1_ref[l],
                      preferred_element_type=jnp.float32) \
            + pvec_ref[base + 4:base + 5, 0:FF]
        hdd = _gelu(hdd)
        hdd = jnp.dot(hdd.astype(jnp.bfloat16), w2_ref[l],
                      preferred_element_type=jnp.float32) \
            + pvec_ref[base + 5:base + 6, 0:H]
        x = _layer_norm(x + hdd,
                        pvec_ref[base + 6:base + 7, 0:H],
                        pvec_ref[base + 7:base + 8, 0:H])

    # sequence-classification head ([CLS] token -> pre_classifier -> ReLU -> classifier)
    pooled = x.reshape(B, S, H)[:, 0, :]                    # [B, H]
    pre = jnp.dot(pooled.astype(jnp.bfloat16), headw_ref[:, 0:H],
                  preferred_element_type=jnp.float32) \
        + pvec_ref[GOFF + 2:GOFF + 3, 0:H]
    pre = jnp.maximum(pre, 0.0)
    # TODO(synk): dropout omitted (eval-mode identity).
    logits = jnp.dot(pre.astype(jnp.bfloat16), headw_ref[:, H:2 * H],
                     preferred_element_type=jnp.float32) \
           + pvec_ref[GOFF + 3:GOFF + 4, 0:H]
    # lane-dense [B, 128] store; classifier columns beyond NUM_LABELS are
    # zero-padded weights/bias and get sliced off in the wrapper.
    out_ref[...] = logits


def init_params(key):
    keys = iter(jax.random.split(key, 16))

    def nrm(shape):
        return 0.02 * jax.random.normal(next(keys), shape, dtype=jnp.float32)

    return dict(
        word_emb=nrm((VOCAB, H)),
        pos_emb=nrm((S, H)),
        emb_ln_g=jnp.ones((1, H), jnp.float32),
        emb_ln_b=jnp.zeros((1, H), jnp.float32),
        wq=nrm((L, H, H)), bq=jnp.zeros((L, 1, H), jnp.float32),
        wk=nrm((L, H, H)), bk=jnp.zeros((L, 1, H), jnp.float32),
        wv=nrm((L, H, H)), bv=jnp.zeros((L, 1, H), jnp.float32),
        wo=nrm((L, H, H)), bo=jnp.zeros((L, 1, H), jnp.float32),
        ln1_g=jnp.ones((L, 1, H), jnp.float32), ln1_b=jnp.zeros((L, 1, H), jnp.float32),
        w1=nrm((L, H, FF)), b1=jnp.zeros((L, 1, FF), jnp.float32),
        w2=nrm((L, FF, H)), b2=jnp.zeros((L, 1, H), jnp.float32),
        ln2_g=jnp.ones((L, 1, H), jnp.float32), ln2_b=jnp.zeros((L, 1, H), jnp.float32),
        pre_w=nrm((H, H)), pre_b=jnp.zeros((1, H), jnp.float32),
        cls_w=nrm((H, NUM_LABELS)), cls_b=jnp.zeros((1, NUM_LABELS), jnp.float32),
    )


def _pad_row(v, width=W3):
    v = v.reshape(1, -1)
    return jnp.pad(v, ((0, 0), (0, width - v.shape[-1])))


def custom_transformer_forward(params, input_ids):
    # CustomTransformerModel.forward: attention_mask = (input_ids != 0)
    # (computed + pre-broadcast in the wrapper so the kernel does no mask work)
    mask = (input_ids != 0).astype(jnp.float32)                    # [B, S]
    neg = (1.0 - mask) * (-1e9)                                    # [B, S]
    neg_keys = jnp.concatenate([neg] * NH, axis=-1)                # [B, NH*S]
    neg_cat = jnp.broadcast_to(neg_keys[:, None, :], (B, S, NH * S))
    neg_cat = neg_cat.astype(jnp.float32)

    # embedding-table gather (word + position) stays in plain JAX; pre-flatten
    embeds = (params["word_emb"][input_ids] + params["pos_emb"][None, :S, :])
    embeds = embeds.reshape(B * S, H).astype(jnp.float32)

    scale = 1.0 / (DH ** 0.5)        # folded into Wq / bq (no in-kernel scaling)
    bf16 = jnp.bfloat16

    # packed bf16 attention weights: [Wq*scale | Wk | Wv | Wo] -> [L, H, 4H]
    w_attn = jnp.concatenate(
        [params["wq"] * scale, params["wk"], params["wv"], params["wo"]],
        axis=-1).astype(bf16)

    w_ffn1 = params["w1"].astype(bf16)                             # [L, H, FF]
    w_ffn2 = params["w2"].astype(bf16)                             # [L, FF, H]

    # packed bf16 head weights: [pre_w | cls_w padded to H cols] -> [H, 2H]
    cls_w_pad = jnp.pad(params["cls_w"], ((0, 0), (0, H - NUM_LABELS)))
    head_w = jnp.concatenate([params["pre_w"], cls_w_pad], axis=-1).astype(bf16)

    # packed f32 bias / LayerNorm block: [L*8 + 4, 3H]
    rows = []
    for l in range(L):
        b_qkv = jnp.concatenate(
            [params["bq"][l] * scale, params["bk"][l], params["bv"][l]], axis=-1)
        rows += [b_qkv,
                 _pad_row(params["bo"][l]),
                 _pad_row(params["ln1_g"][l]), _pad_row(params["ln1_b"][l]),
                 _pad_row(params["b1"][l]), _pad_row(params["b2"][l]),
                 _pad_row(params["ln2_g"][l]), _pad_row(params["ln2_b"][l])]
    rows += [_pad_row(params["emb_ln_g"]), _pad_row(params["emb_ln_b"]),
             _pad_row(params["pre_b"]), _pad_row(params["cls_b"])]
    pvec = jnp.concatenate(rows, axis=0).astype(jnp.float32)       # [20, 384]

    inputs = [neg_cat, embeds, w_attn, w_ffn1, w_ffn2, head_w, pvec]

    vmem = pl.BlockSpec(memory_space=pltpu.MemorySpace.VMEM)
    logits_pad = pl.pallas_call(
        distilbert_kernel,
        out_shape=jax.ShapeDtypeStruct((B, H), jnp.float32),        # lane-dense
        in_specs=[vmem] * len(inputs),
        out_specs=vmem,
    )(*inputs)
    return logits_pad[:, :NUM_LABELS]


if __name__ == "__main__":
    key = jax.random.PRNGKey(0)
    pkey, dkey = jax.random.split(key)
    params = init_params(pkey)

    input_ids = jax.random.randint(dkey, (B, S), 1, VOCAB, dtype=jnp.int32)
    # add padding (token id 0) so the (input_ids != 0) mask actually matters
    input_ids = input_ids.at[1, S - 4:].set(0)

    logits = custom_transformer_forward(params, input_ids)
    jax.block_until_ready(logits)
    assert logits.shape == (B, NUM_LABELS) and logits.dtype == jnp.float32
    print("KERNEL_OK")
</pallas_src>

<mosaic_0001>
module attributes {stable_mosaic.version = 11 : i64} {
  func.func @distilbert_kernel(%arg0: memref<2x16x32xf32, #tpu.memory_space<vmem>>, %arg1: memref<32x128xf32, #tpu.memory_space<vmem>>, %arg2: memref<2x128x512xbf16, #tpu.memory_space<vmem>>, %arg3: memref<2x128x256xbf16, #tpu.memory_space<vmem>>, %arg4: memref<2x256x128xbf16, #tpu.memory_space<vmem>>, %arg5: memref<128x256xbf16, #tpu.memory_space<vmem>>, %arg6: memref<20x384xf32, #tpu.memory_space<vmem>>, %arg7: memref<2x128xf32, #tpu.memory_space<vmem>>) attributes {dimension_semantics = [], scalar_prefetch = 0 : i64, scratch_operands = 0 : i64, tpu.core_type = #tpu.core_type<tc>} {
    %c0 = arith.constant 0 : index
    %c0_0 = arith.constant 0 : index
    %c0_1 = arith.constant 0 : index
    %0 = vector.load %arg0[%c0, %c0_0, %c0_1] : memref<2x16x32xf32, #tpu.memory_space<vmem>>, vector<2x16x32xf32>
    %c0_2 = arith.constant 0 : index
    %c0_3 = arith.constant 0 : index
    %1 = vector.load %arg1[%c0_2, %c0_3] : memref<32x128xf32, #tpu.memory_space<vmem>>, vector<32x128xf32>
    %c16 = arith.constant 16 : index
    %c0_4 = arith.constant 0 : index
    %2 = vector.load %arg6[%c16, %c0_4] : memref<20x384xf32, #tpu.memory_space<vmem>>, vector<1x128xf32>
    %c17 = arith.constant 17 : index
    %c0_5 = arith.constant 0 : index
    %3 = vector.load %arg6[%c17, %c0_5] : memref<20x384xf32, #tpu.memory_space<vmem>>, vector<1x128xf32>
    %cst = arith.constant dense<0.000000e+00> : vector<32xf32>
    %4 = vector.multi_reduction <add>, %1, %cst [1] : vector<32x128xf32> to vector<32xf32>
    %5 = vector.shape_cast %4 : vector<32xf32> to vector<32x1xf32>
    %cst_6 = arith.constant 1.280000e+02 : f32
    %6 = vector.broadcast %cst_6 : f32 to vector<32x1xf32>
    %7 = arith.divf %5, %6 : vector<32x1xf32>
    %8 = vector.broadcast %7 : vector<32x1xf32> to vector<32x128xf32>
    %9 = arith.subf %1, %8 : vector<32x128xf32>
    %10 = arith.mulf %9, %9 : vector<32x128xf32>
    %cst_7 = arith.constant dense<0.000000e+00> : vector<32xf32>
    %11 = vector.multi_reduction <add>, %10, %cst_7 [1] : vector<32x128xf32> to vector<32xf32>
    %12 = vector.shape_cast %11 : vector<32xf32> to vector<32x1xf32>
    %cst_8 = arith.constant 1.280000e+02 : f32
    %13 = vector.broadcast %cst_8 : f32 to vector<32x1xf32>
    %14 = arith.divf %12, %13 : vector<32x1xf32>
    %cst_9 = arith.constant 9.99999996E-13 : f32
    %15 = vector.broadcast %cst_9 : f32 to vector<32x1xf32>
    %16 = arith.addf %14, %15 : vector<32x1xf32>
    %17 = math.rsqrt %16 : vector<32x1xf32>
    %18 = vector.broadcast %17 : vector<32x1xf32> to vector<32x128xf32>
    %19 = arith.mulf %9, %18 : vector<32x128xf32>
    %20 = vector.broadcast %2 : vector<1x128xf32> to vector<32x128xf32>
    %21 = arith.mulf %19, %20 : vector<32x128xf32>
    %22 = vector.broadcast %3 : vector<1x128xf32> to vector<32x128xf32>
    %23 = arith.addf %21, %22 : vector<32x128xf32>
    %24 = tpu.iota {dimensions = array<i32: 1>} : vector<1x128xi32>
    %c0_i32 = arith.constant 0 : i32
    %25 = vector.broadcast %c0_i32 : i32 to vector<1x128xi32>
    %26 = arith.cmpi sge, %24, %25 : vector<1x128xi32>
    %c64_i32 = arith.constant 64 : i32
    %27 = vector.broadcast %c64_i32 : i32 to vector<1x128xi32>
    %28 = arith.cmpi slt, %24, %27 : vector<1x128xi32>
    %29 = arith.andi %26, %28 : vector<1x128xi1>
    %30 = arith.extui %29 : vector<1x128xi1> to vector<1x128xi32>
    %31 = arith.sitofp %30 : vector<1x128xi32> to vector<1x128xf32>
    %c64_i32_10 = arith.constant 64 : i32
    %32 = vector.broadcast %c64_i32_10 : i32 to vector<1x128xi32>
    %33 = arith.cmpi sge, %24, %32 : vector<1x128xi32>
    %c128_i32 = arith.constant 128 : i32
    %34 = vector.broadcast %c128_i32 : i32 to vector<1x128xi32>
    %35 = arith.cmpi slt, %24, %34 : vector<1x128xi32>
    %36 = arith.andi %33, %35 : vector<1x128xi1>
    %37 = arith.extui %36 : vector<1x128xi1> to vector<1x128xi32>
    %38 = arith.sitofp %37 : vector<1x128xi32> to vector<1x128xf32>
    %c0_11 = arith.constant 0 : index
    %c0_12 = arith.constant 0 : index
    %c0_13 = arith.constant 0 : index
    %39 = vector.load %arg2[%c0_11, %c0_12, %c0_13] : memref<2x128x512xbf16, #tpu.memory_space<vmem>>, vector<1x128x512xbf16>
    %40 = vector.shape_cast %39 : vector<1x128x512xbf16> to vector<128x512xbf16>
    %41 = arith.truncf %23 : vector<32x128xf32> to vector<32x128xbf16>
    %42 = vector.extract_strided_slice %40 {offsets = [0, 0], sizes = [128, 384], strides = [1, 1]} : vector<128x512xbf16> to vector<128x384xbf16>
    %cst_14 = arith.constant dense<0.000000e+00> : vector<32x384xf32>
    %43 = tpu.matmul %41, %42, %cst_14 {dimension_numbers = #tpu.dot_dimension_numbers<[1], [0], [0], [1], [0, 0, 1, 1], [], []>} : vector<32x128xbf16>, vector<128x384xbf16>, vector<32x384xf32> -> vector<32x384xf32>
    %c0_15 = arith.constant 0 : index
    %c0_16 = arith.constant 0 : index
    %44 = vector.load %arg6[%c0_15, %c0_16] : memref<20x384xf32, #tpu.memory_space<vmem>>, vector<1x384xf32>
    %45 = vector.broadcast %44 : vector<1x384xf32> to vector<32x384xf32>
    %46 = arith.addf %43, %45 : vector<32x384xf32>
    %47 = vector.extract_strided_slice %46 {offsets = [0, 0], sizes = [32, 128], strides = [1, 1]} : vector<32x384xf32> to vector<32x128xf32>
    %48 = vector.shape_cast %47 : vector<32x128xf32> to vector<2x16x128xf32>
    %49 = vector.extract_strided_slice %46 {offsets = [0, 128], sizes = [32, 128], strides = [1, 1]} : vector<32x384xf32> to vector<32x128xf32>
    %50 = vector.shape_cast %49 : vector<32x128xf32> to vector<2x16x128xf32>
    %51 = vector.extract_strided_slice %46 {offsets = [0, 256], sizes = [32, 128], strides = [1, 1]} : vector<32x384xf32> to vector<32x128xf32>
    %52 = vector.shape_cast %51 : vector<32x128xf32> to vector<2x16x128xf32>
    %53 = vector.shape_cast %31 : vector<1x128xf32> to vector<1x1x128xf32>
    %54 = vector.broadcast %53 : vector<1x1x128xf32> to vector<2x16x128xf32>
    %55 = arith.mulf %50, %54 : vector<2x16x128xf32>
    %56 = vector.shape_cast %38 : vector<1x128xf32> to vector<1x1x128xf32>
    %57 = vector.broadcast %56 : vector<1x1x128xf32> to vector<2x16x128xf32>
    %58 = arith.mulf %50, %57 : vector<2x16x128xf32>
    %59 = tpu.concatenate %55, %58 in 1 : vector<2x16x128xf32>, vector<2x16x128xf32> -> vector<2x32x128xf32>
    %60 = vector.shape_cast %31 : vector<1x128xf32> to vector<1x1x128xf32>
    %61 = vector.broadcast %60 : vector<1x1x128xf32> to vector<2x16x128xf32>
    %62 = arith.mulf %52, %61 : vector<2x16x128xf32>
    %63 = vector.shape_cast %38 : vector<1x128xf32> to vector<1x1x128xf32>
    %64 = vector.broadcast %63 : vector<1x1x128xf32> to vector<2x16x128xf32>
    %65 = arith.mulf %52, %64 : vector<2x16x128xf32>
    %66 = tpu.concatenate %62, %65 in 1 : vector<2x16x128xf32>, vector<2x16x128xf32> -> vector<2x32x128xf32>
    "tpu.trace_start"() <{level = 10 : i32, message = "bqd,bkd->bqk"}> : () -> ()
    %cst_17 = arith.constant dense<0.000000e+00> : vector<2x16x32xf32>
    %67 = tpu.matmul %48, %59, %cst_17 {dimension_numbers = #tpu.dot_dimension_numbers<[2], [2], [1], [1], [0, 0, 0, 1, 1, 1], [0], [0]>} : vector<2x16x128xf32>, vector<2x32x128xf32>, vector<2x16x32xf32> -> vector<2x16x32xf32>
    "tpu.trace_stop"() : () -> ()
    %68 = arith.addf %67, %0 : vector<2x16x32xf32>
    %69 = vector.extract_strided_slice %68 {offsets = [0, 0, 0], sizes = [2, 16, 16], strides = [1, 1, 1]} : vector<2x16x32xf32> to vector<2x16x16xf32>
    %cst_18 = arith.constant dense<0xFF800000> : vector<2x16xf32>
    %70 = vector.multi_reduction <maximumf>, %69, %cst_18 [2] : vector<2x16x16xf32> to vector<2x16xf32>
    %71 = vector.shape_cast %70 : vector<2x16xf32> to vector<2x16x1xf32>
    %72 = vector.broadcast %71 : vector<2x16x1xf32> to vector<2x16x16xf32>
    %73 = arith.subf %69, %72 : vector<2x16x16xf32>
    %74 = math.exp %73 : vector<2x16x16xf32>
    %cst_19 = arith.constant dense<0.000000e+00> : vector<2x16xf32>
    %75 = vector.multi_reduction <add>, %74, %cst_19 [2] : vector<2x16x16xf32> to vector<2x16xf32>
    %76 = vector.shape_cast %75 : vector<2x16xf32> to vector<2x16x1xf32>
    %77 = tpu.reciprocal %76 {approx = true} : vector<2x16x1xf32> -> vector<2x16x1xf32>
    %78 = vector.broadcast %77 : vector<2x16x1xf32> to vector<2x16x16xf32>
    %79 = arith.mulf %74, %78 : vector<2x16x16xf32>
    %80 = vector.extract_strided_slice %68 {offsets = [0, 0, 16], sizes = [2, 16, 16], strides = [1, 1, 1]} : vector<2x16x32xf32> to vector<2x16x16xf32>
    %cst_20 = arith.constant dense<0xFF800000> : vector<2x16xf32>
    %81 = vector.multi_reduction <maximumf>, %80, %cst_20 [2] : vector<2x16x16xf32> to vector<2x16xf32>
    %82 = vector.shape_cast %81 : vector<2x16xf32> to vector<2x16x1xf32>
    %83 = vector.broadcast %82 : vector<2x16x1xf32> to vector<2x16x16xf32>
    %84 = arith.subf %80, %83 : vector<2x16x16xf32>
    %85 = math.exp %84 : vector<2x16x16xf32>
    %cst_21 = arith.constant dense<0.000000e+00> : vector<2x16xf32>
    %86 = vector.multi_reduction <add>, %85, %cst_21 [2] : vector<2x16x16xf32> to vector<2x16xf32>
    %87 = vector.shape_cast %86 : vector<2x16xf32> to vector<2x16x1xf32>
    %88 = tpu.reciprocal %87 {approx = true} : vector<2x16x1xf32> -> vector<2x16x1xf32>
    %89 = vector.broadcast %88 : vector<2x16x1xf32> to vector<2x16x16xf32>
    %90 = arith.mulf %85, %89 : vector<2x16x16xf32>
    %91 = tpu.concatenate %79, %90 in 2 : vector<2x16x16xf32>, vector<2x16x16xf32> -> vector<2x16x32xf32>
    "tpu.trace_start"() <{level = 10 : i32, message = "bqk,bkd->bqd"}> : () -> ()
    %cst_22 = arith.constant dense<0.000000e+00> : vector<2x16x128xf32>
    %92 = tpu.matmul %91, %66, %cst_22 {dimension_numbers = #tpu.dot_dimension_numbers<[2], [1], [1], [2], [0, 0, 0, 1, 1, 2], [0], [0]>} : vector<2x16x32xf32>, vector<2x32x128xf32>, vector<2x16x128xf32> -> vector<2x16x128xf32>
    "tpu.trace_stop"() : () -> ()
    %93 = vector.shape_cast %92 : vector<2x16x128xf32> to vector<32x128xf32>
    %94 = arith.truncf %93 : vector<32x128xf32> to vector<32x128xbf16>
    %95 = vector.extract_strided_slice %40 {offsets = [0, 384], sizes = [128, 128], strides = [1, 1]} : vector<128x512xbf16> to vector<128x128xbf16>
    %cst_23 = arith.constant dense<0.000000e+00> : vector<32x128xf32>
    %96 = tpu.matmul %94, %95, %cst_23 {dimension_numbers = #tpu.dot_dimension_numbers<[1], [0], [0], [1], [0, 0, 1, 1], [], []>} : vector<32x128xbf16>, vector<128x128xbf16>, vector<32x128xf32> -> vector<32x128xf32>
    %c1 = arith.constant 1 : index
    %c0_24 = arith.constant 0 : index
    %97 = vector.load %arg6[%c1, %c0_24] : memref<20x384xf32, #tpu.memory_space<vmem>>, vector<1x128xf32>
    %98 = vector.broadcast %97 : vector<1x128xf32> to vector<32x128xf32>
    %99 = arith.addf %96, %98 : vector<32x128xf32>
    %100 = arith.addf %23, %99 : vector<32x128xf32>
    %c2 = arith.constant 2 : index
    %c0_25 = arith.constant 0 : index
    %101 = vector.load %arg6[%c2, %c0_25] : memref<20x384xf32, #tpu.memory_space<vmem>>, vector<1x128xf32>
    %c3 = arith.constant 3 : index
    %c0_26 = arith.constant 0 : index
    %102 = vector.load %arg6[%c3, %c0_26] : memref<20x384xf32, #tpu.memory_space<vmem>>, vector<1x128xf32>
    %cst_27 = arith.constant dense<0.000000e+00> : vector<32xf32>
    %103 = vector.multi_reduction <add>, %100, %cst_27 [1] : vector<32x128xf32> to vector<32xf32>
    %104 = vector.shape_cast %103 : vector<32xf32> to vector<32x1xf32>
    %cst_28 = arith.constant 1.280000e+02 : f32
    %105 = vector.broadcast %cst_28 : f32 to vector<32x1xf32>
    %106 = arith.divf %104, %105 : vector<32x1xf32>
    %107 = vector.broadcast %106 : vector<32x1xf32> to vector<32x128xf32>
    %108 = arith.subf %100, %107 : vector<32x128xf32>
    %109 = arith.mulf %108, %108 : vector<32x128xf32>
    %cst_29 = arith.constant dense<0.000000e+00> : vector<32xf32>
    %110 = vector.multi_reduction <add>, %109, %cst_29 [1] : vector<32x128xf32> to vector<32xf32>
    %111 = vector.shape_cast %110 : vector<32xf32> to vector<32x1xf32>
    %cst_30 = arith.constant 1.280000e+02 : f32
    %112 = vector.broadcast %cst_30 : f32 to vector<32x1xf32>
    %113 = arith.divf %111, %112 : vector<32x1xf32>
    %cst_31 = arith.constant 9.99999996E-13 : f32
    %114 = vector.broadcast %cst_31 : f32 to vector<32x1xf32>
    %115 = arith.addf %113, %114 : vector<32x1xf32>
    %116 = math.rsqrt %115 : vector<32x1xf32>
    %117 = vector.broadcast %116 : vector<32x1xf32> to vector<32x128xf32>
    %118 = arith.mulf %108, %117 : vector<32x128xf32>
    %119 = vector.broadcast %101 : vector<1x128xf32> to vector<32x128xf32>
    %120 = arith.mulf %118, %119 : vector<32x128xf32>
    %121 = vector.broadcast %102 : vector<1x128xf32> to vector<32x128xf32>
    %122 = arith.addf %120, %121 : vector<32x128xf32>
    %123 = arith.truncf %122 : vector<32x128xf32> to vector<32x128xbf16>
    %c0_32 = arith.constant 0 : index
    %c0_33 = arith.constant 0 : index
    %c0_34 = arith.constant 0 : index
    %124 = vector.load %arg3[%c0_32, %c0_33, %c0_34] : memref<2x128x256xbf16, #tpu.memory_space<vmem>>, vector<1x128x256xbf16>
    %125 = vector.shape_cast %124 : vector<1x128x256xbf16> to vector<128x256xbf16>
    %cst_35 = arith.constant dense<0.000000e+00> : vector<32x256xf32>
    %126 = tpu.matmul %123, %125, %cst_35 {dimension_numbers = #tpu.dot_dimension_numbers<[1], [0], [0], [1], [0, 0, 1, 1], [], []>} : vector<32x128xbf16>, vector<128x256xbf16>, vector<32x256xf32> -> vector<32x256xf32>
    %c4 = arith.constant 4 : index
    %c0_36 = arith.constant 0 : index
    %127 = vector.load %arg6[%c4, %c0_36] : memref<20x384xf32, #tpu.memory_space<vmem>>, vector<1x256xf32>
    %128 = vector.broadcast %127 : vector<1x256xf32> to vector<32x256xf32>
    %129 = arith.addf %126, %128 : vector<32x256xf32>
    %cst_37 = arith.constant 5.000000e-01 : f32
    %130 = vector.broadcast %cst_37 : f32 to vector<32x256xf32>
    %131 = arith.mulf %130, %129 : vector<32x256xf32>
    %cst_38 = arith.constant 4.471500e-02 : f32
    %132 = vector.broadcast %cst_38 : f32 to vector<32x256xf32>
    %133 = arith.mulf %132, %129 : vector<32x256xf32>
    %134 = arith.mulf %133, %129 : vector<32x256xf32>
    %135 = arith.mulf %134, %129 : vector<32x256xf32>
    %136 = arith.addf %129, %135 : vector<32x256xf32>
    %cst_39 = arith.constant 0.797884583 : f32
    %137 = vector.broadcast %cst_39 : f32 to vector<32x256xf32>
    %138 = arith.mulf %137, %136 : vector<32x256xf32>
    %139 = math.tanh %138 : vector<32x256xf32>
    %cst_40 = arith.constant 1.000000e+00 : f32
    %140 = vector.broadcast %cst_40 : f32 to vector<32x256xf32>
    %141 = arith.addf %140, %139 : vector<32x256xf32>
    %142 = arith.mulf %131, %141 : vector<32x256xf32>
    %143 = arith.truncf %142 : vector<32x256xf32> to vector<32x256xbf16>
    %c0_41 = arith.constant 0 : index
    %c0_42 = arith.constant 0 : index
    %c0_43 = arith.constant 0 : index
    %144 = vector.load %arg4[%c0_41, %c0_42, %c0_43] : memref<2x256x128xbf16, #tpu.memory_space<vmem>>, vector<1x256x128xbf16>
    %145 = vector.shape_cast %144 : vector<1x256x128xbf16> to vector<256x128xbf16>
    %cst_44 = arith.constant dense<0.000000e+00> : vector<32x128xf32>
    %146 = tpu.matmul %143, %145, %cst_44 {dimension_numbers = #tpu.dot_dimension_numbers<[1], [0], [0], [1], [0, 0, 1, 1], [], []>} : vector<32x256xbf16>, vector<256x128xbf16>, vector<32x128xf32> -> vector<32x128xf32>
    %c5 = arith.constant 5 : index
    %c0_45 = arith.constant 0 : index
    %147 = vector.load %arg6[%c5, %c0_45] : memref<20x384xf32, #tpu.memory_space<vmem>>, vector<1x128xf32>
    %148 = vector.broadcast %147 : vector<1x128xf32> to vector<32x128xf32>
    %149 = arith.addf %146, %148 : vector<32x128xf32>
    %150 = arith.addf %122, %149 : vector<32x128xf32>
    %c6 = arith.constant 6 : index
    %c0_46 = arith.constant 0 : index
    %151 = vector.load %arg6[%c6, %c0_46] : memref<20x384xf32, #tpu.memory_space<vmem>>, vector<1x128xf32>
    %c7 = arith.constant 7 : index
    %c0_47 = arith.constant 0 : index
    %152 = vector.load %arg6[%c7, %c0_47] : memref<20x384xf32, #tpu.memory_space<vmem>>, vector<1x128xf32>
    %cst_48 = arith.constant dense<0.000000e+00> : vector<32xf32>
    %153 = vector.multi_reduction <add>, %150, %cst_48 [1] : vector<32x128xf32> to vector<32xf32>
    %154 = vector.shape_cast %153 : vector<32xf32> to vector<32x1xf32>
    %cst_49 = arith.constant 1.280000e+02 : f32
    %155 = vector.broadcast %cst_49 : f32 to vector<32x1xf32>
    %156 = arith.divf %154, %155 : vector<32x1xf32>
    %157 = vector.broadcast %156 : vector<32x1xf32> to vector<32x128xf32>
    %158 = arith.subf %150, %157 : vector<32x128xf32>
    %159 = arith.mulf %158, %158 : vector<32x128xf32>
    %cst_50 = arith.constant dense<0.000000e+00> : vector<32xf32>
    %160 = vector.multi_reduction <add>, %159, %cst_50 [1] : vector<32x128xf32> to vector<32xf32>
    %161 = vector.shape_cast %160 : vector<32xf32> to vector<32x1xf32>
    %cst_51 = arith.constant 1.280000e+02 : f32
    %162 = vector.broadcast %cst_51 : f32 to vector<32x1xf32>
    %163 = arith.divf %161, %162 : vector<32x1xf32>
    %cst_52 = arith.constant 9.99999996E-13 : f32
    %164 = vector.broadcast %cst_52 : f32 to vector<32x1xf32>
    %165 = arith.addf %163, %164 : vector<32x1xf32>
    %166 = math.rsqrt %165 : vector<32x1xf32>
    %167 = vector.broadcast %166 : vector<32x1xf32> to vector<32x128xf32>
    %168 = arith.mulf %158, %167 : vector<32x128xf32>
    %169 = vector.broadcast %151 : vector<1x128xf32> to vector<32x128xf32>
    %170 = arith.mulf %168, %169 : vector<32x128xf32>
    %171 = vector.broadcast %152 : vector<1x128xf32> to vector<32x128xf32>
    %172 = arith.addf %170, %171 : vector<32x128xf32>
    %c1_53 = arith.constant 1 : index
    %c0_54 = arith.constant 0 : index
    %c0_55 = arith.constant 0 : index
    %173 = vector.load %arg2[%c1_53, %c0_54, %c0_55] : memref<2x128x512xbf16, #tpu.memory_space<vmem>>, vector<1x128x512xbf16>
    %174 = vector.shape_cast %173 : vector<1x128x512xbf16> to vector<128x512xbf16>
    %175 = arith.truncf %172 : vector<32x128xf32> to vector<32x128xbf16>
    %176 = vector.extract_strided_slice %174 {offsets = [0, 0], sizes = [128, 384], strides = [1, 1]} : vector<128x512xbf16> to vector<128x384xbf16>
    %cst_56 = arith.constant dense<0.000000e+00> : vector<32x384xf32>
    %177 = tpu.matmul %175, %176, %cst_56 {dimension_numbers = #tpu.dot_dimension_numbers<[1], [0], [0], [1], [0, 0, 1, 1], [], []>} : vector<32x128xbf16>, vector<128x384xbf16>, vector<32x384xf32> -> vector<32x384xf32>
    %c8 = arith.constant 8 : index
    %c0_57 = arith.constant 0 : index
    %178 = vector.load %arg6[%c8, %c0_57] : memref<20x384xf32, #tpu.memory_space<vmem>>, vector<1x384xf32>
    %179 = vector.broadcast %178 : vector<1x384xf32> to vector<32x384xf32>
    %180 = arith.addf %177, %179 : vector<32x384xf32>
    %181 = vector.extract_strided_slice %180 {offsets = [0, 0], sizes = [32, 128], strides = [1, 1]} : vector<32x384xf32> to vector<32x128xf32>
    %182 = vector.shape_cast %181 : vector<32x128xf32> to vector<2x16x128xf32>
    %183 = vector.extract_strided_slice %180 {offsets = [0, 128], sizes = [32, 128], strides = [1, 1]} : vector<32x384xf32> to vector<32x128xf32>
    %184 = vector.shape_cast %183 : vector<32x128xf32> to vector<2x16x128xf32>
    %185 = vector.extract_strided_slice %180 {offsets = [0, 256], sizes = [32, 128], strides = [1, 1]} : vector<32x384xf32> to vector<32x128xf32>
    %186 = vector.shape_cast %185 : vector<32x128xf32> to vector<2x16x128xf32>
    %187 = vector.shape_cast %31 : vector<1x128xf32> to vector<1x1x128xf32>
    %188 = vector.broadcast %187 : vector<1x1x128xf32> to vector<2x16x128xf32>
    %189 = arith.mulf %184, %188 : vector<2x16x128xf32>
    %190 = vector.shape_cast %38 : vector<1x128xf32> to vector<1x1x128xf32>
    %191 = vector.broadcast %190 : vector<1x1x128xf32> to vector<2x16x128xf32>
    %192 = arith.mulf %184, %191 : vector<2x16x128xf32>
    %193 = tpu.concatenate %189, %192 in 1 : vector<2x16x128xf32>, vector<2x16x128xf32> -> vector<2x32x128xf32>
    %194 = vector.shape_cast %31 : vector<1x128xf32> to vector<1x1x128xf32>
    %195 = vector.broadcast %194 : vector<1x1x128xf32> to vector<2x16x128xf32>
    %196 = arith.mulf %186, %195 : vector<2x16x128xf32>
    %197 = vector.shape_cast %38 : vector<1x128xf32> to vector<1x1x128xf32>
    %198 = vector.broadcast %197 : vector<1x1x128xf32> to vector<2x16x128xf32>
    %199 = arith.mulf %186, %198 : vector<2x16x128xf32>
    %200 = tpu.concatenate %196, %199 in 1 : vector<2x16x128xf32>, vector<2x16x128xf32> -> vector<2x32x128xf32>
    "tpu.trace_start"() <{level = 10 : i32, message = "bqd,bkd->bqk"}> : () -> ()
    %cst_58 = arith.constant dense<0.000000e+00> : vector<2x16x32xf32>
    %201 = tpu.matmul %182, %193, %cst_58 {dimension_numbers = #tpu.dot_dimension_numbers<[2], [2], [1], [1], [0, 0, 0, 1, 1, 1], [0], [0]>} : vector<2x16x128xf32>, vector<2x32x128xf32>, vector<2x16x32xf32> -> vector<2x16x32xf32>
    "tpu.trace_stop"() : () -> ()
    %202 = arith.addf %201, %0 : vector<2x16x32xf32>
    %203 = vector.extract_strided_slice %202 {offsets = [0, 0, 0], sizes = [2, 16, 16], strides = [1, 1, 1]} : vector<2x16x32xf32> to vector<2x16x16xf32>
    %cst_59 = arith.constant dense<0xFF800000> : vector<2x16xf32>
    %204 = vector.multi_reduction <maximumf>, %203, %cst_59 [2] : vector<2x16x16xf32> to vector<2x16xf32>
    %205 = vector.shape_cast %204 : vector<2x16xf32> to vector<2x16x1xf32>
    %206 = vector.broadcast %205 : vector<2x16x1xf32> to vector<2x16x16xf32>
    %207 = arith.subf %203, %206 : vector<2x16x16xf32>
    %208 = math.exp %207 : vector<2x16x16xf32>
    %cst_60 = arith.constant dense<0.000000e+00> : vector<2x16xf32>
    %209 = vector.multi_reduction <add>, %208, %cst_60 [2] : vector<2x16x16xf32> to vector<2x16xf32>
    %210 = vector.shape_cast %209 : vector<2x16xf32> to vector<2x16x1xf32>
    %211 = tpu.reciprocal %210 {approx = true} : vector<2x16x1xf32> -> vector<2x16x1xf32>
    %212 = vector.broadcast %211 : vector<2x16x1xf32> to vector<2x16x16xf32>
    %213 = arith.mulf %208, %212 : vector<2x16x16xf32>
    %214 = vector.extract_strided_slice %202 {offsets = [0, 0, 16], sizes = [2, 16, 16], strides = [1, 1, 1]} : vector<2x16x32xf32> to vector<2x16x16xf32>
    %cst_61 = arith.constant dense<0xFF800000> : vector<2x16xf32>
    %215 = vector.multi_reduction <maximumf>, %214, %cst_61 [2] : vector<2x16x16xf32> to vector<2x16xf32>
    %216 = vector.shape_cast %215 : vector<2x16xf32> to vector<2x16x1xf32>
    %217 = vector.broadcast %216 : vector<2x16x1xf32> to vector<2x16x16xf32>
    %218 = arith.subf %214, %217 : vector<2x16x16xf32>
    %219 = math.exp %218 : vector<2x16x16xf32>
    %cst_62 = arith.constant dense<0.000000e+00> : vector<2x16xf32>
    %220 = vector.multi_reduction <add>, %219, %cst_62 [2] : vector<2x16x16xf32> to vector<2x16xf32>
    %221 = vector.shape_cast %220 : vector<2x16xf32> to vector<2x16x1xf32>
    %222 = tpu.reciprocal %221 {approx = true} : vector<2x16x1xf32> -> vector<2x16x1xf32>
    %223 = vector.broadcast %222 : vector<2x16x1xf32> to vector<2x16x16xf32>
    %224 = arith.mulf %219, %223 : vector<2x16x16xf32>
    %225 = tpu.concatenate %213, %224 in 2 : vector<2x16x16xf32>, vector<2x16x16xf32> -> vector<2x16x32xf32>
    "tpu.trace_start"() <{level = 10 : i32, message = "bqk,bkd->bqd"}> : () -> ()
    %cst_63 = arith.constant dense<0.000000e+00> : vector<2x16x128xf32>
    %226 = tpu.matmul %225, %200, %cst_63 {dimension_numbers = #tpu.dot_dimension_numbers<[2], [1], [1], [2], [0, 0, 0, 1, 1, 2], [0], [0]>} : vector<2x16x32xf32>, vector<2x32x128xf32>, vector<2x16x128xf32> -> vector<2x16x128xf32>
    "tpu.trace_stop"() : () -> ()
    %227 = vector.shape_cast %226 : vector<2x16x128xf32> to vector<32x128xf32>
    %228 = arith.truncf %227 : vector<32x128xf32> to vector<32x128xbf16>
    %229 = vector.extract_strided_slice %174 {offsets = [0, 384], sizes = [128, 128], strides = [1, 1]} : vector<128x512xbf16> to vector<128x128xbf16>
    %cst_64 = arith.constant dense<0.000000e+00> : vector<32x128xf32>
    %230 = tpu.matmul %228, %229, %cst_64 {dimension_numbers = #tpu.dot_dimension_numbers<[1], [0], [0], [1], [0, 0, 1, 1], [], []>} : vector<32x128xbf16>, vector<128x128xbf16>, vector<32x128xf32> -> vector<32x128xf32>
    %c9 = arith.constant 9 : index
    %c0_65 = arith.constant 0 : index
    %231 = vector.load %arg6[%c9, %c0_65] : memref<20x384xf32, #tpu.memory_space<vmem>>, vector<1x128xf32>
    %232 = vector.broadcast %231 : vector<1x128xf32> to vector<32x128xf32>
    %233 = arith.addf %230, %232 : vector<32x128xf32>
    %234 = arith.addf %172, %233 : vector<32x128xf32>
    %c10 = arith.constant 10 : index
    %c0_66 = arith.constant 0 : index
    %235 = vector.load %arg6[%c10, %c0_66] : memref<20x384xf32, #tpu.memory_space<vmem>>, vector<1x128xf32>
    %c11 = arith.constant 11 : index
    %c0_67 = arith.constant 0 : index
    %236 = vector.load %arg6[%c11, %c0_67] : memref<20x384xf32, #tpu.memory_space<vmem>>, vector<1x128xf32>
    %cst_68 = arith.constant dense<0.000000e+00> : vector<32xf32>
    %237 = vector.multi_reduction <add>, %234, %cst_68 [1] : vector<32x128xf32> to vector<32xf32>
    %238 = vector.shape_cast %237 : vector<32xf32> to vector<32x1xf32>
    %cst_69 = arith.constant 1.280000e+02 : f32
    %239 = vector.broadcast %cst_69 : f32 to vector<32x1xf32>
    %240 = arith.divf %238, %239 : vector<32x1xf32>
    %241 = vector.broadcast %240 : vector<32x1xf32> to vector<32x128xf32>
    %242 = arith.subf %234, %241 : vector<32x128xf32>
    %243 = arith.mulf %242, %242 : vector<32x128xf32>
    %cst_70 = arith.constant dense<0.000000e+00> : vector<32xf32>
    %244 = vector.multi_reduction <add>, %243, %cst_70 [1] : vector<32x128xf32> to vector<32xf32>
    %245 = vector.shape_cast %244 : vector<32xf32> to vector<32x1xf32>
    %cst_71 = arith.constant 1.280000e+02 : f32
    %246 = vector.broadcast %cst_71 : f32 to vector<32x1xf32>
    %247 = arith.divf %245, %246 : vector<32x1xf32>
    %cst_72 = arith.constant 9.99999996E-13 : f32
    %248 = vector.broadcast %cst_72 : f32 to vector<32x1xf32>
    %249 = arith.addf %247, %248 : vector<32x1xf32>
    %250 = math.rsqrt %249 : vector<32x1xf32>
    %251 = vector.broadcast %250 : vector<32x1xf32> to vector<32x128xf32>
    %252 = arith.mulf %242, %251 : vector<32x128xf32>
    %253 = vector.broadcast %235 : vector<1x128xf32> to vector<32x128xf32>
    %254 = arith.mulf %252, %253 : vector<32x128xf32>
    %255 = vector.broadcast %236 : vector<1x128xf32> to vector<32x128xf32>
    %256 = arith.addf %254, %255 : vector<32x128xf32>
    %257 = arith.truncf %256 : vector<32x128xf32> to vector<32x128xbf16>
    %c1_73 = arith.constant 1 : index
    %c0_74 = arith.constant 0 : index
    %c0_75 = arith.constant 0 : index
    %258 = vector.load %arg3[%c1_73, %c0_74, %c0_75] : memref<2x128x256xbf16, #tpu.memory_space<vmem>>, vector<1x128x256xbf16>
    %259 = vector.shape_cast %258 : vector<1x128x256xbf16> to vector<128x256xbf16>
    %cst_76 = arith.constant dense<0.000000e+00> : vector<32x256xf32>
    %260 = tpu.matmul %257, %259, %cst_76 {dimension_numbers = #tpu.dot_dimension_numbers<[1], [0], [0], [1], [0, 0, 1, 1], [], []>} : vector<32x128xbf16>, vector<128x256xbf16>, vector<32x256xf32> -> vector<32x256xf32>
    %c12 = arith.constant 12 : index
    %c0_77 = arith.constant 0 : index
    %261 = vector.load %arg6[%c12, %c0_77] : memref<20x384xf32, #tpu.memory_space<vmem>>, vector<1x256xf32>
    %262 = vector.broadcast %261 : vector<1x256xf32> to vector<32x256xf32>
    %263 = arith.addf %260, %262 : vector<32x256xf32>
    %cst_78 = arith.constant 5.000000e-01 : f32
    %264 = vector.broadcast %cst_78 : f32 to vector<32x256xf32>
    %265 = arith.mulf %264, %263 : vector<32x256xf32>
    %cst_79 = arith.constant 4.471500e-02 : f32
    %266 = vector.broadcast %cst_79 : f32 to vector<32x256xf32>
    %267 = arith.mulf %266, %263 : vector<32x256xf32>
    %268 = arith.mulf %267, %263 : vector<32x256xf32>
    %269 = arith.mulf %268, %263 : vector<32x256xf32>
    %270 = arith.addf %263, %269 : vector<32x256xf32>
    %cst_80 = arith.constant 0.797884583 : f32
    %271 = vector.broadcast %cst_80 : f32 to vector<32x256xf32>
    %272 = arith.mulf %271, %270 : vector<32x256xf32>
    %273 = math.tanh %272 : vector<32x256xf32>
    %cst_81 = arith.constant 1.000000e+00 : f32
    %274 = vector.broadcast %cst_81 : f32 to vector<32x256xf32>
    %275 = arith.addf %274, %273 : vector<32x256xf32>
    %276 = arith.mulf %265, %275 : vector<32x256xf32>
    %277 = arith.truncf %276 : vector<32x256xf32> to vector<32x256xbf16>
    %c1_82 = arith.constant 1 : index
    %c0_83 = arith.constant 0 : index
    %c0_84 = arith.constant 0 : index
    %278 = vector.load %arg4[%c1_82, %c0_83, %c0_84] : memref<2x256x128xbf16, #tpu.memory_space<vmem>>, vector<1x256x128xbf16>
    %279 = vector.shape_cast %278 : vector<1x256x128xbf16> to vector<256x128xbf16>
    %cst_85 = arith.constant dense<0.000000e+00> : vector<32x128xf32>
    %280 = tpu.matmul %277, %279, %cst_85 {dimension_numbers = #tpu.dot_dimension_numbers<[1], [0], [0], [1], [0, 0, 1, 1], [], []>} : vector<32x256xbf16>, vector<256x128xbf16>, vector<32x128xf32> -> vector<32x128xf32>
    %c13 = arith.constant 13 : index
    %c0_86 = arith.constant 0 : index
    %281 = vector.load %arg6[%c13, %c0_86] : memref<20x384xf32, #tpu.memory_space<vmem>>, vector<1x128xf32>
    %282 = vector.broadcast %281 : vector<1x128xf32> to vector<32x128xf32>
    %283 = arith.addf %280, %282 : vector<32x128xf32>
    %284 = arith.addf %256, %283 : vector<32x128xf32>
    %c14 = arith.constant 14 : index
    %c0_87 = arith.constant 0 : index
    %285 = vector.load %arg6[%c14, %c0_87] : memref<20x384xf32, #tpu.memory_space<vmem>>, vector<1x128xf32>
    %c15 = arith.constant 15 : index
    %c0_88 = arith.constant 0 : index
    %286 = vector.load %arg6[%c15, %c0_88] : memref<20x384xf32, #tpu.memory_space<vmem>>, vector<1x128xf32>
    %cst_89 = arith.constant dense<0.000000e+00> : vector<32xf32>
    %287 = vector.multi_reduction <add>, %284, %cst_89 [1] : vector<32x128xf32> to vector<32xf32>
    %288 = vector.shape_cast %287 : vector<32xf32> to vector<32x1xf32>
    %cst_90 = arith.constant 1.280000e+02 : f32
    %289 = vector.broadcast %cst_90 : f32 to vector<32x1xf32>
    %290 = arith.divf %288, %289 : vector<32x1xf32>
    %291 = vector.broadcast %290 : vector<32x1xf32> to vector<32x128xf32>
    %292 = arith.subf %284, %291 : vector<32x128xf32>
    %293 = arith.mulf %292, %292 : vector<32x128xf32>
    %cst_91 = arith.constant dense<0.000000e+00> : vector<32xf32>
    %294 = vector.multi_reduction <add>, %293, %cst_91 [1] : vector<32x128xf32> to vector<32xf32>
    %295 = vector.shape_cast %294 : vector<32xf32> to vector<32x1xf32>
    %cst_92 = arith.constant 1.280000e+02 : f32
    %296 = vector.broadcast %cst_92 : f32 to vector<32x1xf32>
    %297 = arith.divf %295, %296 : vector<32x1xf32>
    %cst_93 = arith.constant 9.99999996E-13 : f32
    %298 = vector.broadcast %cst_93 : f32 to vector<32x1xf32>
    %299 = arith.addf %297, %298 : vector<32x1xf32>
    %300 = math.rsqrt %299 : vector<32x1xf32>
    %301 = vector.broadcast %300 : vector<32x1xf32> to vector<32x128xf32>
    %302 = arith.mulf %292, %301 : vector<32x128xf32>
    %303 = vector.broadcast %285 : vector<1x128xf32> to vector<32x128xf32>
    %304 = arith.mulf %302, %303 : vector<32x128xf32>
    %305 = vector.broadcast %286 : vector<1x128xf32> to vector<32x128xf32>
    %306 = arith.addf %304, %305 : vector<32x128xf32>
    %307 = vector.shape_cast %306 : vector<32x128xf32> to vector<2x16x128xf32>
    %308 = vector.extract_strided_slice %307 {offsets = [0, 0, 0], sizes = [2, 1, 128], strides = [1, 1, 1]} : vector<2x16x128xf32> to vector<2x1x128xf32>
    %309 = vector.shape_cast %308 : vector<2x1x128xf32> to vector<2x128xf32>
    %310 = arith.truncf %309 : vector<2x128xf32> to vector<2x128xbf16>
    %c0_94 = arith.constant 0 : index
    %c0_95 = arith.constant 0 : index
    %311 = vector.load %arg5[%c0_94, %c0_95] : memref<128x256xbf16, #tpu.memory_space<vmem>>, vector<128x128xbf16>
    %cst_96 = arith.constant dense<0.000000e+00> : vector<2x128xf32>
    %312 = tpu.matmul %310, %311, %cst_96 {dimension_numbers = #tpu.dot_dimension_numbers<[1], [0], [0], [1], [0, 0, 1, 1], [], []>} : vector<2x128xbf16>, vector<128x128xbf16>, vector<2x128xf32> -> vector<2x128xf32>
    %c18 = arith.constant 18 : index
    %c0_97 = arith.constant 0 : index
    %313 = vector.load %arg6[%c18, %c0_97] : memref<20x384xf32, #tpu.memory_space<vmem>>, vector<1x128xf32>
    %314 = vector.broadcast %313 : vector<1x128xf32> to vector<2x128xf32>
    %315 = arith.addf %312, %314 : vector<2x128xf32>
    %cst_98 = arith.constant 0.000000e+00 : f32
    %316 = vector.broadcast %cst_98 : f32 to vector<2x128xf32>
    %317 = arith.maximumf %315, %316 : vector<2x128xf32>
    %318 = arith.truncf %317 : vector<2x128xf32> to vector<2x128xbf16>
    %c0_99 = arith.constant 0 : index
    %c128 = arith.constant 128 : index
    %319 = vector.load %arg5[%c0_99, %c128] : memref<128x256xbf16, #tpu.memory_space<vmem>>, vector<128x128xbf16>
    %cst_100 = arith.constant dense<0.000000e+00> : vector<2x128xf32>
    %320 = tpu.matmul %318, %319, %cst_100 {dimension_numbers = #tpu.dot_dimension_numbers<[1], [0], [0], [1], [0, 0, 1, 1], [], []>} : vector<2x128xbf16>, vector<128x128xbf16>, vector<2x128xf32> -> vector<2x128xf32>
    %c19 = arith.constant 19 : index
    %c0_101 = arith.constant 0 : index
    %321 = vector.load %arg6[%c19, %c0_101] : memref<20x384xf32, #tpu.memory_space<vmem>>, vector<1x128xf32>
    %322 = vector.broadcast %321 : vector<1x128xf32> to vector<2x128xf32>
    %323 = arith.addf %320, %322 : vector<2x128xf32>
    %c0_102 = arith.constant 0 : index
    %c0_103 = arith.constant 0 : index
    %324 = vector.load %arg7[%c0_102, %c0_103] : memref<2x128xf32, #tpu.memory_space<vmem>>, vector<2x128xf32>
    tpu.vector_store %arg7[%c0_102, %c0_103], %323 {strides = array<i32>} : memref<2x128xf32, #tpu.memory_space<vmem>>, vector<2x128xf32>,
    return
  }
}

</mosaic_0001>

<llo_original>
// kernel: tpu_custom_call.1
$region0: #{tpu_custom_call.1}
  #allocation0 [shape = 'u32[]', space=smem, size = 0x4, offset = 0x4, fixed_abs, tag = 'smem constant byte address 0x4 - core index']
  #allocation1 [shape = 'u32[144,128]{1,0:T(1,128)}', space=vmem, size = 0x12000, scoped, tag = 'internal scratch']
  %s0 = inlined_call_operand.hbm [shape: f32[2,16,32], index: 0, kind: input, shape index: {}]
  %s1 = inlined_call_operand.hbm [shape: f32[32,128], index: 1, kind: input, shape index: {}]
  %s2 = inlined_call_operand.hbm [shape: bf16[2,128,512], index: 2, kind: input, shape index: {}]
  %s3 = inlined_call_operand.hbm [shape: bf16[2,128,256], index: 3, kind: input, shape index: {}]
  %s4 = inlined_call_operand.hbm [shape: bf16[2,256,128], index: 4, kind: input, shape index: {}]
  %s5 = inlined_call_operand.hbm [shape: bf16[128,256], index: 5, kind: input, shape index: {}]
  %s6 = inlined_call_operand.hbm [shape: f32[20,384], index: 6, kind: input, shape index: {}]
  %s7 = inlined_call_operand.hbm [shape: f32[2,128], index: 7, kind: output, shape index: {}]
  %s8 = sld [smem:[#allocation0]]
  $region66: #{tpu_custom_call.1} parent=0
    _
  %s10 = ssub.s32 1, %s8
  %s11 = scalar_select 0, %s10, %s8
  $region1: #{tpu_custom_call.1} parent=0
    #allocation2 [shape = 'u8[16384]{0}', space=vmem, size = 0x4000, scoped, tag = 'input window, operand 0, single buffered']
    #allocation3 [shape = 's32[1]{0}', space=sflag, size = 0x4, scoped, tag = 'scoped memory for tpu_custom_call.1']
    #allocation4 [shape = 's32[1]{0}', space=sflag, size = 0x4, scoped, tag = 'scoped memory for tpu_custom_call.1']
    #allocation5 [shape = 'u8[16384]{0}', space=vmem, size = 0x4000, scoped, tag = 'input window, operand 1, single buffered']
    #allocation6 [shape = 's32[1]{0}', space=sflag, size = 0x4, scoped, tag = 'scoped memory for tpu_custom_call.1']
    #allocation7 [shape = 'u8[262144]{0}', space=vmem, size = 0x40000, scoped, tag = 'input window, operand 2, single buffered']
    #allocation8 [shape = 'u8[131072]{0}', space=vmem, size = 0x20000, scoped, tag = 'input window, operand 3, single buffered']
    #allocation9 [shape = 's32[1]{0}', space=sflag, size = 0x4, scoped, tag = 'scoped memory for tpu_custom_call.1']
    #allocation10 [shape = 'u8[131072]{0}', space=vmem, size = 0x20000, scoped, tag = 'input window, operand 4, single buffered']
    #allocation11 [shape = 'u8[65536]{0}', space=vmem, size = 0x10000, scoped, tag = 'input window, operand 5, single buffered']
    #allocation12 [shape = 's32[1]{0}', space=sflag, size = 0x4, scoped, tag = 'scoped memory for tpu_custom_call.1']
    #allocation13 [shape = 'u8[36864]{0}', space=vmem, size = 0x9000, scoped, tag = 'input window, operand 6, single buffered']
    #allocation14 [shape = 'u8[1024]{0}', space=vmem, size = 0x400, scoped, tag = 'output window, operand 0, single buffered']
    %12 = vsyncpa [#allocation3], 0
    %13 = vsyncpa [#allocation6], 0
    %14 = vsyncpa [#allocation9], 0
    %15 = vsyncpa [#allocation12], 0
    %16 = vsyncpa [#allocation4], 0
    // Predicated region
    $region2: #{tpu_custom_call.1} parent=1 // pred_check
      _
    $region3: #{tpu_custom_call.1} parent=1 // pred_check_branch
      %18 = sbr.rel (0) target = $region5
    $region4: #{tpu_custom_call.1} parent=1 // pred_region
      %s20 = ssub.s32 512, 512
      %21 = vsyncadd [#allocation3], %s20
      %s22 = sshll.u32 [#allocation2], 4
      %s23 = int_to_ptr.vmem [resolvable:$true] %s22
      %28 = dma.hbm_to_vmem [thread:$0]  %s0, 512, %s23, [#allocation3], 128, 128, 8
    $region5: #{tpu_custom_call.1} parent=1 // pred_fallthru
      _
    // Predicated region
    $region6: #{tpu_custom_call.1} parent=1 // pred_check
      _
    $region7: #{tpu_custom_call.1} parent=1 // pred_check_branch
      %30 = sbr.rel (0) target = $region9
    $region8: #{tpu_custom_call.1} parent=1 // pred_region
      %s32 = ssub.s32 512, 512
      %33 = vsyncadd [#allocation6], %s32
      %s34 = sshll.u32 [#allocation5], 4
      %s35 = int_to_ptr.vmem [resolvable:$true] %s34
      %40 = dma.hbm_to_vmem [thread:$0]  %s1, 512, %s35, [#allocation6], 128, 128, 8
    $region9: #{tpu_custom_call.1} parent=1 // pred_fallthru
      _
    // Predicated region
    $region10: #{tpu_custom_call.1} parent=1 // pred_check
      _
    $region11: #{tpu_custom_call.1} parent=1 // pred_check_branch
      %42 = sbr.rel (0) target = $region13
    $region12: #{tpu_custom_call.1} parent=1 // pred_region
      %s44 = ssub.s32 8192, 8192
      %45 = vsyncadd [#allocation6], %s44
      %s46 = sshll.u32 [#allocation7], 4
      %s47 = int_to_ptr.vmem [resolvable:$true] %s46
      %52 = dma.hbm_to_vmem [thread:$0]  %s2, 8192, %s47, [#allocation6], 256, 256, 16
    $region13: #{tpu_custom_call.1} parent=1 // pred_fallthru
      _
    // Predicated region
    $region14: #{tpu_custom_call.1} parent=1 // pred_check
      _
    $region15: #{tpu_custom_call.1} parent=1 // pred_check_branch
      %54 = sbr.rel (0) target = $region17
    $region16: #{tpu_custom_call.1} parent=1 // pred_region
      %s56 = ssub.s32 4096, 4096
      %57 = vsyncadd [#allocation9], %s56
      %s58 = sshll.u32 [#allocation8], 4
      %s59 = int_to_ptr.vmem [resolvable:$true] %s58
      %64 = dma.hbm_to_vmem [thread:$0]  %s3, 4096, %s59, [#allocation9], 128, 128, 8
    $region17: #{tpu_custom_call.1} parent=1 // pred_fallthru
      _
    // Predicated region
    $region18: #{tpu_custom_call.1} parent=1 // pred_check
      _
    $region19: #{tpu_custom_call.1} parent=1 // pred_check_branch
      %66 = sbr.rel (0) target = $region21
    $region20: #{tpu_custom_call.1} parent=1 // pred_region
      %s68 = ssub.s32 4096, 4096
      %69 = vsyncadd [#allocation9], %s68
      %s70 = sshll.u32 [#allocation10], 4
      %s71 = int_to_ptr.vmem [resolvable:$true] %s70
      %76 = dma.hbm_to_vmem [thread:$0]  %s4, 4096, %s71, [#allocation9], 64, 64, 4
    $region21: #{tpu_custom_call.1} parent=1 // pred_fallthru
      _
    // Predicated region
    $region22: #{tpu_custom_call.1} parent=1 // pred_check
      _
    $region23: #{tpu_custom_call.1} parent=1 // pred_check_branch
      %78 = sbr.rel (0) target = $region25
    $region24: #{tpu_custom_call.1} parent=1 // pred_region
      %s80 = ssub.s32 2048, 2048
      %81 = vsyncadd [#allocation12], %s80
      %s82 = sshll.u32 [#allocation11], 4
      %s83 = int_to_ptr.vmem [resolvable:$true] %s82
      %88 = dma.hbm_to_vmem [thread:$0]  %s5, 2048, %s83, [#allocation12], 128, 128, 8
    $region25: #{tpu_custom_call.1} parent=1 // pred_fallthru
      _
    // Predicated region
    $region26: #{tpu_custom_call.1} parent=1 // pred_check
      _
    $region27: #{tpu_custom_call.1} parent=1 // pred_check_branch
      %90 = sbr.rel (0) target = $region29
    $region28: #{tpu_custom_call.1} parent=1 // pred_region
      %s92 = ssub.s32 1152, 1152
      %93 = vsyncadd [#allocation12], %s92
      %s94 = sshll.u32 [#allocation13], 4
      %s95 = int_to_ptr.vmem [resolvable:$true] %s94
      %100 = dma.hbm_to_vmem [thread:$0]  %s6, 1152, %s95, [#allocation12], 384, 384, 24
    $region29: #{tpu_custom_call.1} parent=1 // pred_fallthru
      _
    // Predicated region
    $region30: #{tpu_custom_call.1} parent=1 // pred_check
      _
    $region31: #{tpu_custom_call.1} parent=1 // pred_check_branch
      %102 = sbr.rel (0) target = $region33
    $region32: #{tpu_custom_call.1} parent=1 // pred_region
      %103 = dma.done [#allocation3], 512
    $region33: #{tpu_custom_call.1} parent=1 // pred_fallthru
      _
    // Predicated region
    $region34: #{tpu_custom_call.1} parent=1 // pred_check
      _
    $region35: #{tpu_custom_call.1} parent=1 // pred_check_branch
      %105 = sbr.rel (0) target = $region37
    $region36: #{tpu_custom_call.1} parent=1 // pred_region
      %106 = dma.done [#allocation6], 512
    $region37: #{tpu_custom_call.1} parent=1 // pred_fallthru
      _
    // Predicated region
    $region38: #{tpu_custom_call.1} parent=1 // pred_check
      _
    $region39: #{tpu_custom_call.1} parent=1 // pred_check_branch
      %108 = sbr.rel (0) target = $region41
    $region40: #{tpu_custom_call.1} parent=1 // pred_region
      %109 = dma.done [#allocation6], 8192
    $region41: #{tpu_custom_call.1} parent=1 // pred_fallthru
      _
    // Predicated region
    $region42: #{tpu_custom_call.1} parent=1 // pred_check
      _
    $region43: #{tpu_custom_call.1} parent=1 // pred_check_branch
      %111 = sbr.rel (0) target = $region45
    $region44: #{tpu_custom_call.1} parent=1 // pred_region
      %112 = dma.done [#allocation9], 4096
    $region45: #{tpu_custom_call.1} parent=1 // pred_fallthru
      _
    // Predicated region
    $region46: #{tpu_custom_call.1} parent=1 // pred_check
      _
    $region47: #{tpu_custom_call.1} parent=1 // pred_check_branch
      %114 = sbr.rel (0) target = $region49
    $region48: #{tpu_custom_call.1} parent=1 // pred_region
      %115 = dma.done [#allocation9], 4096
    $region49: #{tpu_custom_call.1} parent=1 // pred_fallthru
      _
    // Predicated region
    $region50: #{tpu_custom_call.1} parent=1 // pred_check
      _
    $region51: #{tpu_custom_call.1} parent=1 // pred_check_branch
      %117 = sbr.rel (0) target = $region53
    $region52: #{tpu_custom_call.1} parent=1 // pred_region
      %118 = dma.done [#allocation12], 2048
    $region53: #{tpu_custom_call.1} parent=1 // pred_fallthru
      _
    // Predicated region
    $region54: #{tpu_custom_call.1} parent=1 // pred_check
      _
    $region55: #{tpu_custom_call.1} parent=1 // pred_check_branch
      %120 = sbr.rel (0) target = $region57
    $region56: #{tpu_custom_call.1} parent=1 // pred_region
      %121 = dma.done [#allocation12], 1152
    $region57: #{tpu_custom_call.1} parent=1 // pred_fallthru
      _
    %v123 = vld [vmem:[#allocation2] sm:$0xff]
    %v124 = vld [vmem:[#allocation2 + $0x8] sm:$0xff]
    %v125 = vld [vmem:[#allocation2 + $0x10] sm:$0xff]
    %v126 = vld [vmem:[#allocation2 + $0x18] sm:$0xff]
    %v127 = vld [vmem:[#allocation5] sm:$0xff]
    %v128 = vld [vmem:[#allocation5 + $0x8] sm:$0xff]
    %v129 = vld [vmem:[#allocation5 + $0x10] sm:$0xff]
    %v130 = vld [vmem:[#allocation5 + $0x18] sm:$0xff]
    %v131 = vld [vmem:[#allocation13 + $0x30] ss:$0 sm:$0xff]
    %v132 = vld [vmem:[#allocation13 + $0x31] ss:$0 sm:$0xff]
    %133 = vadd.xlane.f32.xlu0 %v127
    %v134 = vpop.xlane.xlu0 %133
    %135 = vadd.xlane.f32.xlu0 %v128
    %v136 = vpop.xlane.xlu0 %135
    %137 = vadd.xlane.f32.xlu0 %v129
    %v138 = vpop.xlane.xlu0 %137
    %139 = vadd.xlane.f32.xlu0 %v130
    %v140 = vpop.xlane.xlu0 %139
    %v141 = vrcp.pop 128.0
    %v142 = vmul.f32 %v134, %v141
    %v143 = vmul.f32 %v136, %v141
    %v144 = vmul.f32 %v138, %v141
    %v145 = vmul.f32 %v140, %v141
    %v146 = vsub.f32 %v127, %v142
    %v147 = vsub.f32 %v128, %v143
    %v148 = vsub.f32 %v129, %v144
    %v149 = vsub.f32 %v130, %v145
    %v150 = vmul.f32 %v146, %v146
    %v151 = vmul.f32 %v147, %v147
    %v152 = vmul.f32 %v148, %v148
    %v153 = vmul.f32 %v149, %v149
    %154 = vadd.xlane.f32.xlu0 %v150
    %v155 = vpop.xlane.xlu0 %154
    %156 = vadd.xlane.f32.xlu0 %v151
    %v157 = vpop.xlane.xlu0 %156
    %158 = vadd.xlane.f32.xlu0 %v152
    %v159 = vpop.xlane.xlu0 %158
    %160 = vadd.xlane.f32.xlu0 %v153
    %v161 = vpop.xlane.xlu0 %160
    %v162 = vmul.f32 %v155, %v141
    %v163 = vmul.f32 %v157, %v141
    %v164 = vmul.f32 %v159, %v141
    %v165 = vmul.f32 %v161, %v141
    %v166 = vadd.f32 %v162, 1e-12
    %v167 = vadd.f32 %v163, 1e-12
    %v168 = vadd.f32 %v164, 1e-12
    %v169 = vadd.f32 %v165, 1e-12
    %v170 = vrsqrt.pop %v166
    %v171 = vrsqrt.pop %v167
    %v172 = vrsqrt.pop %v168
    %v173 = vrsqrt.pop %v169
    %v174 = vmul.f32 %v146, %v170
    %v175 = vmul.f32 %v147, %v171
    %v176 = vmul.f32 %v148, %v172
    %v177 = vmul.f32 %v149, %v173
    %v178 = vmul.f32 %v174, %v131
    %v179 = vmul.f32 %v175, %v131
    %v180 = vmul.f32 %v176, %v131
    %v181 = vmul.f32 %v177, %v131
    %v182 = vadd.f32 %v178, %v132
    %v183 = vadd.f32 %v179, %v132
    %v184 = vadd.f32 %v180, %v132
    %v185 = vadd.f32 %v181, %v132
    %v186 = vlaneseq
    %v187 = vand.u32 %v186, 127
    %vm188 = vcmp.ge.s32.totalorder %v187, 0
    %vm189 = vcmp.lt.s32.totalorder %v187, 64
    %vm190 = vmand %vm188, %vm189
    %v191 = vsel %vm190, 1, 0
    %v192 = vcvt.s32.f32 %v191
    %vm193 = vcmp.ge.s32.totalorder %v187, 64
    %vm194 = vcmp.lt.s32.totalorder %v187, 128
    %vm195 = vmand %vm193, %vm194
    %v196 = vsel %vm195, 1, 0
    %v197 = vcvt.s32.f32 %v196
    %v198 = vld [vmem:[#allocation7] sm:$0xff]
    %v199 = vld [vmem:[#allocation7 + $0x8] sm:$0xff]
    %v200 = vld [vmem:[#allocation7 + $0x10] sm:$0xff]
    %v201 = vld [vmem:[#allocation7 + $0x18] sm:$0xff]
    %v202 = vld [vmem:[#allocation7 + $0x20] sm:$0xff]
    %v203 = vld [vmem:[#allocation7 + $0x28] sm:$0xff]
    %v204 = vld [vmem:[#allocation7 + $0x30] sm:$0xff]
    %v205 = vld [vmem:[#allocation7 + $0x38] sm:$0xff]
    %v206 = vld [vmem:[#allocation7 + $0x40] sm:$0xff]
    %v207 = vld [vmem:[#allocation7 + $0x48] sm:$0xff]
    %v208 = vld [vmem:[#allocation7 + $0x50] sm:$0xff]
    %v209 = vld [vmem:[#allocation7 + $0x58] sm:$0xff]
    %v210 = vld [vmem:[#allocation7 + $0x60] sm:$0xff]
    %v211 = vld [vmem:[#allocation7 + $0x68] sm:$0xff]
    %v212 = vld [vmem:[#allocation7 + $0x70] sm:$0xff]
    %v213 = vld [vmem:[#allocation7 + $0x78] sm:$0xff]
    %v214 = vld [vmem:[#allocation7 + $0x80] sm:$0xff]
    %v215 = vld [vmem:[#allocation7 + $0x88] sm:$0xff]
    %v216 = vld [vmem:[#allocation7 + $0x90] sm:$0xff]
    %v217 = vld [vmem:[#allocation7 + $0x98] sm:$0xff]
    %v218 = vld [vmem:[#allocation7 + $0xa0] sm:$0xff]
    %v219 = vld [vmem:[#allocation7 + $0xa8] sm:$0xff]
    %v220 = vld [vmem:[#allocation7 + $0xb0] sm:$0xff]
    %v221 = vld [vmem:[#allocation7 + $0xb8] sm:$0xff]
    %v222 = vld [vmem:[#allocation7 + $0xc0] sm:$0xff]
    %v223 = vld [vmem:[#allocation7 + $0xc8] sm:$0xff]
    %v224 = vld [vmem:[#allocation7 + $0xd0] sm:$0xff]
    %v225 = vld [vmem:[#allocation7 + $0xd8] sm:$0xff]
    %v226 = vld [vmem:[#allocation7 + $0xe0] sm:$0xff]
    %v227 = vld [vmem:[#allocation7 + $0xe8] sm:$0xff]
    %v228 = vld [vmem:[#allocation7 + $0xf0] sm:$0xff]
    %v229 = vld [vmem:[#allocation7 + $0xf8] sm:$0xff]
    %v230 = vpack.c.bf16 %v183, %v182
    %v231 = vpack.c.bf16 %v185, %v184
    %v232 = vld [vmem:[#allocation13] ss:$8 sm:$0x7]
    %v234 = vlaneseq
    %v235 = vshrl.u32 %v234, 7
    %v236 = vsub.s32 0, %v235
    %v237 = vrot.slane %v232, %v236
    %v238 = vlaneseq
    %v239 = vshrl.u32 %v238, 7
    %v240 = vsub.s32 1, %v239
    %v241 = vrot.slane %v232, %v240
    %v242 = vlaneseq
    %v243 = vshrl.u32 %v242, 7
    %v244 = vsub.s32 2, %v243
    %v245 = vrot.slane %v232, %v244
    %v281 = vunpack.c.l.b16 %v198
    %v282 = vunpack.c.h.b16 %v198
    %v283 = vunpack.c.l.b16 %v199
    %v284 = vunpack.c.l.b16 %v200
    %v285 = vunpack.c.h.b16 %v200
    %v286 = vunpack.c.l.b16 %v201
    %v287 = vunpack.c.l.b16 %v202
    %v288 = vunpack.c.h.b16 %v202
    %v289 = vunpack.c.l.b16 %v203
    %v290 = vunpack.c.l.b16 %v204
    %v291 = vunpack.c.h.b16 %v204
    %v292 = vunpack.c.l.b16 %v205
    %v293 = vunpack.c.l.b16 %v206
    %v294 = vunpack.c.h.b16 %v206
    %v295 = vunpack.c.l.b16 %v207
    %v296 = vunpack.c.l.b16 %v208
    %v297 = vunpack.c.h.b16 %v208
    %v298 = vunpack.c.l.b16 %v209
    %v299 = vunpack.c.l.b16 %v210
    %v300 = vunpack.c.h.b16 %v210
    %v301 = vunpack.c.l.b16 %v211
    %v302 = vunpack.c.l.b16 %v212
    %v303 = vunpack.c.h.b16 %v212
    %v304 = vunpack.c.l.b16 %v213
    %v305 = vunpack.c.l.b16 %v214
    %v306 = vunpack.c.h.b16 %v214
    %v307 = vunpack.c.l.b16 %v215
    %v308 = vunpack.c.l.b16 %v216
    %v309 = vunpack.c.h.b16 %v216
    %v310 = vunpack.c.l.b16 %v217
    %v311 = vunpack.c.l.b16 %v218
    %v312 = vunpack.c.h.b16 %v218
    %v313 = vunpack.c.l.b16 %v219
    %v314 = vunpack.c.l.b16 %v220
    %v315 = vunpack.c.h.b16 %v220
    %v316 = vunpack.c.l.b16 %v221
    %v317 = vunpack.c.l.b16 %v222
    %v318 = vunpack.c.h.b16 %v222
    %v319 = vunpack.c.l.b16 %v223
    %v320 = vunpack.c.l.b16 %v224
    %v321 = vunpack.c.h.b16 %v224
    %v322 = vunpack.c.l.b16 %v225
    %v323 = vunpack.c.l.b16 %v226
    %v324 = vunpack.c.h.b16 %v226
    %v325 = vunpack.c.l.b16 %v227
    %v326 = vunpack.c.l.b16 %v228
    %v327 = vunpack.c.h.b16 %v228
    %v328 = vunpack.c.l.b16 %v229
    %v329 = vpack.c.b16 %v284, %v281
    %v330 = vpack.c.b16 %v285, %v282
    %v331 = vpack.c.b16 %v286, %v283
    %v332 = vpack.c.b16 %v290, %v287
    %v333 = vpack.c.b16 %v291, %v288
    %v334 = vpack.c.b16 %v292, %v289
    %v335 = vpack.c.b16 %v296, %v293
    %v336 = vpack.c.b16 %v297, %v294
    %v337 = vpack.c.b16 %v298, %v295
    %v338 = vpack.c.b16 %v302, %v299
    %v339 = vpack.c.b16 %v303, %v300
    %v340 = vpack.c.b16 %v304, %v301
    %v341 = vpack.c.b16 %v308, %v305
    %v342 = vpack.c.b16 %v309, %v306
    %v343 = vpack.c.b16 %v310, %v307
    %v344 = vpack.c.b16 %v314, %v311
    %v345 = vpack.c.b16 %v315, %v312
    %v346 = vpack.c.b16 %v316, %v313
    %v347 = vpack.c.b16 %v320, %v317
    %v348 = vpack.c.b16 %v321, %v318
    %v349 = vpack.c.b16 %v322, %v319
    %v350 = vpack.c.b16 %v326, %v323
    %v351 = vpack.c.b16 %v327, %v324
    %v352 = vpack.c.b16 %v328, %v325
    %377 = vmatprep.subr.bf16.mxu0 %v330
    %378 = vmatpush1.bf16.msra.mxu0 %v329
    %379 = vmatprep.subr.bf16.mxu0 %v333
    %380 = vmatpush1.bf16.msra.mxu0 %v332
    %381 = vmatprep.subr.bf16.mxu0 %v336
    %382 = vmatpush1.bf16.msra.mxu0 %v335
    %383 = vmatprep.subr.bf16.mxu0 %v339
    %384 = vmatpush1.bf16.msra.mxu0 %v338
    %385 = vmatprep.subr.bf16.mxu0 %v342
    %386 = vmatpush1.bf16.msra.mxu0 %v341
    %387 = vmatprep.subr.bf16.mxu0 %v345
    %388 = vmatpush1.bf16.msra.mxu0 %v344
    %389 = vmatprep.subr.bf16.mxu0 %v348
    %390 = vmatpush1.bf16.msra.mxu0 %v347
    %391 = vmatprep.subr.bf16.mxu0 %v351
    %392 = vmatpush1.bf16.msra.mxu0 %v350
    %393 = vmatprep.subr.bf16.mxu0 0
    %394 = vmatpush1.bf16.msra.mxu0 0
    %395 = vmatprep.subr.bf16.mxu0 0
    %396 = vmatpush1.bf16.msra.mxu0 0
    %397 = vmatprep.subr.bf16.mxu0 0
    %398 = vmatpush1.bf16.msra.mxu0 0
    %399 = vmatprep.subr.bf16.mxu0 0
    %400 = vmatpush1.bf16.msra.mxu0 0
    %401 = vmatprep.subr.bf16.mxu0 0
    %402 = vmatpush1.bf16.msra.mxu0 0
    %403 = vmatprep.subr.bf16.mxu0 0
    %404 = vmatpush1.bf16.msra.mxu0 0
    %405 = vmatprep.subr.bf16.mxu0 0
    %406 = vmatpush1.bf16.msra.mxu0 0
    %407 = vmatprep.subr.bf16.mxu0 0
    %408 = vmatpush1.bf16.msra.mxu0 0
    %409 = vmatprep.mubr.bf16.mxu0 0
    %410 = vmatmul.mubr.bf16.gmra.mrb[0].mxu0 %v230
    %v411 = vpop.f32.mrb[0].mxu0
    %v412 = vadd.f32 %v237, %v411
    %v413 = vpop.f32.mrb[0].mxu0
    %v414 = vadd.f32 %v241, %v413
    %v415 = vpop.f32.mrb[0].mxu0
    %v416 = vadd.f32 %v237, %v415
    %v417 = vpop.f32.mrb[0].mxu0
    %v418 = vadd.f32 %v241, %v417
    %419 = vmatprep.mubr.bf16.mxu0 0
    %420 = vmatmul.mubr.bf16.gmra.mrb[0].mxu0 %v231
    %v421 = vpop.f32.mrb[0].mxu0
    %v422 = vadd.f32 %v237, %v421
    %v423 = vpop.f32.mrb[0].mxu0
    %v424 = vadd.f32 %v241, %v423
    %v425 = vpop.f32.mrb[0].mxu0
    %v426 = vadd.f32 %v237, %v425
    %v427 = vpop.f32.mrb[0].mxu0
    %v428 = vadd.f32 %v241, %v427
    %429 = vdwg.mxu0
    %430 = vmatprep.subr.bf16.mxu0 0
    %431 = vmatpush1.bf16.msra.mxu0 %v331
    %432 = vmatprep.subr.bf16.mxu0 0
    %433 = vmatpush1.bf16.msra.mxu0 %v334
    %434 = vmatprep.subr.bf16.mxu0 0
    %435 = vmatpush1.bf16.msra.mxu0 %v337
    %436 = vmatprep.subr.bf16.mxu0 0
    %437 = vmatpush1.bf16.msra.mxu0 %v340
    %438 = vmatprep.subr.bf16.mxu0 0
    %439 = vmatpush1.bf16.msra.mxu0 %v343
    %440 = vmatprep.subr.bf16.mxu0 0
    %441 = vmatpush1.bf16.msra.mxu0 %v346
    %442 = vmatprep.subr.bf16.mxu0 0
    %443 = vmatpush1.bf16.msra.mxu0 %v349
    %444 = vmatprep.subr.bf16.mxu0 0
    %445 = vmatpush1.bf16.msra.mxu0 %v352
    %446 = vmatprep.subr.bf16.mxu0 0
    %447 = vmatpush1.bf16.msra.mxu0 0
    %448 = vmatprep.subr.bf16.mxu0 0
    %449 = vmatpush1.bf16.msra.mxu0 0
    %450 = vmatprep.subr.bf16.mxu0 0
    %451 = vmatpush1.bf16.msra.mxu0 0
    %452 = vmatprep.subr.bf16.mxu0 0
    %453 = vmatpush1.bf16.msra.mxu0 0
    %454 = vmatprep.subr.bf16.mxu0 0
    %455 = vmatpush1.bf16.msra.mxu0 0
    %456 = vmatprep.subr.bf16.mxu0 0
    %457 = vmatpush1.bf16.msra.mxu0 0
    %458 = vmatprep.subr.bf16.mxu0 0
    %459 = vmatpush1.bf16.msra.mxu0 0
    %460 = vmatprep.subr.bf16.mxu0 0
    %461 = vmatpush1.bf16.msra.mxu0 0
    %462 = vmatprep.mubr.bf16.mxu0 0
    %463 = vmatmul.mubr.bf16.gmra.mrb[0].mxu0 %v230
    %v464 = vpop.f32.mrb[0].mxu0
    %v465 = vadd.f32 %v245, %v464
    %v466 = vpop.f32.mrb[0].mxu0
    %v467 = vpop.f32.mrb[0].mxu0
    %v468 = vadd.f32 %v245, %v467
    %v469 = vpop.f32.mrb[0].mxu0
    %470 = vmatprep.mubr.bf16.mxu0 0
    %471 = vmatmul.mubr.bf16.gmra.mrb[0].mxu0 %v231
    %v472 = vpop.f32.mrb[0].mxu0
    %v473 = vadd.f32 %v245, %v472
    %v474 = vpop.f32.mrb[0].mxu0
    %v475 = vpop.f32.mrb[0].mxu0
    %v476 = vadd.f32 %v245, %v475
    %v477 = vpop.f32.mrb[0].mxu0
    %478 = vdwg.mxu0
    %v479 = vmul.f32 %v414, %v192
    %v480 = vmul.f32 %v418, %v192
    %v481 = vmul.f32 %v424, %v192
    %v482 = vmul.f32 %v428, %v192
    %v483 = vmul.f32 %v414, %v197
    %v484 = vmul.f32 %v418, %v197
    %v485 = vmul.f32 %v424, %v197
    %v486 = vmul.f32 %v428, %v197
    %v487 = vmul.f32 %v465, %v192
    %v488 = vmul.f32 %v468, %v192
    %v489 = vmul.f32 %v473, %v192
    %v490 = vmul.f32 %v476, %v192
    %v491 = vmul.f32 %v465, %v197
    %v492 = vmul.f32 %v468, %v197
    %v493 = vmul.f32 %v473, %v197
    %v494 = vmul.f32 %v476, %v197
    %495 = vmatprep.subr.mxu0 0.0
    %496 = vmatpush1.xpose.msra.mxu0 %v479
    %497 = vmatprep.subr.mxu0 0.0
    %498 = vmatpush1.xpose.msra.mxu0 %v480
    %499 = vmatprep.subr.mxu0 0.0
    %500 = vmatpush1.xpose.msra.mxu0 %v483
    %501 = vmatprep.subr.mxu0 0.0
    %502 = vmatpush1.xpose.msra.mxu0 %v484
    %503 = vmatprep.subr.mxu0 0.0
    %504 = vmatpush1.xpose.msra.mxu0 0.0
    %505 = vmatprep.subr.mxu0 0.0
    %506 = vmatpush1.xpose.msra.mxu0 0.0
    %507 = vmatprep.subr.mxu0 0.0
    %508 = vmatpush1.xpose.msra.mxu0 0.0
    %509 = vmatprep.subr.mxu0 0.0
    %510 = vmatpush1.xpose.msra.mxu0 0.0
    %511 = vmatprep.subr.mxu0 0.0
    %512 = vmatpush1.xpose.msra.mxu0 0.0
    %513 = vmatprep.subr.mxu0 0.0
    %514 = vmatpush1.xpose.msra.mxu0 0.0
    %515 = vmatprep.subr.mxu0 0.0
    %516 = vmatpush1.xpose.msra.mxu0 0.0
    %517 = vmatprep.subr.mxu0 0.0
    %518 = vmatpush1.xpose.msra.mxu0 0.0
    %519 = vmatprep.subr.mxu0 0.0
    %520 = vmatpush1.xpose.msra.mxu0 0.0
    %521 = vmatprep.subr.mxu0 0.0
    %522 = vmatpush1.xpose.msra.mxu0 0.0
    %523 = vmatprep.subr.mxu0 0.0
    %524 = vmatpush1.xpose.msra.mxu0 0.0
    %525 = vmatprep.subr.mxu0 0.0
    %526 = vmatpush1.xpose.msra.mxu0 0.0
    %527 = vmatprep.subr.mxu0 0.0
    %528 = vmatpush1.xpose.msra.mxu0 0.0
    %529 = vmatprep.subr.mxu0 0.0
    %530 = vmatpush1.xpose.msra.mxu0 0.0
    %531 = vmatprep.subr.mxu0 0.0
    %532 = vmatpush1.xpose.msra.mxu0 0.0
    %533 = vmatprep.subr.mxu0 0.0
    %534 = vmatpush1.xpose.msra.mxu0 0.0
    %535 = vmatprep.subr.mxu0 0.0
    %536 = vmatpush1.xpose.msra.mxu0 0.0
    %537 = vmatprep.subr.mxu0 0.0
    %538 = vmatpush1.xpose.msra.mxu0 0.0
    %539 = vmatprep.subr.mxu0 0.0
    %540 = vmatpush1.xpose.msra.mxu0 0.0
    %541 = vmatprep.subr.mxu0 0.0
    %542 = vmatpush1.xpose.msra.mxu0 0.0
    %543 = vmatprep.subr.mxu0 0.0
    %544 = vmatpush1.xpose.msra.mxu0 0.0
    %545 = vmatprep.subr.mxu0 0.0
    %546 = vmatpush1.xpose.msra.mxu0 0.0
    %547 = vmatprep.subr.mxu0 0.0
    %548 = vmatpush1.xpose.msra.mxu0 0.0
    %549 = vmatprep.subr.mxu0 0.0
    %550 = vmatpush1.xpose.msra.mxu0 0.0
    %551 = vmatprep.subr.mxu0 0.0
    %552 = vmatpush1.xpose.msra.mxu0 0.0
    %553 = vmatprep.subr.mxu0 0.0
    %554 = vmatpush1.xpose.msra.mxu0 0.0
    %555 = vmatprep.subr.mxu0 0.0
    %556 = vmatpush1.xpose.msra.mxu0 0.0
    %557 = vmatprep.subr.mxu0 0.0
    %558 = vmatpush1.xpose.msra.mxu0 0.0
    %559 = vmatprep.mubr.f32.mxu0 0.0
    %560 = vmatmul.mubr.f32.gmra.mrb[0].mxu0 %v412
    %v561 = vpop.f32.mrb[0].mxu0
    %v562 = vadd.f32 %v123, %v561
    %v563 = vpop.f32.mrb[0].mxu0
    %564 = vmatprep.mubr.f32.mxu0 0.0
    %565 = vmatmul.mubr.f32.gmra.mrb[0].mxu0 %v416
    %v566 = vpop.f32.mrb[0].mxu0
    %v567 = vadd.f32 %v124, %v566
    %v568 = vpop.f32.mrb[0].mxu0
    %569 = vdwg.mxu0
    %570 = vmatprep.subr.mxu0 0.0
    %571 = vmatpush1.xpose.msra.mxu0 %v481
    %572 = vmatprep.subr.mxu0 0.0
    %573 = vmatpush1.xpose.msra.mxu0 %v482
    %574 = vmatprep.subr.mxu0 0.0
    %575 = vmatpush1.xpose.msra.mxu0 %v485
    %576 = vmatprep.subr.mxu0 0.0
    %577 = vmatpush1.xpose.msra.mxu0 %v486
    %578 = vmatprep.subr.mxu0 0.0
    %579 = vmatpush1.xpose.msra.mxu0 0.0
    %580 = vmatprep.subr.mxu0 0.0
    %581 = vmatpush1.xpose.msra.mxu0 0.0
    %582 = vmatprep.subr.mxu0 0.0
    %583 = vmatpush1.xpose.msra.mxu0 0.0
    %584 = vmatprep.subr.mxu0 0.0
    %585 = vmatpush1.xpose.msra.mxu0 0.0
    %586 = vmatprep.subr.mxu0 0.0
    %587 = vmatpush1.xpose.msra.mxu0 0.0
    %588 = vmatprep.subr.mxu0 0.0
    %589 = vmatpush1.xpose.msra.mxu0 0.0
    %590 = vmatprep.subr.mxu0 0.0
    %591 = vmatpush1.xpose.msra.mxu0 0.0
    %592 = vmatprep.subr.mxu0 0.0
    %593 = vmatpush1.xpose.msra.mxu0 0.0
    %594 = vmatprep.subr.mxu0 0.0
    %595 = vmatpush1.xpose.msra.mxu0 0.0
    %596 = vmatprep.subr.mxu0 0.0
    %597 = vmatpush1.xpose.msra.mxu0 0.0
    %598 = vmatprep.subr.mxu0 0.0
    %599 = vmatpush1.xpose.msra.mxu0 0.0
    %600 = vmatprep.subr.mxu0 0.0
    %601 = vmatpush1.xpose.msra.mxu0 0.0
    %602 = vmatprep.subr.mxu0 0.0
    %603 = vmatpush1.xpose.msra.mxu0 0.0
    %604 = vmatprep.subr.mxu0 0.0
    %605 = vmatpush1.xpose.msra.mxu0 0.0
    %606 = vmatprep.subr.mxu0 0.0
    %607 = vmatpush1.xpose.msra.mxu0 0.0
    %608 = vmatprep.subr.mxu0 0.0
    %609 = vmatpush1.xpose.msra.mxu0 0.0
    %610 = vmatprep.subr.mxu0 0.0
    %611 = vmatpush1.xpose.msra.mxu0 0.0
    %612 = vmatprep.subr.mxu0 0.0
    %613 = vmatpush1.xpose.msra.mxu0 0.0
    %614 = vmatprep.subr.mxu0 0.0
    %615 = vmatpush1.xpose.msra.mxu0 0.0
    %616 = vmatprep.subr.mxu0 0.0
    %617 = vmatpush1.xpose.msra.mxu0 0.0
    %618 = vmatprep.subr.mxu0 0.0
    %619 = vmatpush1.xpose.msra.mxu0 0.0
    %620 = vmatprep.subr.mxu0 0.0
    %621 = vmatpush1.xpose.msra.mxu0 0.0
    %622 = vmatprep.subr.mxu0 0.0
    %623 = vmatpush1.xpose.msra.mxu0 0.0
    %624 = vmatprep.subr.mxu0 0.0
    %625 = vmatpush1.xpose.msra.mxu0 0.0
    %626 = vmatprep.subr.mxu0 0.0
    %627 = vmatpush1.xpose.msra.mxu0 0.0
    %628 = vmatprep.subr.mxu0 0.0
    %629 = vmatpush1.xpose.msra.mxu0 0.0
    %630 = vmatprep.subr.mxu0 0.0
    %631 = vmatpush1.xpose.msra.mxu0 0.0
    %632 = vmatprep.subr.mxu0 0.0
    %633 = vmatpush1.xpose.msra.mxu0 0.0
    %634 = vmatprep.mubr.f32.mxu0 0.0
    %635 = vmatmul.mubr.f32.gmra.mrb[0].mxu0 %v422
    %v636 = vpop.f32.mrb[0].mxu0
    %v637 = vadd.f32 %v125, %v636
    %v638 = vpop.f32.mrb[0].mxu0
    %639 = vmatprep.mubr.f32.mxu0 0.0
    %640 = vmatmul.mubr.f32.gmra.mrb[0].mxu0 %v426
    %v641 = vpop.f32.mrb[0].mxu0
    %v642 = vadd.f32 %v126, %v641
    %v643 = vpop.f32.mrb[0].mxu0
    %644 = vdwg.mxu0
    %vm645 = vcmask 130048
    %v646 = vsel %vm645, %v562, -inf
    %647 = vmax.xlane.f32.xlu0 %v646
    %v648 = vpop.xlane.xlu0 %647
    %v649 = vsel %vm645, %v567, -inf
    %650 = vmax.xlane.f32.xlu0 %v649
    %v651 = vpop.xlane.xlu0 %650
    %v652 = vsel %vm645, %v637, -inf
    %653 = vmax.xlane.f32.xlu0 %v652
    %v654 = vpop.xlane.xlu0 %653
    %v655 = vsel %vm645, %v642, -inf
    %656 = vmax.xlane.f32.xlu0 %v655
    %v657 = vpop.xlane.xlu0 %656
    %v658 = vsub.f32 %v562, %v648
    %v659 = vsub.f32 %v567, %v651
    %v660 = vsub.f32 %v637, %v654
    %v661 = vsub.f32 %v642, %v657
    %v662 = vmul.f32 %v658, 1.442695
    %v663 = vpow.pop %v662
    %v664 = vmul.f32 %v659, 1.442695
    %v665 = vpow.pop %v664
    %v666 = vmul.f32 %v660, 1.442695
    %v667 = vpow.pop %v666
    %v668 = vmul.f32 %v661, 1.442695
    %v669 = vpow.pop %v668
    %v670 = vsel %vm645, %v663, 0.0
    %671 = vadd.xlane.f32.xlu0 %v670
    %v672 = vpop.xlane.xlu0 %671
    %v673 = vsel %vm645, %v665, 0.0
    %674 = vadd.xlane.f32.xlu0 %v673
    %v675 = vpop.xlane.xlu0 %674
    %v676 = vsel %vm645, %v667, 0.0
    %677 = vadd.xlane.f32.xlu0 %v676
    %v678 = vpop.xlane.xlu0 %677
    %v679 = vsel %vm645, %v669, 0.0
    %680 = vadd.xlane.f32.xlu0 %v679
    %v681 = vpop.xlane.xlu0 %680
    %v682 = vrcp.pop %v672
    %v683 = vrcp.pop %v675
    %v684 = vrcp.pop %v678
    %v685 = vrcp.pop %v681
    %v686 = vmul.f32 %v663, %v682
    %v687 = vmul.f32 %v665, %v683
    %v688 = vmul.f32 %v667, %v684
    %v689 = vmul.f32 %v669, %v685
    %vm690 = vcmask 261248
    %v691 = vsel %vm690, %v562, -inf
    %692 = vmax.xlane.f32.xlu0 %v691
    %v693 = vpop.xlane.xlu0 %692
    %v694 = vsel %vm690, %v567, -inf
    %695 = vmax.xlane.f32.xlu0 %v694
    %v696 = vpop.xlane.xlu0 %695
    %v697 = vsel %vm690, %v637, -inf
    %698 = vmax.xlane.f32.xlu0 %v697
    %v699 = vpop.xlane.xlu0 %698
    %v700 = vsel %vm690, %v642, -inf
    %701 = vmax.xlane.f32.xlu0 %v700
    %v702 = vpop.xlane.xlu0 %701
    %v703 = vsub.f32 %v562, %v693
    %v704 = vsub.f32 %v567, %v696
    %v705 = vsub.f32 %v637, %v699
    %v706 = vsub.f32 %v642, %v702
    %v707 = vmul.f32 %v703, 1.442695
    %v708 = vpow.pop %v707
    %v709 = vmul.f32 %v704, 1.442695
    %v710 = vpow.pop %v709
    %v711 = vmul.f32 %v705, 1.442695
    %v712 = vpow.pop %v711
    %v713 = vmul.f32 %v706, 1.442695
    %v714 = vpow.pop %v713
    %719 = vrot.lane.b32.xlu0 %v708, 112
    %v720 = vpop.permute.xlu0 %719
    %721 = vrot.lane.b32.xlu0 %v710, 112
    %v722 = vpop.permute.xlu0 %721
    %723 = vrot.lane.b32.xlu0 %v712, 112
    %v724 = vpop.permute.xlu0 %723
    %725 = vrot.lane.b32.xlu0 %v714, 112
    %v726 = vpop.permute.xlu0 %725
    %v731 = vsel %vm645, %v720, 0.0
    %732 = vadd.xlane.f32.xlu0 %v731
    %v733 = vpop.xlane.xlu0 %732
    %v734 = vsel %vm645, %v722, 0.0
    %735 = vadd.xlane.f32.xlu0 %v734
    %v736 = vpop.xlane.xlu0 %735
    %v737 = vsel %vm645, %v724, 0.0
    %738 = vadd.xlane.f32.xlu0 %v737
    %v739 = vpop.xlane.xlu0 %738
    %v740 = vsel %vm645, %v726, 0.0
    %741 = vadd.xlane.f32.xlu0 %v740
    %v742 = vpop.xlane.xlu0 %741
    %v743 = vrcp.pop %v733
    %v744 = vrcp.pop %v736
    %v745 = vrcp.pop %v739
    %v746 = vrcp.pop %v742
    %v747 = vmul.f32 %v708, %v743
    %v748 = vmul.f32 %v710, %v744
    %v749 = vmul.f32 %v712, %v745
    %v750 = vmul.f32 %v714, %v746
    %v751 = vsel %vm645, %v686, %v747
    %v752 = vsel %vm645, %v687, %v748
    %v753 = vsel %vm645, %v688, %v749
    %v754 = vsel %vm645, %v689, %v750
    %vm755 = vcmask 261120
    %v757 = vsel %vm755, %v751, 0
    %v760 = vsel %vm755, %v752, 0
    %762 = vmatprep.subr.mxu0 0.0
    %763 = vmatpush1.msra.mxu0 %v487
    %764 = vmatprep.subr.mxu0 0.0
    %765 = vmatpush1.msra.mxu0 %v488
    %766 = vmatprep.subr.mxu0 0.0
    %767 = vmatpush1.msra.mxu0 %v491
    %768 = vmatprep.subr.mxu0 0.0
    %769 = vmatpush1.msra.mxu0 %v492
    %770 = vmatprep.subr.mxu0 0.0
    %771 = vmatpush1.msra.mxu0 0.0
    %772 = vmatprep.subr.mxu0 0.0
    %773 = vmatpush1.msra.mxu0 0.0
    %774 = vmatprep.subr.mxu0 0.0
    %775 = vmatpush1.msra.mxu0 0.0
    %776 = vmatprep.subr.mxu0 0.0
    %777 = vmatpush1.msra.mxu0 0.0
    %778 = vmatprep.subr.mxu0 0.0
    %779 = vmatpush1.msra.mxu0 0.0
    %780 = vmatprep.subr.mxu0 0.0
    %781 = vmatpush1.msra.mxu0 0.0
    %782 = vmatprep.subr.mxu0 0.0
    %783 = vmatpush1.msra.mxu0 0.0
    %784 = vmatprep.subr.mxu0 0.0
    %785 = vmatpush1.msra.mxu0 0.0
    %786 = vmatprep.subr.mxu0 0.0
    %787 = vmatpush1.msra.mxu0 0.0
    %788 = vmatprep.subr.mxu0 0.0
    %789 = vmatpush1.msra.mxu0 0.0
    %790 = vmatprep.subr.mxu0 0.0
    %791 = vmatpush1.msra.mxu0 0.0
    %792 = vmatprep.subr.mxu0 0.0
    %793 = vmatpush1.msra.mxu0 0.0
    %794 = vmatprep.subr.mxu0 0.0
    %795 = vmatpush1.msra.mxu0 0.0
    %796 = vmatprep.subr.mxu0 0.0
    %797 = vmatpush1.msra.mxu0 0.0
    %798 = vmatprep.subr.mxu0 0.0
    %799 = vmatpush1.msra.mxu0 0.0
    %800 = vmatprep.subr.mxu0 0.0
    %801 = vmatpush1.msra.mxu0 0.0
    %802 = vmatprep.subr.mxu0 0.0
    %803 = vmatpush1.msra.mxu0 0.0
    %804 = vmatprep.subr.mxu0 0.0
    %805 = vmatpush1.msra.mxu0 0.0
    %806 = vmatprep.subr.mxu0 0.0
    %807 = vmatpush1.msra.mxu0 0.0
    %808 = vmatprep.subr.mxu0 0.0
    %809 = vmatpush1.msra.mxu0 0.0
    %810 = vmatprep.subr.mxu0 0.0
    %811 = vmatpush1.msra.mxu0 0.0
    %812 = vmatprep.subr.mxu0 0.0
    %813 = vmatpush1.msra.mxu0 0.0
    %814 = vmatprep.subr.mxu0 0.0
    %815 = vmatpush1.msra.mxu0 0.0
    %816 = vmatprep.subr.mxu0 0.0
    %817 = vmatpush1.msra.mxu0 0.0
    %818 = vmatprep.subr.mxu0 0.0
    %819 = vmatpush1.msra.mxu0 0.0
    %820 = vmatprep.subr.mxu0 0.0
    %821 = vmatpush1.msra.mxu0 0.0
    %822 = vmatprep.subr.mxu0 0.0
    %823 = vmatpush1.msra.mxu0 0.0
    %824 = vmatprep.subr.mxu0 0.0
    %825 = vmatpush1.msra.mxu0 0.0
    %826 = vmatprep.mubr.f32.mxu0 0.0
    %827 = vmatmul.mubr.f32.gmra.mrb[0].mxu0 %v757
    %v828 = vpop.f32.mrb[0].mxu0
    %v829 = vadd.f32 0.0, %v828
    %v830 = vpop.f32.mrb[0].mxu0
    %831 = vmatprep.mubr.f32.mxu0 0.0
    %832 = vmatmul.mubr.f32.gmra.mrb[0].mxu0 %v760
    %v833 = vpop.f32.mrb[0].mxu0
    %v834 = vadd.f32 0.0, %v833
    %v835 = vpop.f32.mrb[0].mxu0
    %836 = vdwg.mxu0
    %v838 = vsel %vm755, %v753, 0
    %v841 = vsel %vm755, %v754, 0
    %843 = vmatprep.subr.mxu0 0.0
    %844 = vmatpush1.msra.mxu0 %v489
    %845 = vmatprep.subr.mxu0 0.0
    %846 = vmatpush1.msra.mxu0 %v490
    %847 = vmatprep.subr.mxu0 0.0
    %848 = vmatpush1.msra.mxu0 %v493
    %849 = vmatprep.subr.mxu0 0.0
    %850 = vmatpush1.msra.mxu0 %v494
    %851 = vmatprep.subr.mxu0 0.0
    %852 = vmatpush1.msra.mxu0 0.0
    %853 = vmatprep.subr.mxu0 0.0
    %854 = vmatpush1.msra.mxu0 0.0
    %855 = vmatprep.subr.mxu0 0.0
    %856 = vmatpush1.msra.mxu0 0.0
    %857 = vmatprep.subr.mxu0 0.0
    %858 = vmatpush1.msra.mxu0 0.0
    %859 = vmatprep.subr.mxu0 0.0
    %860 = vmatpush1.msra.mxu0 0.0
    %861 = vmatprep.subr.mxu0 0.0
    %862 = vmatpush1.msra.mxu0 0.0
    %863 = vmatprep.subr.mxu0 0.0
    %864 = vmatpush1.msra.mxu0 0.0
    %865 = vmatprep.subr.mxu0 0.0
    %866 = vmatpush1.msra.mxu0 0.0
    %867 = vmatprep.subr.mxu0 0.0
    %868 = vmatpush1.msra.mxu0 0.0
    %869 = vmatprep.subr.mxu0 0.0
    %870 = vmatpush1.msra.mxu0 0.0
    %871 = vmatprep.subr.mxu0 0.0
    %872 = vmatpush1.msra.mxu0 0.0
    %873 = vmatprep.subr.mxu0 0.0
    %874 = vmatpush1.msra.mxu0 0.0
    %875 = vmatprep.subr.mxu0 0.0
    %876 = vmatpush1.msra.mxu0 0.0
    %877 = vmatprep.subr.mxu0 0.0
    %878 = vmatpush1.msra.mxu0 0.0
    %879 = vmatprep.subr.mxu0 0.0
    %880 = vmatpush1.msra.mxu0 0.0
    %881 = vmatprep.subr.mxu0 0.0
    %882 = vmatpush1.msra.mxu0 0.0
    %883 = vmatprep.subr.mxu0 0.0
    %884 = vmatpush1.msra.mxu0 0.0
    %885 = vmatprep.subr.mxu0 0.0
    %886 = vmatpush1.msra.mxu0 0.0
    %887 = vmatprep.subr.mxu0 0.0
    %888 = vmatpush1.msra.mxu0 0.0
    %889 = vmatprep.subr.mxu0 0.0
    %890 = vmatpush1.msra.mxu0 0.0
    %891 = vmatprep.subr.mxu0 0.0
    %892 = vmatpush1.msra.mxu0 0.0
    %893 = vmatprep.subr.mxu0 0.0
    %894 = vmatpush1.msra.mxu0 0.0
    %895 = vmatprep.subr.mxu0 0.0
    %896 = vmatpush1.msra.mxu0 0.0
    %897 = vmatprep.subr.mxu0 0.0
    %898 = vmatpush1.msra.mxu0 0.0
    %899 = vmatprep.subr.mxu0 0.0
    %900 = vmatpush1.msra.mxu0 0.0
    %901 = vmatprep.subr.mxu0 0.0
    %902 = vmatpush1.msra.mxu0 0.0
    %903 = vmatprep.subr.mxu0 0.0
    %904 = vmatpush1.msra.mxu0 0.0
    %905 = vmatprep.subr.mxu0 0.0
    %906 = vmatpush1.msra.mxu0 0.0
    %907 = vmatprep.mubr.f32.mxu0 0.0
    %908 = vmatmul.mubr.f32.gmra.mrb[0].mxu0 %v838
    %v909 = vpop.f32.mrb[0].mxu0
    %v910 = vadd.f32 0.0, %v909
    %v911 = vpop.f32.mrb[0].mxu0
    %912 = vmatprep.mubr.f32.mxu0 0.0
    %913 = vmatmul.mubr.f32.gmra.mrb[0].mxu0 %v841
    %v914 = vpop.f32.mrb[0].mxu0
    %v915 = vadd.f32 0.0, %v914
    %v916 = vpop.f32.mrb[0].mxu0
    %917 = vdwg.mxu0
    %v918 = vpack.c.bf16 %v834, %v829
    %v919 = vpack.c.bf16 %v915, %v910
    %v920 = vld [vmem:[#allocation13 + $0x1] ss:$0 sm:$0xff]
    %v921 = vunpack.c.h.b16 %v199
    %v922 = vunpack.c.h.b16 %v201
    %v923 = vunpack.c.h.b16 %v203
    %v924 = vunpack.c.h.b16 %v205
    %v925 = vunpack.c.h.b16 %v207
    %v926 = vunpack.c.h.b16 %v209
    %v927 = vunpack.c.h.b16 %v211
    %v928 = vunpack.c.h.b16 %v213
    %v929 = vunpack.c.h.b16 %v215
    %v930 = vunpack.c.h.b16 %v217
    %v931 = vunpack.c.h.b16 %v219
    %v932 = vunpack.c.h.b16 %v221
    %v933 = vunpack.c.h.b16 %v223
    %v934 = vunpack.c.h.b16 %v225
    %v935 = vunpack.c.h.b16 %v227
    %v936 = vunpack.c.h.b16 %v229
    %v937 = vpack.c.b16 %v922, %v921
    %v938 = vpack.c.b16 %v924, %v923
    %v939 = vpack.c.b16 %v926, %v925
    %v940 = vpack.c.b16 %v928, %v927
    %v941 = vpack.c.b16 %v930, %v929
    %v942 = vpack.c.b16 %v932, %v931
    %v943 = vpack.c.b16 %v934, %v933
    %v944 = vpack.c.b16 %v936, %v935
    %953 = vmatprep.subr.bf16.mxu0 0
    %954 = vmatpush1.bf16.msra.mxu0 %v937
    %955 = vmatprep.subr.bf16.mxu0 0
    %956 = vmatpush1.bf16.msra.mxu0 %v938
    %957 = vmatprep.subr.bf16.mxu0 0
    %958 = vmatpush1.bf16.msra.mxu0 %v939
    %959 = vmatprep.subr.bf16.mxu0 0
    %960 = vmatpush1.bf16.msra.mxu0 %v940
    %961 = vmatprep.subr.bf16.mxu0 0
    %962 = vmatpush1.bf16.msra.mxu0 %v941
    %963 = vmatprep.subr.bf16.mxu0 0
    %964 = vmatpush1.bf16.msra.mxu0 %v942
    %965 = vmatprep.subr.bf16.mxu0 0
    %966 = vmatpush1.bf16.msra.mxu0 %v943
    %967 = vmatprep.subr.bf16.mxu0 0
    %968 = vmatpush1.bf16.msra.mxu0 %v944
    %969 = vmatprep.subr.bf16.mxu0 0
    %970 = vmatpush1.bf16.msra.mxu0 0
    %971 = vmatprep.subr.bf16.mxu0 0
    %972 = vmatpush1.bf16.msra.mxu0 0
    %973 = vmatprep.subr.bf16.mxu0 0
    %974 = vmatpush1.bf16.msra.mxu0 0
    %975 = vmatprep.subr.bf16.mxu0 0
    %976 = vmatpush1.bf16.msra.mxu0 0
    %977 = vmatprep.subr.bf16.mxu0 0
    %978 = vmatpush1.bf16.msra.mxu0 0
    %979 = vmatprep.subr.bf16.mxu0 0
    %980 = vmatpush1.bf16.msra.mxu0 0
    %981 = vmatprep.subr.bf16.mxu0 0
    %982 = vmatpush1.bf16.msra.mxu0 0
    %983 = vmatprep.subr.bf16.mxu0 0
    %984 = vmatpush1.bf16.msra.mxu0 0
    %985 = vmatprep.mubr.bf16.mxu0 0
    %986 = vmatmul.mubr.bf16.gmra.mrb[0].mxu0 %v918
    %v987 = vpop.f32.mrb[0].mxu0
    %v988 = vadd.f32 %v920, %v987
    %v989 = vpop.f32.mrb[0].mxu0
    %v990 = vpop.f32.mrb[0].mxu0
    %v991 = vadd.f32 %v920, %v990
    %v992 = vpop.f32.mrb[0].mxu0
    %993 = vmatprep.mubr.bf16.mxu0 0
    %994 = vmatmul.mubr.bf16.gmra.mrb[0].mxu0 %v919
    %v995 = vpop.f32.mrb[0].mxu0
    %v996 = vadd.f32 %v920, %v995
    %v997 = vpop.f32.mrb[0].mxu0
    %v998 = vpop.f32.mrb[0].mxu0
    %v999 = vadd.f32 %v920, %v998
    %v1000 = vpop.f32.mrb[0].mxu0
    %1001 = vdwg.mxu0
    %v1002 = vadd.f32 %v182, %v988
    %v1003 = vadd.f32 %v183, %v991
    %v1004 = vadd.f32 %v184, %v996
    %v1005 = vadd.f32 %v185, %v999
    %v1006 = vld [vmem:[#allocation13 + $0x2] ss:$0 sm:$0xff]
    %v1007 = vld [vmem:[#allocation13 + $0x3] ss:$0 sm:$0xff]
    %1008 = vadd.xlane.f32.xlu0 %v1002
    %v1009 = vpop.xlane.xlu0 %1008
    %1010 = vadd.xlane.f32.xlu0 %v1003
    %v1011 = vpop.xlane.xlu0 %1010
    %1012 = vadd.xlane.f32.xlu0 %v1004
    %v1013 = vpop.xlane.xlu0 %1012
    %1014 = vadd.xlane.f32.xlu0 %v1005
    %v1015 = vpop.xlane.xlu0 %1014
    %v1016 = vmul.f32 %v1009, %v141
    %v1017 = vmul.f32 %v1011, %v141
    %v1018 = vmul.f32 %v1013, %v141
    %v1019 = vmul.f32 %v1015, %v141
    %v1020 = vsub.f32 %v1002, %v1016
    %v1021 = vsub.f32 %v1003, %v1017
    %v1022 = vsub.f32 %v1004, %v1018
    %v1023 = vsub.f32 %v1005, %v1019
    %v1024 = vmul.f32 %v1020, %v1020
    %v1025 = vmul.f32 %v1021, %v1021
    %v1026 = vmul.f32 %v1022, %v1022
    %v1027 = vmul.f32 %v1023, %v1023
    %1028 = vadd.xlane.f32.xlu0 %v1024
    %v1029 = vpop.xlane.xlu0 %1028
    %1030 = vadd.xlane.f32.xlu0 %v1025
    %v1031 = vpop.xlane.xlu0 %1030
    %1032 = vadd.xlane.f32.xlu0 %v1026
    %v1033 = vpop.xlane.xlu0 %1032
    %1034 = vadd.xlane.f32.xlu0 %v1027
    %v1035 = vpop.xlane.xlu0 %1034
    %v1036 = vmul.f32 %v1029, %v141
    %v1037 = vmul.f32 %v1031, %v141
    %v1038 = vmul.f32 %v1033, %v141
    %v1039 = vmul.f32 %v1035, %v141
    %v1040 = vadd.f32 %v1036, 1e-12
    %v1041 = vadd.f32 %v1037, 1e-12
    %v1042 = vadd.f32 %v1038, 1e-12
    %v1043 = vadd.f32 %v1039, 1e-12
    %v1044 = vrsqrt.pop %v1040
    %v1045 = vrsqrt.pop %v1041
    %v1046 = vrsqrt.pop %v1042
    %v1047 = vrsqrt.pop %v1043
    %v1048 = vmul.f32 %v1020, %v1044
    %v1049 = vmul.f32 %v1021, %v1045
    %v1050 = vmul.f32 %v1022, %v1046
    %v1051 = vmul.f32 %v1023, %v1047
    %v1052 = vmul.f32 %v1048, %v1006
    %v1053 = vmul.f32 %v1049, %v1006
    %v1054 = vmul.f32 %v1050, %v1006
    %v1055 = vmul.f32 %v1051, %v1006
    %v1056 = vadd.f32 %v1052, %v1007
    %v1057 = vadd.f32 %v1053, %v1007
    %v1058 = vadd.f32 %v1054, %v1007
    %v1059 = vadd.f32 %v1055, %v1007
    %v1060 = vpack.c.bf16 %v1057, %v1056
    %v1061 = vpack.c.bf16 %v1059, %v1058
    %v1062 = vld [vmem:[#allocation8] sm:$0xff]
    %v1063 = vld [vmem:[#allocation8 + $0x8] sm:$0xff]
    %v1064 = vld [vmem:[#allocation8 + $0x10] sm:$0xff]
    %v1065 = vld [vmem:[#allocation8 + $0x18] sm:$0xff]
    %v1066 = vld [vmem:[#allocation8 + $0x20] sm:$0xff]
    %v1067 = vld [vmem:[#allocation8 + $0x28] sm:$0xff]
    %v1068 = vld [vmem:[#allocation8 + $0x30] sm:$0xff]
    %v1069 = vld [vmem:[#allocation8 + $0x38] sm:$0xff]
    %v1070 = vld [vmem:[#allocation8 + $0x40] sm:$0xff]
    %v1071 = vld [vmem:[#allocation8 + $0x48] sm:$0xff]
    %v1072 = vld [vmem:[#allocation8 + $0x50] sm:$0xff]
    %v1073 = vld [vmem:[#allocation8 + $0x58] sm:$0xff]
    %v1074 = vld [vmem:[#allocation8 + $0x60] sm:$0xff]
    %v1075 = vld [vmem:[#allocation8 + $0x68] sm:$0xff]
    %v1076 = vld [vmem:[#allocation8 + $0x70] sm:$0xff]
    %v1077 = vld [vmem:[#allocation8 + $0x78] sm:$0xff]
    %s1078 = scalar_lea.vmem [#allocation13], 4
    %v1079 = vld [vmem:[%s1078] ss:$8 sm:$0x3]
    %v1081 = vlaneseq
    %v1082 = vshrl.u32 %v1081, 7
    %v1083 = vsub.s32 0, %v1082
    %v1084 = vrot.slane %v1079, %v1083
    %v1085 = vlaneseq
    %v1086 = vshrl.u32 %v1085, 7
    %v1087 = vsub.s32 1, %v1086
    %v1088 = vrot.slane %v1079, %v1087
    %v1107 = vunpack.c.l.b16 %v1062
    %v1108 = vunpack.c.h.b16 %v1062
    %v1109 = vunpack.c.l.b16 %v1063
    %v1110 = vunpack.c.h.b16 %v1063
    %v1111 = vunpack.c.l.b16 %v1064
    %v1112 = vunpack.c.h.b16 %v1064
    %v1113 = vunpack.c.l.b16 %v1065
    %v1114 = vunpack.c.h.b16 %v1065
    %v1115 = vunpack.c.l.b16 %v1066
    %v1116 = vunpack.c.h.b16 %v1066
    %v1117 = vunpack.c.l.b16 %v1067
    %v1118 = vunpack.c.h.b16 %v1067
    %v1119 = vunpack.c.l.b16 %v1068
    %v1120 = vunpack.c.h.b16 %v1068
    %v1121 = vunpack.c.l.b16 %v1069
    %v1122 = vunpack.c.h.b16 %v1069
    %v1123 = vunpack.c.l.b16 %v1070
    %v1124 = vunpack.c.h.b16 %v1070
    %v1125 = vunpack.c.l.b16 %v1071
    %v1126 = vunpack.c.h.b16 %v1071
    %v1127 = vunpack.c.l.b16 %v1072
    %v1128 = vunpack.c.h.b16 %v1072
    %v1129 = vunpack.c.l.b16 %v1073
    %v1130 = vunpack.c.h.b16 %v1073
    %v1131 = vunpack.c.l.b16 %v1074
    %v1132 = vunpack.c.h.b16 %v1074
    %v1133 = vunpack.c.l.b16 %v1075
    %v1134 = vunpack.c.h.b16 %v1075
    %v1135 = vunpack.c.l.b16 %v1076
    %v1136 = vunpack.c.h.b16 %v1076
    %v1137 = vunpack.c.l.b16 %v1077
    %v1138 = vunpack.c.h.b16 %v1077
    %v1139 = vpack.c.b16 %v1109, %v1107
    %v1140 = vpack.c.b16 %v1110, %v1108
    %v1141 = vpack.c.b16 %v1113, %v1111
    %v1142 = vpack.c.b16 %v1114, %v1112
    %v1143 = vpack.c.b16 %v1117, %v1115
    %v1144 = vpack.c.b16 %v1118, %v1116
    %v1145 = vpack.c.b16 %v1121, %v1119
    %v1146 = vpack.c.b16 %v1122, %v1120
    %v1147 = vpack.c.b16 %v1125, %v1123
    %v1148 = vpack.c.b16 %v1126, %v1124
    %v1149 = vpack.c.b16 %v1129, %v1127
    %v1150 = vpack.c.b16 %v1130, %v1128
    %v1151 = vpack.c.b16 %v1133, %v1131
    %v1152 = vpack.c.b16 %v1134, %v1132
    %v1153 = vpack.c.b16 %v1137, %v1135
    %v1154 = vpack.c.b16 %v1138, %v1136
    %1171 = vmatprep.subr.bf16.mxu0 %v1140
    %1172 = vmatpush1.bf16.msra.mxu0 %v1139
    %1173 = vmatprep.subr.bf16.mxu0 %v1142
    %1174 = vmatpush1.bf16.msra.mxu0 %v1141
    %1175 = vmatprep.subr.bf16.mxu0 %v1144
    %1176 = vmatpush1.bf16.msra.mxu0 %v1143
    %1177 = vmatprep.subr.bf16.mxu0 %v1146
    %1178 = vmatpush1.bf16.msra.mxu0 %v1145
    %1179 = vmatprep.subr.bf16.mxu0 %v1148
    %1180 = vmatpush1.bf16.msra.mxu0 %v1147
    %1181 = vmatprep.subr.bf16.mxu0 %v1150
    %1182 = vmatpush1.bf16.msra.mxu0 %v1149
    %1183 = vmatprep.subr.bf16.mxu0 %v1152
    %1184 = vmatpush1.bf16.msra.mxu0 %v1151
    %1185 = vmatprep.subr.bf16.mxu0 %v1154
    %1186 = vmatpush1.bf16.msra.mxu0 %v1153
    %1187 = vmatprep.subr.bf16.mxu0 0
    %1188 = vmatpush1.bf16.msra.mxu0 0
    %1189 = vmatprep.subr.bf16.mxu0 0
    %1190 = vmatpush1.bf16.msra.mxu0 0
    %1191 = vmatprep.subr.bf16.mxu0 0
    %1192 = vmatpush1.bf16.msra.mxu0 0
    %1193 = vmatprep.subr.bf16.mxu0 0
    %1194 = vmatpush1.bf16.msra.mxu0 0
    %1195 = vmatprep.subr.bf16.mxu0 0
    %1196 = vmatpush1.bf16.msra.mxu0 0
    %1197 = vmatprep.subr.bf16.mxu0 0
    %1198 = vmatpush1.bf16.msra.mxu0 0
    %1199 = vmatprep.subr.bf16.mxu0 0
    %1200 = vmatpush1.bf16.msra.mxu0 0
    %1201 = vmatprep.subr.bf16.mxu0 0
    %1202 = vmatpush1.bf16.msra.mxu0 0
    %1203 = vmatprep.mubr.bf16.mxu0 0
    %1204 = vmatmul.mubr.bf16.gmra.mrb[0].mxu0 %v1060
    %v1205 = vpop.f32.mrb[0].mxu0
    %v1206 = vadd.f32 %v1084, %v1205
    %v1207 = vpop.f32.mrb[0].mxu0
    %v1208 = vadd.f32 %v1088, %v1207
    %v1209 = vpop.f32.mrb[0].mxu0
    %v1210 = vadd.f32 %v1084, %v1209
    %v1211 = vpop.f32.mrb[0].mxu0
    %v1212 = vadd.f32 %v1088, %v1211
    %1213 = vmatprep.mubr.bf16.mxu0 0
    %1214 = vmatmul.mubr.bf16.gmra.mrb[0].mxu0 %v1061
    %v1215 = vpop.f32.mrb[0].mxu0
    %v1216 = vadd.f32 %v1084, %v1215
    %v1217 = vpop.f32.mrb[0].mxu0
    %v1218 = vadd.f32 %v1088, %v1217
    %v1219 = vpop.f32.mrb[0].mxu0
    %v1220 = vadd.f32 %v1084, %v1219
    %v1221 = vpop.f32.mrb[0].mxu0
    %v1222 = vadd.f32 %v1088, %v1221
    %1223 = vdwg.mxu0
    %v1224 = vmul.f32 %v1206, 0.5
    %v1225 = vmul.f32 %v1208, 0.5
    %v1226 = vmul.f32 %v1210, 0.5
    %v1227 = vmul.f32 %v1212, 0.5
    %v1228 = vmul.f32 %v1216, 0.5
    %v1229 = vmul.f32 %v1218, 0.5
    %v1230 = vmul.f32 %v1220, 0.5
    %v1231 = vmul.f32 %v1222, 0.5
    %v1232 = vmul.f32 %v1206, 0.044715
    %v1233 = vmul.f32 %v1208, 0.044715
    %v1234 = vmul.f32 %v1210, 0.044715
    %v1235 = vmul.f32 %v1212, 0.044715
    %v1236 = vmul.f32 %v1216, 0.044715
    %v1237 = vmul.f32 %v1218, 0.044715
    %v1238 = vmul.f32 %v1220, 0.044715
    %v1239 = vmul.f32 %v1222, 0.044715
    %v1240 = vmul.f32 %v1232, %v1206
    %v1241 = vmul.f32 %v1233, %v1208
    %v1242 = vmul.f32 %v1234, %v1210
    %v1243 = vmul.f32 %v1235, %v1212
    %v1244 = vmul.f32 %v1236, %v1216
    %v1245 = vmul.f32 %v1237, %v1218
    %v1246 = vmul.f32 %v1238, %v1220
    %v1247 = vmul.f32 %v1239, %v1222
    %v1248 = vmul.f32 %v1240, %v1206
    %v1249 = vmul.f32 %v1241, %v1208
    %v1250 = vmul.f32 %v1242, %v1210
    %v1251 = vmul.f32 %v1243, %v1212
    %v1252 = vmul.f32 %v1244, %v1216
    %v1253 = vmul.f32 %v1245, %v1218
    %v1254 = vmul.f32 %v1246, %v1220
    %v1255 = vmul.f32 %v1247, %v1222
    %v1256 = vadd.f32 %v1206, %v1248
    %v1257 = vadd.f32 %v1208, %v1249
    %v1258 = vadd.f32 %v1210, %v1250
    %v1259 = vadd.f32 %v1212, %v1251
    %v1260 = vadd.f32 %v1216, %v1252
    %v1261 = vadd.f32 %v1218, %v1253
    %v1262 = vadd.f32 %v1220, %v1254
    %v1263 = vadd.f32 %v1222, %v1255
    %v1264 = vmul.f32 %v1256, 0.7978846
    %v1265 = vmul.f32 %v1257, 0.7978846
    %v1266 = vmul.f32 %v1258, 0.7978846
    %v1267 = vmul.f32 %v1259, 0.7978846
    %v1268 = vmul.f32 %v1260, 0.7978846
    %v1269 = vmul.f32 %v1261, 0.7978846
    %v1270 = vmul.f32 %v1262, 0.7978846
    %v1271 = vmul.f32 %v1263, 0.7978846
    %v1272 = vtanh.pop %v1264
    %v1273 = vtanh.pop %v1265
    %v1274 = vtanh.pop %v1266
    %v1275 = vtanh.pop %v1267
    %v1276 = vtanh.pop %v1268
    %v1277 = vtanh.pop %v1269
    %v1278 = vtanh.pop %v1270
    %v1279 = vtanh.pop %v1271
    %v1280 = vadd.f32 %v1272, 1.0
    %v1281 = vadd.f32 %v1273, 1.0
    %v1282 = vadd.f32 %v1274, 1.0
    %v1283 = vadd.f32 %v1275, 1.0
    %v1284 = vadd.f32 %v1276, 1.0
    %v1285 = vadd.f32 %v1277, 1.0
    %v1286 = vadd.f32 %v1278, 1.0
    %v1287 = vadd.f32 %v1279, 1.0
    %v1288 = vmul.f32 %v1224, %v1280
    %v1289 = vmul.f32 %v1225, %v1281
    %v1290 = vmul.f32 %v1226, %v1282
    %v1291 = vmul.f32 %v1227, %v1283
    %v1292 = vmul.f32 %v1228, %v1284
    %v1293 = vmul.f32 %v1229, %v1285
    %v1294 = vmul.f32 %v1230, %v1286
    %v1295 = vmul.f32 %v1231, %v1287
    %v1296 = vpack.c.bf16 %v1290, %v1288
    %v1297 = vpack.c.bf16 %v1291, %v1289
    %v1298 = vpack.c.bf16 %v1294, %v1292
    %v1299 = vpack.c.bf16 %v1295, %v1293
    %v1300 = vld [vmem:[#allocation10] sm:$0xf]
    %v1301 = vld [vmem:[#allocation10 + $0x4] sm:$0xf]
    %v1302 = vld [vmem:[#allocation10 + $0x8] sm:$0xf]
    %v1303 = vld [vmem:[#allocation10 + $0xc] sm:$0xf]
    %v1304 = vld [vmem:[#allocation10 + $0x10] sm:$0xf]
    %v1305 = vld [vmem:[#allocation10 + $0x14] sm:$0xf]
    %v1306 = vld [vmem:[#allocation10 + $0x18] sm:$0xf]
    %v1307 = vld [vmem:[#allocation10 + $0x1c] sm:$0xf]
    %v1308 = vld [vmem:[#allocation10 + $0x20] sm:$0xf]
    %v1309 = vld [vmem:[#allocation10 + $0x24] sm:$0xf]
    %v1310 = vld [vmem:[#allocation10 + $0x28] sm:$0xf]
    %v1311 = vld [vmem:[#allocation10 + $0x2c] sm:$0xf]
    %v1312 = vld [vmem:[#allocation10 + $0x30] sm:$0xf]
    %v1313 = vld [vmem:[#allocation10 + $0x34] sm:$0xf]
    %v1314 = vld [vmem:[#allocation10 + $0x38] sm:$0xf]
    %v1315 = vld [vmem:[#allocation10 + $0x3c] sm:$0xf]
    %v1316 = vld [vmem:[#allocation10 + $0x40] sm:$0xf]
    %v1317 = vld [vmem:[#allocation10 + $0x44] sm:$0xf]
    %v1318 = vld [vmem:[#allocation10 + $0x48] sm:$0xf]
    %v1319 = vld [vmem:[#allocation10 + $0x4c] sm:$0xf]
    %v1320 = vld [vmem:[#allocation10 + $0x50] sm:$0xf]
    %v1321 = vld [vmem:[#allocation10 + $0x54] sm:$0xf]
    %v1322 = vld [vmem:[#allocation10 + $0x58] sm:$0xf]
    %v1323 = vld [vmem:[#allocation10 + $0x5c] sm:$0xf]
    %v1324 = vld [vmem:[#allocation10 + $0x60] sm:$0xf]
    %v1325 = vld [vmem:[#allocation10 + $0x64] sm:$0xf]
    %v1326 = vld [vmem:[#allocation10 + $0x68] sm:$0xf]
    %v1327 = vld [vmem:[#allocation10 + $0x6c] sm:$0xf]
    %v1328 = vld [vmem:[#allocation10 + $0x70] sm:$0xf]
    %v1329 = vld [vmem:[#allocation10 + $0x74] sm:$0xf]
    %v1330 = vld [vmem:[#allocation10 + $0x78] sm:$0xf]
    %v1331 = vld [vmem:[#allocation10 + $0x7c] sm:$0xf]
    %v1332 = vld [vmem:[#allocation13 + $0x5] ss:$0 sm:$0xff]
    %v1365 = vunpack.c.l.b16 %v1300
    %v1366 = vunpack.c.l.b16 %v1301
    %v1367 = vunpack.c.l.b16 %v1302
    %v1368 = vunpack.c.l.b16 %v1303
    %v1369 = vunpack.c.l.b16 %v1304
    %v1370 = vunpack.c.l.b16 %v1305
    %v1371 = vunpack.c.l.b16 %v1306
    %v1372 = vunpack.c.l.b16 %v1307
    %v1373 = vunpack.c.l.b16 %v1308
    %v1374 = vunpack.c.l.b16 %v1309
    %v1375 = vunpack.c.l.b16 %v1310
    %v1376 = vunpack.c.l.b16 %v1311
    %v1377 = vunpack.c.l.b16 %v1312
    %v1378 = vunpack.c.l.b16 %v1313
    %v1379 = vunpack.c.l.b16 %v1314
    %v1380 = vunpack.c.l.b16 %v1315
    %v1381 = vunpack.c.l.b16 %v1316
    %v1382 = vunpack.c.l.b16 %v1317
    %v1383 = vunpack.c.l.b16 %v1318
    %v1384 = vunpack.c.l.b16 %v1319
    %v1385 = vunpack.c.l.b16 %v1320
    %v1386 = vunpack.c.l.b16 %v1321
    %v1387 = vunpack.c.l.b16 %v1322
    %v1388 = vunpack.c.l.b16 %v1323
    %v1389 = vunpack.c.l.b16 %v1324
    %v1390 = vunpack.c.l.b16 %v1325
    %v1391 = vunpack.c.l.b16 %v1326
    %v1392 = vunpack.c.l.b16 %v1327
    %v1393 = vunpack.c.l.b16 %v1328
    %v1394 = vunpack.c.l.b16 %v1329
    %v1395 = vunpack.c.l.b16 %v1330
    %v1396 = vunpack.c.l.b16 %v1331
    %v1397 = vpack.c.b16 %v1366, %v1365
    %v1398 = vpack.c.b16 %v1368, %v1367
    %v1399 = vpack.c.b16 %v1370, %v1369
    %v1400 = vpack.c.b16 %v1372, %v1371
    %v1401 = vpack.c.b16 %v1374, %v1373
    %v1402 = vpack.c.b16 %v1376, %v1375
    %v1403 = vpack.c.b16 %v1378, %v1377
    %v1404 = vpack.c.b16 %v1380, %v1379
    %v1405 = vpack.c.b16 %v1382, %v1381
    %v1406 = vpack.c.b16 %v1384, %v1383
    %v1407 = vpack.c.b16 %v1386, %v1385
    %v1408 = vpack.c.b16 %v1388, %v1387
    %v1409 = vpack.c.b16 %v1390, %v1389
    %v1410 = vpack.c.b16 %v1392, %v1391
    %v1411 = vpack.c.b16 %v1394, %v1393
    %v1412 = vpack.c.b16 %v1396, %v1395
    %1429 = vmatprep.subr.bf16.mxu0 0
    %1430 = vmatpush1.bf16.msra.mxu0 %v1397
    %1431 = vmatprep.subr.bf16.mxu0 0
    %1432 = vmatpush1.bf16.msra.mxu0 %v1398
    %1433 = vmatprep.subr.bf16.mxu0 0
    %1434 = vmatpush1.bf16.msra.mxu0 %v1399
    %1435 = vmatprep.subr.bf16.mxu0 0
    %1436 = vmatpush1.bf16.msra.mxu0 %v1400
    %1437 = vmatprep.subr.bf16.mxu0 0
    %1438 = vmatpush1.bf16.msra.mxu0 %v1401
    %1439 = vmatprep.subr.bf16.mxu0 0
    %1440 = vmatpush1.bf16.msra.mxu0 %v1402
    %1441 = vmatprep.subr.bf16.mxu0 0
    %1442 = vmatpush1.bf16.msra.mxu0 %v1403
    %1443 = vmatprep.subr.bf16.mxu0 0
    %1444 = vmatpush1.bf16.msra.mxu0 %v1404
    %1445 = vmatprep.subr.bf16.mxu0 0
    %1446 = vmatpush1.bf16.msra.mxu0 %v1405
    %1447 = vmatprep.subr.bf16.mxu0 0
    %1448 = vmatpush1.bf16.msra.mxu0 %v1406
    %1449 = vmatprep.subr.bf16.mxu0 0
    %1450 = vmatpush1.bf16.msra.mxu0 %v1407
    %1451 = vmatprep.subr.bf16.mxu0 0
    %1452 = vmatpush1.bf16.msra.mxu0 %v1408
    %1453 = vmatprep.subr.bf16.mxu0 0
    %1454 = vmatpush1.bf16.msra.mxu0 %v1409
    %1455 = vmatprep.subr.bf16.mxu0 0
    %1456 = vmatpush1.bf16.msra.mxu0 %v1410
    %1457 = vmatprep.subr.bf16.mxu0 0
    %1458 = vmatpush1.bf16.msra.mxu0 %v1411
    %1459 = vmatprep.subr.bf16.mxu0 0
    %1460 = vmatpush1.bf16.msra.mxu0 %v1412
    %1461 = vmatprep.mubr.bf16.mxu0 %v1297
    %1462 = vmatmul.mubr.bf16.gmra.mrb[0].mxu0 %v1296
    %v1463 = vpop.f32.mrb[0].mxu0
    %v1464 = vadd.f32 %v1332, %v1463
    %v1465 = vpop.f32.mrb[0].mxu0
    %v1466 = vpop.f32.mrb[0].mxu0
    %v1467 = vadd.f32 %v1332, %v1466
    %v1468 = vpop.f32.mrb[0].mxu0
    %1469 = vmatprep.mubr.bf16.mxu0 %v1299
    %1470 = vmatmul.mubr.bf16.gmra.mrb[0].mxu0 %v1298
    %v1471 = vpop.f32.mrb[0].mxu0
    %v1472 = vadd.f32 %v1332, %v1471
    %v1473 = vpop.f32.mrb[0].mxu0
    %v1474 = vpop.f32.mrb[0].mxu0
    %v1475 = vadd.f32 %v1332, %v1474
    %v1476 = vpop.f32.mrb[0].mxu0
    %1477 = vdwg.mxu0
    %v1478 = vadd.f32 %v1056, %v1464
    %v1479 = vadd.f32 %v1057, %v1467
    %v1480 = vadd.f32 %v1058, %v1472
    %v1481 = vadd.f32 %v1059, %v1475
    %v1482 = vld [vmem:[#allocation13 + $0x6] ss:$0 sm:$0xff]
    %v1483 = vld [vmem:[#allocation13 + $0x7] ss:$0 sm:$0xff]
    %1484 = vadd.xlane.f32.xlu0 %v1478
    %v1485 = vpop.xlane.xlu0 %1484
    %1486 = vadd.xlane.f32.xlu0 %v1479
    %v1487 = vpop.xlane.xlu0 %1486
    %1488 = vadd.xlane.f32.xlu0 %v1480
    %v1489 = vpop.xlane.xlu0 %1488
    %1490 = vadd.xlane.f32.xlu0 %v1481
    %v1491 = vpop.xlane.xlu0 %1490
    %v1492 = vmul.f32 %v1485, %v141
    %v1493 = vmul.f32 %v1487, %v141
    %v1494 = vmul.f32 %v1489, %v141
    %v1495 = vmul.f32 %v1491, %v141
    %v1496 = vsub.f32 %v1478, %v1492
    %v1497 = vsub.f32 %v1479, %v1493
    %v1498 = vsub.f32 %v1480, %v1494
    %v1499 = vsub.f32 %v1481, %v1495
    %v1500 = vmul.f32 %v1496, %v1496
    %v1501 = vmul.f32 %v1497, %v1497
    %v1502 = vmul.f32 %v1498, %v1498
    %v1503 = vmul.f32 %v1499, %v1499
    %1504 = vadd.xlane.f32.xlu0 %v1500
    %v1505 = vpop.xlane.xlu0 %1504
    %1506 = vadd.xlane.f32.xlu0 %v1501
    %v1507 = vpop.xlane.xlu0 %1506
    %1508 = vadd.xlane.f32.xlu0 %v1502
    %v1509 = vpop.xlane.xlu0 %1508
    %1510 = vadd.xlane.f32.xlu0 %v1503
    %v1511 = vpop.xlane.xlu0 %1510
    %v1512 = vmul.f32 %v1505, %v141
    %v1513 = vmul.f32 %v1507, %v141
    %v1514 = vmul.f32 %v1509, %v141
    %v1515 = vmul.f32 %v1511, %v141
    %v1516 = vadd.f32 %v1512, 1e-12
    %v1517 = vadd.f32 %v1513, 1e-12
    %v1518 = vadd.f32 %v1514, 1e-12
    %v1519 = vadd.f32 %v1515, 1e-12
    %v1520 = vrsqrt.pop %v1516
    %v1521 = vrsqrt.pop %v1517
    %v1522 = vrsqrt.pop %v1518
    %v1523 = vrsqrt.pop %v1519
    %v1524 = vmul.f32 %v1496, %v1520
    %v1525 = vmul.f32 %v1497, %v1521
    %v1526 = vmul.f32 %v1498, %v1522
    %v1527 = vmul.f32 %v1499, %v1523
    %v1528 = vmul.f32 %v1524, %v1482
    %v1529 = vmul.f32 %v1525, %v1482
    %v1530 = vmul.f32 %v1526, %v1482
    %v1531 = vmul.f32 %v1527, %v1482
    %v1532 = vadd.f32 %v1528, %v1483
    %v1533 = vadd.f32 %v1529, %v1483
    %v1534 = vadd.f32 %v1530, %v1483
    %v1535 = vadd.f32 %v1531, %v1483
    %s1536 = scalar_lea.vmem [#allocation7], 256
    %v1537 = vld [vmem:[%s1536] sm:$0xff]
    %v1538 = vld [vmem:[%s1536 + $0x8] sm:$0xff]
    %v1539 = vld [vmem:[%s1536 + $0x10] sm:$0xff]
    %v1540 = vld [vmem:[%s1536 + $0x18] sm:$0xff]
    %v1541 = vld [vmem:[%s1536 + $0x20] sm:$0xff]
    %v1542 = vld [vmem:[%s1536 + $0x28] sm:$0xff]
    %v1543 = vld [vmem:[%s1536 + $0x30] sm:$0xff]
    %v1544 = vld [vmem:[%s1536 + $0x38] sm:$0xff]
    %v1545 = vld [vmem:[%s1536 + $0x40] sm:$0xff]
    %v1546 = vld [vmem:[%s1536 + $0x48] sm:$0xff]
    %v1547 = vld [vmem:[%s1536 + $0x50] sm:$0xff]
    %v1548 = vld [vmem:[%s1536 + $0x58] sm:$0xff]
    %v1549 = vld [vmem:[%s1536 + $0x60] sm:$0xff]
    %v1550 = vld [vmem:[%s1536 + $0x68] sm:$0xff]
    %v1551 = vld [vmem:[%s1536 + $0x70] sm:$0xff]
    %v1552 = vld [vmem:[%s1536 + $0x78] sm:$0xff]
    %v1553 = vld [vmem:[%s1536 + $0x80] sm:$0xff]
    %v1554 = vld [vmem:[%s1536 + $0x88] sm:$0xff]
    %v1555 = vld [vmem:[%s1536 + $0x90] sm:$0xff]
    %v1556 = vld [vmem:[%s1536 + $0x98] sm:$0xff]
    %v1557 = vld [vmem:[%s1536 + $0xa0] sm:$0xff]
    %v1558 = vld [vmem:[%s1536 + $0xa8] sm:$0xff]
    %v1559 = vld [vmem:[%s1536 + $0xb0] sm:$0xff]
    %v1560 = vld [vmem:[%s1536 + $0xb8] sm:$0xff]
    %v1561 = vld [vmem:[%s1536 + $0xc0] sm:$0xff]
    %v1562 = vld [vmem:[%s1536 + $0xc8] sm:$0xff]
    %v1563 = vld [vmem:[%s1536 + $0xd0] sm:$0xff]
    %v1564 = vld [vmem:[%s1536 + $0xd8] sm:$0xff]
    %v1565 = vld [vmem:[%s1536 + $0xe0] sm:$0xff]
    %v1566 = vld [vmem:[%s1536 + $0xe8] sm:$0xff]
    %v1567 = vld [vmem:[%s1536 + $0xf0] sm:$0xff]
    %v1568 = vld [vmem:[%s1536 + $0xf8] sm:$0xff]
    %v1569 = vpack.c.bf16 %v1533, %v1532
    %v1570 = vpack.c.bf16 %v1535, %v1534
    %s1571 = scalar_lea.vmem [#allocation13], 24
    %v1572 = vld [vmem:[%s1571] ss:$8 sm:$0x7]
    %v1574 = vlaneseq
    %v1575 = vshrl.u32 %v1574, 7
    %v1576 = vsub.s32 0, %v1575
    %v1577 = vrot.slane %v1572, %v1576
    %v1578 = vlaneseq
    %v1579 = vshrl.u32 %v1578, 7
    %v1580 = vsub.s32 1, %v1579
    %v1581 = vrot.slane %v1572, %v1580
    %v1582 = vlaneseq
    %v1583 = vshrl.u32 %v1582, 7
    %v1584 = vsub.s32 2, %v1583
    %v1585 = vrot.slane %v1572, %v1584
    %v1621 = vunpack.c.l.b16 %v1537
    %v1622 = vunpack.c.h.b16 %v1537
    %v1623 = vunpack.c.l.b16 %v1538
    %v1624 = vunpack.c.l.b16 %v1539
    %v1625 = vunpack.c.h.b16 %v1539
    %v1626 = vunpack.c.l.b16 %v1540
    %v1627 = vunpack.c.l.b16 %v1541
    %v1628 = vunpack.c.h.b16 %v1541
    %v1629 = vunpack.c.l.b16 %v1542
    %v1630 = vunpack.c.l.b16 %v1543
    %v1631 = vunpack.c.h.b16 %v1543
    %v1632 = vunpack.c.l.b16 %v1544
    %v1633 = vunpack.c.l.b16 %v1545
    %v1634 = vunpack.c.h.b16 %v1545
    %v1635 = vunpack.c.l.b16 %v1546
    %v1636 = vunpack.c.l.b16 %v1547
    %v1637 = vunpack.c.h.b16 %v1547
    %v1638 = vunpack.c.l.b16 %v1548
    %v1639 = vunpack.c.l.b16 %v1549
    %v1640 = vunpack.c.h.b16 %v1549
    %v1641 = vunpack.c.l.b16 %v1550
    %v1642 = vunpack.c.l.b16 %v1551
    %v1643 = vunpack.c.h.b16 %v1551
    %v1644 = vunpack.c.l.b16 %v1552
    %v1645 = vunpack.c.l.b16 %v1553
    %v1646 = vunpack.c.h.b16 %v1553
    %v1647 = vunpack.c.l.b16 %v1554
    %v1648 = vunpack.c.l.b16 %v1555
    %v1649 = vunpack.c.h.b16 %v1555
    %v1650 = vunpack.c.l.b16 %v1556
    %v1651 = vunpack.c.l.b16 %v1557
    %v1652 = vunpack.c.h.b16 %v1557
    %v1653 = vunpack.c.l.b16 %v1558
    %v1654 = vunpack.c.l.b16 %v1559
    %v1655 = vunpack.c.h.b16 %v1559
    %v1656 = vunpack.c.l.b16 %v1560
    %v1657 = vunpack.c.l.b16 %v1561
    %v1658 = vunpack.c.h.b16 %v1561
    %v1659 = vunpack.c.l.b16 %v1562
    %v1660 = vunpack.c.l.b16 %v1563
    %v1661 = vunpack.c.h.b16 %v1563
    %v1662 = vunpack.c.l.b16 %v1564
    %v1663 = vunpack.c.l.b16 %v1565
    %v1664 = vunpack.c.h.b16 %v1565
    %v1665 = vunpack.c.l.b16 %v1566
    %v1666 = vunpack.c.l.b16 %v1567
    %v1667 = vunpack.c.h.b16 %v1567
    %v1668 = vunpack.c.l.b16 %v1568
    %v1669 = vpack.c.b16 %v1624, %v1621
    %v1670 = vpack.c.b16 %v1625, %v1622
    %v1671 = vpack.c.b16 %v1626, %v1623
    %v1672 = vpack.c.b16 %v1630, %v1627
    %v1673 = vpack.c.b16 %v1631, %v1628
    %v1674 = vpack.c.b16 %v1632, %v1629
    %v1675 = vpack.c.b16 %v1636, %v1633
    %v1676 = vpack.c.b16 %v1637, %v1634
    %v1677 = vpack.c.b16 %v1638, %v1635
    %v1678 = vpack.c.b16 %v1642, %v1639
    %v1679 = vpack.c.b16 %v1643, %v1640
    %v1680 = vpack.c.b16 %v1644, %v1641
    %v1681 = vpack.c.b16 %v1648, %v1645
    %v1682 = vpack.c.b16 %v1649, %v1646
    %v1683 = vpack.c.b16 %v1650, %v1647
    %v1684 = vpack.c.b16 %v1654, %v1651
    %v1685 = vpack.c.b16 %v1655, %v1652
    %v1686 = vpack.c.b16 %v1656, %v1653
    %v1687 = vpack.c.b16 %v1660, %v1657
    %v1688 = vpack.c.b16 %v1661, %v1658
    %v1689 = vpack.c.b16 %v1662, %v1659
    %v1690 = vpack.c.b16 %v1666, %v1663
    %v1691 = vpack.c.b16 %v1667, %v1664
    %v1692 = vpack.c.b16 %v1668, %v1665
    %1717 = vmatprep.subr.bf16.mxu0 %v1670
    %1718 = vmatpush1.bf16.msra.mxu0 %v1669
    %1719 = vmatprep.subr.bf16.mxu0 %v1673
    %1720 = vmatpush1.bf16.msra.mxu0 %v1672
    %1721 = vmatprep.subr.bf16.mxu0 %v1676
    %1722 = vmatpush1.bf16.msra.mxu0 %v1675
    %1723 = vmatprep.subr.bf16.mxu0 %v1679
    %1724 = vmatpush1.bf16.msra.mxu0 %v1678
    %1725 = vmatprep.subr.bf16.mxu0 %v1682
    %1726 = vmatpush1.bf16.msra.mxu0 %v1681
    %1727 = vmatprep.subr.bf16.mxu0 %v1685
    %1728 = vmatpush1.bf16.msra.mxu0 %v1684
    %1729 = vmatprep.subr.bf16.mxu0 %v1688
    %1730 = vmatpush1.bf16.msra.mxu0 %v1687
    %1731 = vmatprep.subr.bf16.mxu0 %v1691
    %1732 = vmatpush1.bf16.msra.mxu0 %v1690
    %1733 = vmatprep.subr.bf16.mxu0 0
    %1734 = vmatpush1.bf16.msra.mxu0 0
    %1735 = vmatprep.subr.bf16.mxu0 0
    %1736 = vmatpush1.bf16.msra.mxu0 0
    %1737 = vmatprep.subr.bf16.mxu0 0
    %1738 = vmatpush1.bf16.msra.mxu0 0
    %1739 = vmatprep.subr.bf16.mxu0 0
    %1740 = vmatpush1.bf16.msra.mxu0 0
    %1741 = vmatprep.subr.bf16.mxu0 0
    %1742 = vmatpush1.bf16.msra.mxu0 0
    %1743 = vmatprep.subr.bf16.mxu0 0
    %1744 = vmatpush1.bf16.msra.mxu0 0
    %1745 = vmatprep.subr.bf16.mxu0 0
    %1746 = vmatpush1.bf16.msra.mxu0 0
    %1747 = vmatprep.subr.bf16.mxu0 0
    %1748 = vmatpush1.bf16.msra.mxu0 0
    %1749 = vmatprep.mubr.bf16.mxu0 0
    %1750 = vmatmul.mubr.bf16.gmra.mrb[0].mxu0 %v1569
    %v1751 = vpop.f32.mrb[0].mxu0
    %v1752 = vadd.f32 %v1577, %v1751
    %v1753 = vpop.f32.mrb[0].mxu0
    %v1754 = vadd.f32 %v1581, %v1753
    %v1755 = vpop.f32.mrb[0].mxu0
    %v1756 = vadd.f32 %v1577, %v1755
    %v1757 = vpop.f32.mrb[0].mxu0
    %v1758 = vadd.f32 %v1581, %v1757
    %1759 = vmatprep.mubr.bf16.mxu0 0
    %1760 = vmatmul.mubr.bf16.gmra.mrb[0].mxu0 %v1570
    %v1761 = vpop.f32.mrb[0].mxu0
    %v1762 = vadd.f32 %v1577, %v1761
    %v1763 = vpop.f32.mrb[0].mxu0
    %v1764 = vadd.f32 %v1581, %v1763
    %v1765 = vpop.f32.mrb[0].mxu0
    %v1766 = vadd.f32 %v1577, %v1765
    %v1767 = vpop.f32.mrb[0].mxu0
    %v1768 = vadd.f32 %v1581, %v1767
    %1769 = vdwg.mxu0
    %1770 = vmatprep.subr.bf16.mxu0 0
    %1771 = vmatpush1.bf16.msra.mxu0 %v1671
    %1772 = vmatprep.subr.bf16.mxu0 0
    %1773 = vmatpush1.bf16.msra.mxu0 %v1674
    %1774 = vmatprep.subr.bf16.mxu0 0
    %1775 = vmatpush1.bf16.msra.mxu0 %v1677
    %1776 = vmatprep.subr.bf16.mxu0 0
    %1777 = vmatpush1.bf16.msra.mxu0 %v1680
    %1778 = vmatprep.subr.bf16.mxu0 0
    %1779 = vmatpush1.bf16.msra.mxu0 %v1683
    %1780 = vmatprep.subr.bf16.mxu0 0
    %1781 = vmatpush1.bf16.msra.mxu0 %v1686
    %1782 = vmatprep.subr.bf16.mxu0 0
    %1783 = vmatpush1.bf16.msra.mxu0 %v1689
    %1784 = vmatprep.subr.bf16.mxu0 0
    %1785 = vmatpush1.bf16.msra.mxu0 %v1692
    %1786 = vmatprep.subr.bf16.mxu0 0
    %1787 = vmatpush1.bf16.msra.mxu0 0
    %1788 = vmatprep.subr.bf16.mxu0 0
    %1789 = vmatpush1.bf16.msra.mxu0 0
    %1790 = vmatprep.subr.bf16.mxu0 0
    %1791 = vmatpush1.bf16.msra.mxu0 0
    %1792 = vmatprep.subr.bf16.mxu0 0
    %1793 = vmatpush1.bf16.msra.mxu0 0
    %1794 = vmatprep.subr.bf16.mxu0 0
    %1795 = vmatpush1.bf16.msra.mxu0 0
    %1796 = vmatprep.subr.bf16.mxu0 0
    %1797 = vmatpush1.bf16.msra.mxu0 0
    %1798 = vmatprep.subr.bf16.mxu0 0
    %1799 = vmatpush1.bf16.msra.mxu0 0
    %1800 = vmatprep.subr.bf16.mxu0 0
    %1801 = vmatpush1.bf16.msra.mxu0 0
    %1802 = vmatprep.mubr.bf16.mxu0 0
    %1803 = vmatmul.mubr.bf16.gmra.mrb[0].mxu0 %v1569
    %v1804 = vpop.f32.mrb[0].mxu0
    %v1805 = vadd.f32 %v1585, %v1804
    %v1806 = vpop.f32.mrb[0].mxu0
    %v1807 = vpop.f32.mrb[0].mxu0
    %v1808 = vadd.f32 %v1585, %v1807
    %v1809 = vpop.f32.mrb[0].mxu0
    %1810 = vmatprep.mubr.bf16.mxu0 0
    %1811 = vmatmul.mubr.bf16.gmra.mrb[0].mxu0 %v1570
    %v1812 = vpop.f32.mrb[0].mxu0
    %v1813 = vadd.f32 %v1585, %v1812
    %v1814 = vpop.f32.mrb[0].mxu0
    %v1815 = vpop.f32.mrb[0].mxu0
    %v1816 = vadd.f32 %v1585, %v1815
    %v1817 = vpop.f32.mrb[0].mxu0
    %1818 = vdwg.mxu0
    %v1819 = vmul.f32 %v1754, %v192
    %v1820 = vmul.f32 %v1758, %v192
    %v1821 = vmul.f32 %v1764, %v192
    %v1822 = vmul.f32 %v1768, %v192
    %v1823 = vmul.f32 %v1754, %v197
    %v1824 = vmul.f32 %v1758, %v197
    %v1825 = vmul.f32 %v1764, %v197
    %v1826 = vmul.f32 %v1768, %v197
    %v1827 = vmul.f32 %v1805, %v192
    %v1828 = vmul.f32 %v1808, %v192
    %v1829 = vmul.f32 %v1813, %v192
    %v1830 = vmul.f32 %v1816, %v192
    %v1831 = vmul.f32 %v1805, %v197
    %v1832 = vmul.f32 %v1808, %v197
    %v1833 = vmul.f32 %v1813, %v197
    %v1834 = vmul.f32 %v1816, %v197
    %1835 = vmatprep.subr.mxu0 0.0
    %1836 = vmatpush1.xpose.msra.mxu0 %v1819
    %1837 = vmatprep.subr.mxu0 0.0
    %1838 = vmatpush1.xpose.msra.mxu0 %v1820
    %1839 = vmatprep.subr.mxu0 0.0
    %1840 = vmatpush1.xpose.msra.mxu0 %v1823
    %1841 = vmatprep.subr.mxu0 0.0
    %1842 = vmatpush1.xpose.msra.mxu0 %v1824
    %1843 = vmatprep.subr.mxu0 0.0
    %1844 = vmatpush1.xpose.msra.mxu0 0.0
    %1845 = vmatprep.subr.mxu0 0.0
    %1846 = vmatpush1.xpose.msra.mxu0 0.0
    %1847 = vmatprep.subr.mxu0 0.0
    %1848 = vmatpush1.xpose.msra.mxu0 0.0
    %1849 = vmatprep.subr.mxu0 0.0
    %1850 = vmatpush1.xpose.msra.mxu0 0.0
    %1851 = vmatprep.subr.mxu0 0.0
    %1852 = vmatpush1.xpose.msra.mxu0 0.0
    %1853 = vmatprep.subr.mxu0 0.0
    %1854 = vmatpush1.xpose.msra.mxu0 0.0
    %1855 = vmatprep.subr.mxu0 0.0
    %1856 = vmatpush1.xpose.msra.mxu0 0.0
    %1857 = vmatprep.subr.mxu0 0.0
    %1858 = vmatpush1.xpose.msra.mxu0 0.0
    %1859 = vmatprep.subr.mxu0 0.0
    %1860 = vmatpush1.xpose.msra.mxu0 0.0
    %1861 = vmatprep.subr.mxu0 0.0
    %1862 = vmatpush1.xpose.msra.mxu0 0.0
    %1863 = vmatprep.subr.mxu0 0.0
    %1864 = vmatpush1.xpose.msra.mxu0 0.0
    %1865 = vmatprep.subr.mxu0 0.0
    %1866 = vmatpush1.xpose.msra.mxu0 0.0
    %1867 = vmatprep.subr.mxu0 0.0
    %1868 = vmatpush1.xpose.msra.mxu0 0.0
    %1869 = vmatprep.subr.mxu0 0.0
    %1870 = vmatpush1.xpose.msra.mxu0 0.0
    %1871 = vmatprep.subr.mxu0 0.0
    %1872 = vmatpush1.xpose.msra.mxu0 0.0
    %1873 = vmatprep.subr.mxu0 0.0
    %1874 = vmatpush1.xpose.msra.mxu0 0.0
    %1875 = vmatprep.subr.mxu0 0.0
    %1876 = vmatpush1.xpose.msra.mxu0 0.0
    %1877 = vmatprep.subr.mxu0 0.0
    %1878 = vmatpush1.xpose.msra.mxu0 0.0
    %1879 = vmatprep.subr.mxu0 0.0
    %1880 = vmatpush1.xpose.msra.mxu0 0.0
    %1881 = vmatprep.subr.mxu0 0.0
    %1882 = vmatpush1.xpose.msra.mxu0 0.0
    %1883 = vmatprep.subr.mxu0 0.0
    %1884 = vmatpush1.xpose.msra.mxu0 0.0
    %1885 = vmatprep.subr.mxu0 0.0
    %1886 = vmatpush1.xpose.msra.mxu0 0.0
    %1887 = vmatprep.subr.mxu0 0.0
    %1888 = vmatpush1.xpose.msra.mxu0 0.0
    %1889 = vmatprep.subr.mxu0 0.0
    %1890 = vmatpush1.xpose.msra.mxu0 0.0
    %1891 = vmatprep.subr.mxu0 0.0
    %1892 = vmatpush1.xpose.msra.mxu0 0.0
    %1893 = vmatprep.subr.mxu0 0.0
    %1894 = vmatpush1.xpose.msra.mxu0 0.0
    %1895 = vmatprep.subr.mxu0 0.0
    %1896 = vmatpush1.xpose.msra.mxu0 0.0
    %1897 = vmatprep.subr.mxu0 0.0
    %1898 = vmatpush1.xpose.msra.mxu0 0.0
    %1899 = vmatprep.mubr.f32.mxu0 0.0
    %1900 = vmatmul.mubr.f32.gmra.mrb[0].mxu0 %v1752
    %v1901 = vpop.f32.mrb[0].mxu0
    %v1902 = vadd.f32 %v123, %v1901
    %v1903 = vpop.f32.mrb[0].mxu0
    %1904 = vmatprep.mubr.f32.mxu0 0.0
    %1905 = vmatmul.mubr.f32.gmra.mrb[0].mxu0 %v1756
    %v1906 = vpop.f32.mrb[0].mxu0
    %v1907 = vadd.f32 %v124, %v1906
    %v1908 = vpop.f32.mrb[0].mxu0
    %1909 = vdwg.mxu0
    %1910 = vmatprep.subr.mxu0 0.0
    %1911 = vmatpush1.xpose.msra.mxu0 %v1821
    %1912 = vmatprep.subr.mxu0 0.0
    %1913 = vmatpush1.xpose.msra.mxu0 %v1822
    %1914 = vmatprep.subr.mxu0 0.0
    %1915 = vmatpush1.xpose.msra.mxu0 %v1825
    %1916 = vmatprep.subr.mxu0 0.0
    %1917 = vmatpush1.xpose.msra.mxu0 %v1826
    %1918 = vmatprep.subr.mxu0 0.0
    %1919 = vmatpush1.xpose.msra.mxu0 0.0
    %1920 = vmatprep.subr.mxu0 0.0
    %1921 = vmatpush1.xpose.msra.mxu0 0.0
    %1922 = vmatprep.subr.mxu0 0.0
    %1923 = vmatpush1.xpose.msra.mxu0 0.0
    %1924 = vmatprep.subr.mxu0 0.0
    %1925 = vmatpush1.xpose.msra.mxu0 0.0
    %1926 = vmatprep.subr.mxu0 0.0
    %1927 = vmatpush1.xpose.msra.mxu0 0.0
    %1928 = vmatprep.subr.mxu0 0.0
    %1929 = vmatpush1.xpose.msra.mxu0 0.0
    %1930 = vmatprep.subr.mxu0 0.0
    %1931 = vmatpush1.xpose.msra.mxu0 0.0
    %1932 = vmatprep.subr.mxu0 0.0
    %1933 = vmatpush1.xpose.msra.mxu0 0.0
    %1934 = vmatprep.subr.mxu0 0.0
    %1935 = vmatpush1.xpose.msra.mxu0 0.0
    %1936 = vmatprep.subr.mxu0 0.0
    %1937 = vmatpush1.xpose.msra.mxu0 0.0
    %1938 = vmatprep.subr.mxu0 0.0
    %1939 = vmatpush1.xpose.msra.mxu0 0.0
    %1940 = vmatprep.subr.mxu0 0.0
    %1941 = vmatpush1.xpose.msra.mxu0 0.0
    %1942 = vmatprep.subr.mxu0 0.0
    %1943 = vmatpush1.xpose.msra.mxu0 0.0
    %1944 = vmatprep.subr.mxu0 0.0
    %1945 = vmatpush1.xpose.msra.mxu0 0.0
    %1946 = vmatprep.subr.mxu0 0.0
    %1947 = vmatpush1.xpose.msra.mxu0 0.0
    %1948 = vmatprep.subr.mxu0 0.0
    %1949 = vmatpush1.xpose.msra.mxu0 0.0
    %1950 = vmatprep.subr.mxu0 0.0
    %1951 = vmatpush1.xpose.msra.mxu0 0.0
    %1952 = vmatprep.subr.mxu0 0.0
    %1953 = vmatpush1.xpose.msra.mxu0 0.0
    %1954 = vmatprep.subr.mxu0 0.0
    %1955 = vmatpush1.xpose.msra.mxu0 0.0
    %1956 = vmatprep.subr.mxu0 0.0
    %1957 = vmatpush1.xpose.msra.mxu0 0.0
    %1958 = vmatprep.subr.mxu0 0.0
    %1959 = vmatpush1.xpose.msra.mxu0 0.0
    %1960 = vmatprep.subr.mxu0 0.0
    %1961 = vmatpush1.xpose.msra.mxu0 0.0
    %1962 = vmatprep.subr.mxu0 0.0
    %1963 = vmatpush1.xpose.msra.mxu0 0.0
    %1964 = vmatprep.subr.mxu0 0.0
    %1965 = vmatpush1.xpose.msra.mxu0 0.0
    %1966 = vmatprep.subr.mxu0 0.0
    %1967 = vmatpush1.xpose.msra.mxu0 0.0
    %1968 = vmatprep.subr.mxu0 0.0
    %1969 = vmatpush1.xpose.msra.mxu0 0.0
    %1970 = vmatprep.subr.mxu0 0.0
    %1971 = vmatpush1.xpose.msra.mxu0 0.0
    %1972 = vmatprep.subr.mxu0 0.0
    %1973 = vmatpush1.xpose.msra.mxu0 0.0
    %1974 = vmatprep.mubr.f32.mxu0 0.0
    %1975 = vmatmul.mubr.f32.gmra.mrb[0].mxu0 %v1762
    %v1976 = vpop.f32.mrb[0].mxu0
    %v1977 = vadd.f32 %v125, %v1976
    %v1978 = vpop.f32.mrb[0].mxu0
    %1979 = vmatprep.mubr.f32.mxu0 0.0
    %1980 = vmatmul.mubr.f32.gmra.mrb[0].mxu0 %v1766
    %v1981 = vpop.f32.mrb[0].mxu0
    %v1982 = vadd.f32 %v126, %v1981
    %v1983 = vpop.f32.mrb[0].mxu0
    %1984 = vdwg.mxu0
    %v1985 = vsel %vm645, %v1902, -inf
    %1986 = vmax.xlane.f32.xlu0 %v1985
    %v1987 = vpop.xlane.xlu0 %1986
    %v1988 = vsel %vm645, %v1907, -inf
    %1989 = vmax.xlane.f32.xlu0 %v1988
    %v1990 = vpop.xlane.xlu0 %1989
    %v1991 = vsel %vm645, %v1977, -inf
    %1992 = vmax.xlane.f32.xlu0 %v1991
    %v1993 = vpop.xlane.xlu0 %1992
    %v1994 = vsel %vm645, %v1982, -inf
    %1995 = vmax.xlane.f32.xlu0 %v1994
    %v1996 = vpop.xlane.xlu0 %1995
    %v1997 = vsub.f32 %v1902, %v1987
    %v1998 = vsub.f32 %v1907, %v1990
    %v1999 = vsub.f32 %v1977, %v1993
    %v2000 = vsub.f32 %v1982, %v1996
    %v2001 = vmul.f32 %v1997, 1.442695
    %v2002 = vpow.pop %v2001
    %v2003 = vmul.f32 %v1998, 1.442695
    %v2004 = vpow.pop %v2003
    %v2005 = vmul.f32 %v1999, 1.442695
    %v2006 = vpow.pop %v2005
    %v2007 = vmul.f32 %v2000, 1.442695
    %v2008 = vpow.pop %v2007
    %v2009 = vsel %vm645, %v2002, 0.0
    %2010 = vadd.xlane.f32.xlu0 %v2009
    %v2011 = vpop.xlane.xlu0 %2010
    %v2012 = vsel %vm645, %v2004, 0.0
    %2013 = vadd.xlane.f32.xlu0 %v2012
    %v2014 = vpop.xlane.xlu0 %2013
    %v2015 = vsel %vm645, %v2006, 0.0
    %2016 = vadd.xlane.f32.xlu0 %v2015
    %v2017 = vpop.xlane.xlu0 %2016
    %v2018 = vsel %vm645, %v2008, 0.0
    %2019 = vadd.xlane.f32.xlu0 %v2018
    %v2020 = vpop.xlane.xlu0 %2019
    %v2021 = vrcp.pop %v2011
    %v2022 = vrcp.pop %v2014
    %v2023 = vrcp.pop %v2017
    %v2024 = vrcp.pop %v2020
    %v2025 = vmul.f32 %v2002, %v2021
    %v2026 = vmul.f32 %v2004, %v2022
    %v2027 = vmul.f32 %v2006, %v2023
    %v2028 = vmul.f32 %v2008, %v2024
    %v2029 = vsel %vm690, %v1902, -inf
    %2030 = vmax.xlane.f32.xlu0 %v2029
    %v2031 = vpop.xlane.xlu0 %2030
    %v2032 = vsel %vm690, %v1907, -inf
    %2033 = vmax.xlane.f32.xlu0 %v2032
    %v2034 = vpop.xlane.xlu0 %2033
    %v2035 = vsel %vm690, %v1977, -inf
    %2036 = vmax.xlane.f32.xlu0 %v2035
    %v2037 = vpop.xlane.xlu0 %2036
    %v2038 = vsel %vm690, %v1982, -inf
    %2039 = vmax.xlane.f32.xlu0 %v2038
    %v2040 = vpop.xlane.xlu0 %2039
    %v2041 = vsub.f32 %v1902, %v2031
    %v2042 = vsub.f32 %v1907, %v2034
    %v2043 = vsub.f32 %v1977, %v2037
    %v2044 = vsub.f32 %v1982, %v2040
    %v2045 = vmul.f32 %v2041, 1.442695
    %v2046 = vpow.pop %v2045
    %v2047 = vmul.f32 %v2042, 1.442695
    %v2048 = vpow.pop %v2047
    %v2049 = vmul.f32 %v2043, 1.442695
    %v2050 = vpow.pop %v2049
    %v2051 = vmul.f32 %v2044, 1.442695
    %v2052 = vpow.pop %v2051
    %2057 = vrot.lane.b32.xlu0 %v2046, 112
    %v2058 = vpop.permute.xlu0 %2057
    %2059 = vrot.lane.b32.xlu0 %v2048, 112
    %v2060 = vpop.permute.xlu0 %2059
    %2061 = vrot.lane.b32.xlu0 %v2050, 112
    %v2062 = vpop.permute.xlu0 %2061
    %2063 = vrot.lane.b32.xlu0 %v2052, 112
    %v2064 = vpop.permute.xlu0 %2063
    %v2069 = vsel %vm645, %v2058, 0.0
    %2070 = vadd.xlane.f32.xlu0 %v2069
    %v2071 = vpop.xlane.xlu0 %2070
    %v2072 = vsel %vm645, %v2060, 0.0
    %2073 = vadd.xlane.f32.xlu0 %v2072
    %v2074 = vpop.xlane.xlu0 %2073
    %v2075 = vsel %vm645, %v2062, 0.0
    %2076 = vadd.xlane.f32.xlu0 %v2075
    %v2077 = vpop.xlane.xlu0 %2076
    %v2078 = vsel %vm645, %v2064, 0.0
    %2079 = vadd.xlane.f32.xlu0 %v2078
    %v2080 = vpop.xlane.xlu0 %2079
    %v2081 = vrcp.pop %v2071
    %v2082 = vrcp.pop %v2074
    %v2083 = vrcp.pop %v2077
    %v2084 = vrcp.pop %v2080
    %v2085 = vmul.f32 %v2046, %v2081
    %v2086 = vmul.f32 %v2048, %v2082
    %v2087 = vmul.f32 %v2050, %v2083
    %v2088 = vmul.f32 %v2052, %v2084
    %v2089 = vsel %vm645, %v2025, %v2085
    %v2090 = vsel %vm645, %v2026, %v2086
    %v2091 = vsel %vm645, %v2027, %v2087
    %v2092 = vsel %vm645, %v2028, %v2088
    %v2094 = vsel %vm755, %v2089, 0
    %v2097 = vsel %vm755, %v2090, 0
    %2099 = vmatprep.subr.mxu0 0.0
    %2100 = vmatpush1.msra.mxu0 %v1827
    %2101 = vmatprep.subr.mxu0 0.0
    %2102 = vmatpush1.msra.mxu0 %v1828
    %2103 = vmatprep.subr.mxu0 0.0
    %2104 = vmatpush1.msra.mxu0 %v1831
    %2105 = vmatprep.subr.mxu0 0.0
    %2106 = vmatpush1.msra.mxu0 %v1832
    %2107 = vmatprep.subr.mxu0 0.0
    %2108 = vmatpush1.msra.mxu0 0.0
    %2109 = vmatprep.subr.mxu0 0.0
    %2110 = vmatpush1.msra.mxu0 0.0
    %2111 = vmatprep.subr.mxu0 0.0
    %2112 = vmatpush1.msra.mxu0 0.0
    %2113 = vmatprep.subr.mxu0 0.0
    %2114 = vmatpush1.msra.mxu0 0.0
    %2115 = vmatprep.subr.mxu0 0.0
    %2116 = vmatpush1.msra.mxu0 0.0
    %2117 = vmatprep.subr.mxu0 0.0
    %2118 = vmatpush1.msra.mxu0 0.0
    %2119 = vmatprep.subr.mxu0 0.0
    %2120 = vmatpush1.msra.mxu0 0.0
    %2121 = vmatprep.subr.mxu0 0.0
    %2122 = vmatpush1.msra.mxu0 0.0
    %2123 = vmatprep.subr.mxu0 0.0
    %2124 = vmatpush1.msra.mxu0 0.0
    %2125 = vmatprep.subr.mxu0 0.0
    %2126 = vmatpush1.msra.mxu0 0.0
    %2127 = vmatprep.subr.mxu0 0.0
    %2128 = vmatpush1.msra.mxu0 0.0
    %2129 = vmatprep.subr.mxu0 0.0
    %2130 = vmatpush1.msra.mxu0 0.0
    %2131 = vmatprep.subr.mxu0 0.0
    %2132 = vmatpush1.msra.mxu0 0.0
    %2133 = vmatprep.subr.mxu0 0.0
    %2134 = vmatpush1.msra.mxu0 0.0
    %2135 = vmatprep.subr.mxu0 0.0
    %2136 = vmatpush1.msra.mxu0 0.0
    %2137 = vmatprep.subr.mxu0 0.0
    %2138 = vmatpush1.msra.mxu0 0.0
    %2139 = vmatprep.subr.mxu0 0.0
    %2140 = vmatpush1.msra.mxu0 0.0
    %2141 = vmatprep.subr.mxu0 0.0
    %2142 = vmatpush1.msra.mxu0 0.0
    %2143 = vmatprep.subr.mxu0 0.0
    %2144 = vmatpush1.msra.mxu0 0.0
    %2145 = vmatprep.subr.mxu0 0.0
    %2146 = vmatpush1.msra.mxu0 0.0
    %2147 = vmatprep.subr.mxu0 0.0
    %2148 = vmatpush1.msra.mxu0 0.0
    %2149 = vmatprep.subr.mxu0 0.0
    %2150 = vmatpush1.msra.mxu0 0.0
    %2151 = vmatprep.subr.mxu0 0.0
    %2152 = vmatpush1.msra.mxu0 0.0
    %2153 = vmatprep.subr.mxu0 0.0
    %2154 = vmatpush1.msra.mxu0 0.0
    %2155 = vmatprep.subr.mxu0 0.0
    %2156 = vmatpush1.msra.mxu0 0.0
    %2157 = vmatprep.subr.mxu0 0.0
    %2158 = vmatpush1.msra.mxu0 0.0
    %2159 = vmatprep.subr.mxu0 0.0
    %2160 = vmatpush1.msra.mxu0 0.0
    %2161 = vmatprep.subr.mxu0 0.0
    %2162 = vmatpush1.msra.mxu0 0.0
    %2163 = vmatprep.mubr.f32.mxu0 0.0
    %2164 = vmatmul.mubr.f32.gmra.mrb[0].mxu0 %v2094
    %v2165 = vpop.f32.mrb[0].mxu0
    %v2166 = vadd.f32 0.0, %v2165
    %v2167 = vpop.f32.mrb[0].mxu0
    %2168 = vmatprep.mubr.f32.mxu0 0.0
    %2169 = vmatmul.mubr.f32.gmra.mrb[0].mxu0 %v2097
    %v2170 = vpop.f32.mrb[0].mxu0
    %v2171 = vadd.f32 0.0, %v2170
    %v2172 = vpop.f32.mrb[0].mxu0
    %2173 = vdwg.mxu0
    %v2175 = vsel %vm755, %v2091, 0
    %v2178 = vsel %vm755, %v2092, 0
    %2180 = vmatprep.subr.mxu0 0.0
    %2181 = vmatpush1.msra.mxu0 %v1829
    %2182 = vmatprep.subr.mxu0 0.0
    %2183 = vmatpush1.msra.mxu0 %v1830
    %2184 = vmatprep.subr.mxu0 0.0
    %2185 = vmatpush1.msra.mxu0 %v1833
    %2186 = vmatprep.subr.mxu0 0.0
    %2187 = vmatpush1.msra.mxu0 %v1834
    %2188 = vmatprep.subr.mxu0 0.0
    %2189 = vmatpush1.msra.mxu0 0.0
    %2190 = vmatprep.subr.mxu0 0.0
    %2191 = vmatpush1.msra.mxu0 0.0
    %2192 = vmatprep.subr.mxu0 0.0
    %2193 = vmatpush1.msra.mxu0 0.0
    %2194 = vmatprep.subr.mxu0 0.0
    %2195 = vmatpush1.msra.mxu0 0.0
    %2196 = vmatprep.subr.mxu0 0.0
    %2197 = vmatpush1.msra.mxu0 0.0
    %2198 = vmatprep.subr.mxu0 0.0
    %2199 = vmatpush1.msra.mxu0 0.0
    %2200 = vmatprep.subr.mxu0 0.0
    %2201 = vmatpush1.msra.mxu0 0.0
    %2202 = vmatprep.subr.mxu0 0.0
    %2203 = vmatpush1.msra.mxu0 0.0
    %2204 = vmatprep.subr.mxu0 0.0
    %2205 = vmatpush1.msra.mxu0 0.0
    %2206 = vmatprep.subr.mxu0 0.0
    %2207 = vmatpush1.msra.mxu0 0.0
    %2208 = vmatprep.subr.mxu0 0.0
    %2209 = vmatpush1.msra.mxu0 0.0
    %2210 = vmatprep.subr.mxu0 0.0
    %2211 = vmatpush1.msra.mxu0 0.0
    %2212 = vmatprep.subr.mxu0 0.0
    %2213 = vmatpush1.msra.mxu0 0.0
    %2214 = vmatprep.subr.mxu0 0.0
    %2215 = vmatpush1.msra.mxu0 0.0
    %2216 = vmatprep.subr.mxu0 0.0
    %2217 = vmatpush1.msra.mxu0 0.0
    %2218 = vmatprep.subr.mxu0 0.0
    %2219 = vmatpush1.msra.mxu0 0.0
    %2220 = vmatprep.subr.mxu0 0.0
    %2221 = vmatpush1.msra.mxu0 0.0
    %2222 = vmatprep.subr.mxu0 0.0
    %2223 = vmatpush1.msra.mxu0 0.0
    %2224 = vmatprep.subr.mxu0 0.0
    %2225 = vmatpush1.msra.mxu0 0.0
    %2226 = vmatprep.subr.mxu0 0.0
    %2227 = vmatpush1.msra.mxu0 0.0
    %2228 = vmatprep.subr.mxu0 0.0
    %2229 = vmatpush1.msra.mxu0 0.0
    %2230 = vmatprep.subr.mxu0 0.0
    %2231 = vmatpush1.msra.mxu0 0.0
    %2232 = vmatprep.subr.mxu0 0.0
    %2233 = vmatpush1.msra.mxu0 0.0
    %2234 = vmatprep.subr.mxu0 0.0
    %2235 = vmatpush1.msra.mxu0 0.0
    %2236 = vmatprep.subr.mxu0 0.0
    %2237 = vmatpush1.msra.mxu0 0.0
    %2238 = vmatprep.subr.mxu0 0.0
    %2239 = vmatpush1.msra.mxu0 0.0
    %2240 = vmatprep.subr.mxu0 0.0
    %2241 = vmatpush1.msra.mxu0 0.0
    %2242 = vmatprep.subr.mxu0 0.0
    %2243 = vmatpush1.msra.mxu0 0.0
    %2244 = vmatprep.mubr.f32.mxu0 0.0
    %2245 = vmatmul.mubr.f32.gmra.mrb[0].mxu0 %v2175
    %v2246 = vpop.f32.mrb[0].mxu0
    %v2247 = vadd.f32 0.0, %v2246
    %v2248 = vpop.f32.mrb[0].mxu0
    %2249 = vmatprep.mubr.f32.mxu0 0.0
    %2250 = vmatmul.mubr.f32.gmra.mrb[0].mxu0 %v2178
    %v2251 = vpop.f32.mrb[0].mxu0
    %v2252 = vadd.f32 0.0, %v2251
    %v2253 = vpop.f32.mrb[0].mxu0
    %2254 = vdwg.mxu0
    %v2255 = vpack.c.bf16 %v2171, %v2166
    %v2256 = vpack.c.bf16 %v2252, %v2247
    %v2257 = vld [vmem:[#allocation13 + $0x19] ss:$0 sm:$0xff]
    %v2258 = vunpack.c.h.b16 %v1538
    %v2259 = vunpack.c.h.b16 %v1540
    %v2260 = vunpack.c.h.b16 %v1542
    %v2261 = vunpack.c.h.b16 %v1544
    %v2262 = vunpack.c.h.b16 %v1546
    %v2263 = vunpack.c.h.b16 %v1548
    %v2264 = vunpack.c.h.b16 %v1550
    %v2265 = vunpack.c.h.b16 %v1552
    %v2266 = vunpack.c.h.b16 %v1554
    %v2267 = vunpack.c.h.b16 %v1556
    %v2268 = vunpack.c.h.b16 %v1558
    %v2269 = vunpack.c.h.b16 %v1560
    %v2270 = vunpack.c.h.b16 %v1562
    %v2271 = vunpack.c.h.b16 %v1564
    %v2272 = vunpack.c.h.b16 %v1566
    %v2273 = vunpack.c.h.b16 %v1568
    %v2274 = vpack.c.b16 %v2259, %v2258
    %v2275 = vpack.c.b16 %v2261, %v2260
    %v2276 = vpack.c.b16 %v2263, %v2262
    %v2277 = vpack.c.b16 %v2265, %v2264
    %v2278 = vpack.c.b16 %v2267, %v2266
    %v2279 = vpack.c.b16 %v2269, %v2268
    %v2280 = vpack.c.b16 %v2271, %v2270
    %v2281 = vpack.c.b16 %v2273, %v2272
    %2290 = vmatprep.subr.bf16.mxu0 0
    %2291 = vmatpush1.bf16.msra.mxu0 %v2274
    %2292 = vmatprep.subr.bf16.mxu0 0
    %2293 = vmatpush1.bf16.msra.mxu0 %v2275
    %2294 = vmatprep.subr.bf16.mxu0 0
    %2295 = vmatpush1.bf16.msra.mxu0 %v2276
    %2296 = vmatprep.subr.bf16.mxu0 0
    %2297 = vmatpush1.bf16.msra.mxu0 %v2277
    %2298 = vmatprep.subr.bf16.mxu0 0
    %2299 = vmatpush1.bf16.msra.mxu0 %v2278
    %2300 = vmatprep.subr.bf16.mxu0 0
    %2301 = vmatpush1.bf16.msra.mxu0 %v2279
    %2302 = vmatprep.subr.bf16.mxu0 0
    %2303 = vmatpush1.bf16.msra.mxu0 %v2280
    %2304 = vmatprep.subr.bf16.mxu0 0
    %2305 = vmatpush1.bf16.msra.mxu0 %v2281
    %2306 = vmatprep.subr.bf16.mxu0 0
    %2307 = vmatpush1.bf16.msra.mxu0 0
    %2308 = vmatprep.subr.bf16.mxu0 0
    %2309 = vmatpush1.bf16.msra.mxu0 0
    %2310 = vmatprep.subr.bf16.mxu0 0
    %2311 = vmatpush1.bf16.msra.mxu0 0
    %2312 = vmatprep.subr.bf16.mxu0 0
    %2313 = vmatpush1.bf16.msra.mxu0 0
    %2314 = vmatprep.subr.bf16.mxu0 0
    %2315 = vmatpush1.bf16.msra.mxu0 0
    %2316 = vmatprep.subr.bf16.mxu0 0
    %2317 = vmatpush1.bf16.msra.mxu0 0
    %2318 = vmatprep.subr.bf16.mxu0 0
    %2319 = vmatpush1.bf16.msra.mxu0 0
    %2320 = vmatprep.subr.bf16.mxu0 0
    %2321 = vmatpush1.bf16.msra.mxu0 0
    %2322 = vmatprep.mubr.bf16.mxu0 0
    %2323 = vmatmul.mubr.bf16.gmra.mrb[0].mxu0 %v2255
    %v2324 = vpop.f32.mrb[0].mxu0
    %v2325 = vadd.f32 %v2257, %v2324
    %v2326 = vpop.f32.mrb[0].mxu0
    %v2327 = vpop.f32.mrb[0].mxu0
    %v2328 = vadd.f32 %v2257, %v2327
    %v2329 = vpop.f32.mrb[0].mxu0
    %2330 = vmatprep.mubr.bf16.mxu0 0
    %2331 = vmatmul.mubr.bf16.gmra.mrb[0].mxu0 %v2256
    %v2332 = vpop.f32.mrb[0].mxu0
    %v2333 = vadd.f32 %v2257, %v2332
    %v2334 = vpop.f32.mrb[0].mxu0
    %v2335 = vpop.f32.mrb[0].mxu0
    %v2336 = vadd.f32 %v2257, %v2335
    %v2337 = vpop.f32.mrb[0].mxu0
    %2338 = vdwg.mxu0
    %v2339 = vadd.f32 %v1532, %v2325
    %v2340 = vadd.f32 %v1533, %v2328
    %v2341 = vadd.f32 %v1534, %v2333
    %v2342 = vadd.f32 %v1535, %v2336
    %v2343 = vld [vmem:[#allocation13 + $0x1a] ss:$0 sm:$0xff]
    %v2344 = vld [vmem:[#allocation13 + $0x1b] ss:$0 sm:$0xff]
    %2345 = vadd.xlane.f32.xlu0 %v2339
    %v2346 = vpop.xlane.xlu0 %2345
    %2347 = vadd.xlane.f32.xlu0 %v2340
    %v2348 = vpop.xlane.xlu0 %2347
    %2349 = vadd.xlane.f32.xlu0 %v2341
    %v2350 = vpop.xlane.xlu0 %2349
    %2351 = vadd.xlane.f32.xlu0 %v2342
    %v2352 = vpop.xlane.xlu0 %2351
    %v2353 = vmul.f32 %v2346, %v141
    %v2354 = vmul.f32 %v2348, %v141
    %v2355 = vmul.f32 %v2350, %v141
    %v2356 = vmul.f32 %v2352, %v141
    %v2357 = vsub.f32 %v2339, %v2353
    %v2358 = vsub.f32 %v2340, %v2354
    %v2359 = vsub.f32 %v2341, %v2355
    %v2360 = vsub.f32 %v2342, %v2356
    %v2361 = vmul.f32 %v2357, %v2357
    %v2362 = vmul.f32 %v2358, %v2358
    %v2363 = vmul.f32 %v2359, %v2359
    %v2364 = vmul.f32 %v2360, %v2360
    %2365 = vadd.xlane.f32.xlu0 %v2361
    %v2366 = vpop.xlane.xlu0 %2365
    %2367 = vadd.xlane.f32.xlu0 %v2362
    %v2368 = vpop.xlane.xlu0 %2367
    %2369 = vadd.xlane.f32.xlu0 %v2363
    %v2370 = vpop.xlane.xlu0 %2369
    %2371 = vadd.xlane.f32.xlu0 %v2364
    %v2372 = vpop.xlane.xlu0 %2371
    %v2373 = vmul.f32 %v2366, %v141
    %v2374 = vmul.f32 %v2368, %v141
    %v2375 = vmul.f32 %v2370, %v141
    %v2376 = vmul.f32 %v2372, %v141
    %v2377 = vadd.f32 %v2373, 1e-12
    %v2378 = vadd.f32 %v2374, 1e-12
    %v2379 = vadd.f32 %v2375, 1e-12
    %v2380 = vadd.f32 %v2376, 1e-12
    %v2381 = vrsqrt.pop %v2377
    %v2382 = vrsqrt.pop %v2378
    %v2383 = vrsqrt.pop %v2379
    %v2384 = vrsqrt.pop %v2380
    %v2385 = vmul.f32 %v2357, %v2381
    %v2386 = vmul.f32 %v2358, %v2382
    %v2387 = vmul.f32 %v2359, %v2383
    %v2388 = vmul.f32 %v2360, %v2384
    %v2389 = vmul.f32 %v2385, %v2343
    %v2390 = vmul.f32 %v2386, %v2343
    %v2391 = vmul.f32 %v2387, %v2343
    %v2392 = vmul.f32 %v2388, %v2343
    %v2393 = vadd.f32 %v2389, %v2344
    %v2394 = vadd.f32 %v2390, %v2344
    %v2395 = vadd.f32 %v2391, %v2344
    %v2396 = vadd.f32 %v2392, %v2344
    %v2397 = vpack.c.bf16 %v2394, %v2393
    %v2398 = vpack.c.bf16 %v2396, %v2395
    %s2399 = scalar_lea.vmem [#allocation8], 128
    %v2400 = vld [vmem:[%s2399] sm:$0xff]
    %v2401 = vld [vmem:[%s2399 + $0x8] sm:$0xff]
    %v2402 = vld [vmem:[%s2399 + $0x10] sm:$0xff]
    %v2403 = vld [vmem:[%s2399 + $0x18] sm:$0xff]
    %v2404 = vld [vmem:[%s2399 + $0x20] sm:$0xff]
    %v2405 = vld [vmem:[%s2399 + $0x28] sm:$0xff]
    %v2406 = vld [vmem:[%s2399 + $0x30] sm:$0xff]
    %v2407 = vld [vmem:[%s2399 + $0x38] sm:$0xff]
    %v2408 = vld [vmem:[%s2399 + $0x40] sm:$0xff]
    %v2409 = vld [vmem:[%s2399 + $0x48] sm:$0xff]
    %v2410 = vld [vmem:[%s2399 + $0x50] sm:$0xff]
    %v2411 = vld [vmem:[%s2399 + $0x58] sm:$0xff]
    %v2412 = vld [vmem:[%s2399 + $0x60] sm:$0xff]
    %v2413 = vld [vmem:[%s2399 + $0x68] sm:$0xff]
    %v2414 = vld [vmem:[%s2399 + $0x70] sm:$0xff]
    %v2415 = vld [vmem:[%s2399 + $0x78] sm:$0xff]
    %s2416 = scalar_lea.vmem [#allocation13], 28
    %v2417 = vld [vmem:[%s2416] ss:$8 sm:$0x3]
    %v2419 = vlaneseq
    %v2420 = vshrl.u32 %v2419, 7
    %v2421 = vsub.s32 0, %v2420
    %v2422 = vrot.slane %v2417, %v2421
    %v2423 = vlaneseq
    %v2424 = vshrl.u32 %v2423, 7
    %v2425 = vsub.s32 1, %v2424
    %v2426 = vrot.slane %v2417, %v2425
    %v2445 = vunpack.c.l.b16 %v2400
    %v2446 = vunpack.c.h.b16 %v2400
    %v2447 = vunpack.c.l.b16 %v2401
    %v2448 = vunpack.c.h.b16 %v2401
    %v2449 = vunpack.c.l.b16 %v2402
    %v2450 = vunpack.c.h.b16 %v2402
    %v2451 = vunpack.c.l.b16 %v2403
    %v2452 = vunpack.c.h.b16 %v2403
    %v2453 = vunpack.c.l.b16 %v2404
    %v2454 = vunpack.c.h.b16 %v2404
    %v2455 = vunpack.c.l.b16 %v2405
    %v2456 = vunpack.c.h.b16 %v2405
    %v2457 = vunpack.c.l.b16 %v2406
    %v2458 = vunpack.c.h.b16 %v2406
    %v2459 = vunpack.c.l.b16 %v2407
    %v2460 = vunpack.c.h.b16 %v2407
    %v2461 = vunpack.c.l.b16 %v2408
    %v2462 = vunpack.c.h.b16 %v2408
    %v2463 = vunpack.c.l.b16 %v2409
    %v2464 = vunpack.c.h.b16 %v2409
    %v2465 = vunpack.c.l.b16 %v2410
    %v2466 = vunpack.c.h.b16 %v2410
    %v2467 = vunpack.c.l.b16 %v2411
    %v2468 = vunpack.c.h.b16 %v2411
    %v2469 = vunpack.c.l.b16 %v2412
    %v2470 = vunpack.c.h.b16 %v2412
    %v2471 = vunpack.c.l.b16 %v2413
    %v2472 = vunpack.c.h.b16 %v2413
    %v2473 = vunpack.c.l.b16 %v2414
    %v2474 = vunpack.c.h.b16 %v2414
    %v2475 = vunpack.c.l.b16 %v2415
    %v2476 = vunpack.c.h.b16 %v2415
    %v2477 = vpack.c.b16 %v2447, %v2445
    %v2478 = vpack.c.b16 %v2448, %v2446
    %v2479 = vpack.c.b16 %v2451, %v2449
    %v2480 = vpack.c.b16 %v2452, %v2450
    %v2481 = vpack.c.b16 %v2455, %v2453
    %v2482 = vpack.c.b16 %v2456, %v2454
    %v2483 = vpack.c.b16 %v2459, %v2457
    %v2484 = vpack.c.b16 %v2460, %v2458
    %v2485 = vpack.c.b16 %v2463, %v2461
    %v2486 = vpack.c.b16 %v2464, %v2462
    %v2487 = vpack.c.b16 %v2467, %v2465
    %v2488 = vpack.c.b16 %v2468, %v2466
    %v2489 = vpack.c.b16 %v2471, %v2469
    %v2490 = vpack.c.b16 %v2472, %v2470
    %v2491 = vpack.c.b16 %v2475, %v2473
    %v2492 = vpack.c.b16 %v2476, %v2474
    %2509 = vmatprep.subr.bf16.mxu0 %v2478
    %2510 = vmatpush1.bf16.msra.mxu0 %v2477
    %2511 = vmatprep.subr.bf16.mxu0 %v2480
    %2512 = vmatpush1.bf16.msra.mxu0 %v2479
    %2513 = vmatprep.subr.bf16.mxu0 %v2482
    %2514 = vmatpush1.bf16.msra.mxu0 %v2481
    %2515 = vmatprep.subr.bf16.mxu0 %v2484
    %2516 = vmatpush1.bf16.msra.mxu0 %v2483
    %2517 = vmatprep.subr.bf16.mxu0 %v2486
    %2518 = vmatpush1.bf16.msra.mxu0 %v2485
    %2519 = vmatprep.subr.bf16.mxu0 %v2488
    %2520 = vmatpush1.bf16.msra.mxu0 %v2487
    %2521 = vmatprep.subr.bf16.mxu0 %v2490
    %2522 = vmatpush1.bf16.msra.mxu0 %v2489
    %2523 = vmatprep.subr.bf16.mxu0 %v2492
    %2524 = vmatpush1.bf16.msra.mxu0 %v2491
    %2525 = vmatprep.subr.bf16.mxu0 0
    %2526 = vmatpush1.bf16.msra.mxu0 0
    %2527 = vmatprep.subr.bf16.mxu0 0
    %2528 = vmatpush1.bf16.msra.mxu0 0
    %2529 = vmatprep.subr.bf16.mxu0 0
    %2530 = vmatpush1.bf16.msra.mxu0 0
    %2531 = vmatprep.subr.bf16.mxu0 0
    %2532 = vmatpush1.bf16.msra.mxu0 0
    %2533 = vmatprep.subr.bf16.mxu0 0
    %2534 = vmatpush1.bf16.msra.mxu0 0
    %2535 = vmatprep.subr.bf16.mxu0 0
    %2536 = vmatpush1.bf16.msra.mxu0 0
    %2537 = vmatprep.subr.bf16.mxu0 0
    %2538 = vmatpush1.bf16.msra.mxu0 0
    %2539 = vmatprep.subr.bf16.mxu0 0
    %2540 = vmatpush1.bf16.msra.mxu0 0
    %2541 = vmatprep.mubr.bf16.mxu0 0
    %2542 = vmatmul.mubr.bf16.gmra.mrb[0].mxu0 %v2397
    %v2543 = vpop.f32.mrb[0].mxu0
    %v2544 = vadd.f32 %v2422, %v2543
    %v2545 = vpop.f32.mrb[0].mxu0
    %v2546 = vadd.f32 %v2426, %v2545
    %v2547 = vpop.f32.mrb[0].mxu0
    %v2548 = vadd.f32 %v2422, %v2547
    %v2549 = vpop.f32.mrb[0].mxu0
    %v2550 = vadd.f32 %v2426, %v2549
    %2551 = vmatprep.mubr.bf16.mxu0 0
    %2552 = vmatmul.mubr.bf16.gmra.mrb[0].mxu0 %v2398
    %v2553 = vpop.f32.mrb[0].mxu0
    %v2554 = vadd.f32 %v2422, %v2553
    %v2555 = vpop.f32.mrb[0].mxu0
    %v2556 = vadd.f32 %v2426, %v2555
    %v2557 = vpop.f32.mrb[0].mxu0
    %v2558 = vadd.f32 %v2422, %v2557
    %v2559 = vpop.f32.mrb[0].mxu0
    %v2560 = vadd.f32 %v2426, %v2559
    %2561 = vdwg.mxu0
    %v2562 = vmul.f32 %v2544, 0.5
    %v2563 = vmul.f32 %v2546, 0.5
    %v2564 = vmul.f32 %v2548, 0.5
    %v2565 = vmul.f32 %v2550, 0.5
    %v2566 = vmul.f32 %v2554, 0.5
    %v2567 = vmul.f32 %v2556, 0.5
    %v2568 = vmul.f32 %v2558, 0.5
    %v2569 = vmul.f32 %v2560, 0.5
    %v2570 = vmul.f32 %v2544, 0.044715
    %v2571 = vmul.f32 %v2546, 0.044715
    %v2572 = vmul.f32 %v2548, 0.044715
    %v2573 = vmul.f32 %v2550, 0.044715
    %v2574 = vmul.f32 %v2554, 0.044715
    %v2575 = vmul.f32 %v2556, 0.044715
    %v2576 = vmul.f32 %v2558, 0.044715
    %v2577 = vmul.f32 %v2560, 0.044715
    %v2578 = vmul.f32 %v2570, %v2544
    %v2579 = vmul.f32 %v2571, %v2546
    %v2580 = vmul.f32 %v2572, %v2548
    %v2581 = vmul.f32 %v2573, %v2550
    %v2582 = vmul.f32 %v2574, %v2554
    %v2583 = vmul.f32 %v2575, %v2556
    %v2584 = vmul.f32 %v2576, %v2558
    %v2585 = vmul.f32 %v2577, %v2560
    %v2586 = vmul.f32 %v2578, %v2544
    %v2587 = vmul.f32 %v2579, %v2546
    %v2588 = vmul.f32 %v2580, %v2548
    %v2589 = vmul.f32 %v2581, %v2550
    %v2590 = vmul.f32 %v2582, %v2554
    %v2591 = vmul.f32 %v2583, %v2556
    %v2592 = vmul.f32 %v2584, %v2558
    %v2593 = vmul.f32 %v2585, %v2560
    %v2594 = vadd.f32 %v2544, %v2586
    %v2595 = vadd.f32 %v2546, %v2587
    %v2596 = vadd.f32 %v2548, %v2588
    %v2597 = vadd.f32 %v2550, %v2589
    %v2598 = vadd.f32 %v2554, %v2590
    %v2599 = vadd.f32 %v2556, %v2591
    %v2600 = vadd.f32 %v2558, %v2592
    %v2601 = vadd.f32 %v2560, %v2593
    %v2602 = vmul.f32 %v2594, 0.7978846
    %v2603 = vmul.f32 %v2595, 0.7978846
    %v2604 = vmul.f32 %v2596, 0.7978846
    %v2605 = vmul.f32 %v2597, 0.7978846
    %v2606 = vmul.f32 %v2598, 0.7978846
    %v2607 = vmul.f32 %v2599, 0.7978846
    %v2608 = vmul.f32 %v2600, 0.7978846
    %v2609 = vmul.f32 %v2601, 0.7978846
    %v2610 = vtanh.pop %v2602
    %v2611 = vtanh.pop %v2603
    %v2612 = vtanh.pop %v2604
    %v2613 = vtanh.pop %v2605
    %v2614 = vtanh.pop %v2606
    %v2615 = vtanh.pop %v2607
    %v2616 = vtanh.pop %v2608
    %v2617 = vtanh.pop %v2609
    %v2618 = vadd.f32 %v2610, 1.0
    %v2619 = vadd.f32 %v2611, 1.0
    %v2620 = vadd.f32 %v2612, 1.0
    %v2621 = vadd.f32 %v2613, 1.0
    %v2622 = vadd.f32 %v2614, 1.0
    %v2623 = vadd.f32 %v2615, 1.0
    %v2624 = vadd.f32 %v2616, 1.0
    %v2625 = vadd.f32 %v2617, 1.0
    %v2626 = vmul.f32 %v2562, %v2618
    %v2627 = vmul.f32 %v2563, %v2619
    %v2628 = vmul.f32 %v2564, %v2620
    %v2629 = vmul.f32 %v2565, %v2621
    %v2630 = vmul.f32 %v2566, %v2622
    %v2631 = vmul.f32 %v2567, %v2623
    %v2632 = vmul.f32 %v2568, %v2624
    %v2633 = vmul.f32 %v2569, %v2625
    %v2634 = vpack.c.bf16 %v2628, %v2626
    %v2635 = vpack.c.bf16 %v2629, %v2627
    %v2636 = vpack.c.bf16 %v2632, %v2630
    %v2637 = vpack.c.bf16 %v2633, %v2631
    %s2638 = scalar_lea.vmem [#allocation10], 128
    %v2639 = vld [vmem:[%s2638] sm:$0xf]
    %v2640 = vld [vmem:[%s2638 + $0x4] sm:$0xf]
    %v2641 = vld [vmem:[%s2638 + $0x8] sm:$0xf]
    %v2642 = vld [vmem:[%s2638 + $0xc] sm:$0xf]
    %v2643 = vld [vmem:[%s2638 + $0x10] sm:$0xf]
    %v2644 = vld [vmem:[%s2638 + $0x14] sm:$0xf]
    %v2645 = vld [vmem:[%s2638 + $0x18] sm:$0xf]
    %v2646 = vld [vmem:[%s2638 + $0x1c] sm:$0xf]
    %v2647 = vld [vmem:[%s2638 + $0x20] sm:$0xf]
    %v2648 = vld [vmem:[%s2638 + $0x24] sm:$0xf]
    %v2649 = vld [vmem:[%s2638 + $0x28] sm:$0xf]
    %v2650 = vld [vmem:[%s2638 + $0x2c] sm:$0xf]
    %v2651 = vld [vmem:[%s2638 + $0x30] sm:$0xf]
    %v2652 = vld [vmem:[%s2638 + $0x34] sm:$0xf]
    %v2653 = vld [vmem:[%s2638 + $0x38] sm:$0xf]
    %v2654 = vld [vmem:[%s2638 + $0x3c] sm:$0xf]
    %v2655 = vld [vmem:[%s2638 + $0x40] sm:$0xf]
    %v2656 = vld [vmem:[%s2638 + $0x44] sm:$0xf]
    %v2657 = vld [vmem:[%s2638 + $0x48] sm:$0xf]
    %v2658 = vld [vmem:[%s2638 + $0x4c] sm:$0xf]
    %v2659 = vld [vmem:[%s2638 + $0x50] sm:$0xf]
    %v2660 = vld [vmem:[%s2638 + $0x54] sm:$0xf]
    %v2661 = vld [vmem:[%s2638 + $0x58] sm:$0xf]
    %v2662 = vld [vmem:[%s2638 + $0x5c] sm:$0xf]
    %v2663 = vld [vmem:[%s2638 + $0x60] sm:$0xf]
    %v2664 = vld [vmem:[%s2638 + $0x64] sm:$0xf]
    %v2665 = vld [vmem:[%s2638 + $0x68] sm:$0xf]
    %v2666 = vld [vmem:[%s2638 + $0x6c] sm:$0xf]
    %v2667 = vld [vmem:[%s2638 + $0x70] sm:$0xf]
    %v2668 = vld [vmem:[%s2638 + $0x74] sm:$0xf]
    %v2669 = vld [vmem:[%s2638 + $0x78] sm:$0xf]
    %v2670 = vld [vmem:[%s2638 + $0x7c] sm:$0xf]
    %v2671 = vld [vmem:[#allocation13 + $0x1d] ss:$0 sm:$0xff]
    %v2704 = vunpack.c.l.b16 %v2639
    %v2705 = vunpack.c.l.b16 %v2640
    %v2706 = vunpack.c.l.b16 %v2641
    %v2707 = vunpack.c.l.b16 %v2642
    %v2708 = vunpack.c.l.b16 %v2643
    %v2709 = vunpack.c.l.b16 %v2644
    %v2710 = vunpack.c.l.b16 %v2645
    %v2711 = vunpack.c.l.b16 %v2646
    %v2712 = vunpack.c.l.b16 %v2647
    %v2713 = vunpack.c.l.b16 %v2648
    %v2714 = vunpack.c.l.b16 %v2649
    %v2715 = vunpack.c.l.b16 %v2650
    %v2716 = vunpack.c.l.b16 %v2651
    %v2717 = vunpack.c.l.b16 %v2652
    %v2718 = vunpack.c.l.b16 %v2653
    %v2719 = vunpack.c.l.b16 %v2654
    %v2720 = vunpack.c.l.b16 %v2655
    %v2721 = vunpack.c.l.b16 %v2656
    %v2722 = vunpack.c.l.b16 %v2657
    %v2723 = vunpack.c.l.b16 %v2658
    %v2724 = vunpack.c.l.b16 %v2659
    %v2725 = vunpack.c.l.b16 %v2660
    %v2726 = vunpack.c.l.b16 %v2661
    %v2727 = vunpack.c.l.b16 %v2662
    %v2728 = vunpack.c.l.b16 %v2663
    %v2729 = vunpack.c.l.b16 %v2664
    %v2730 = vunpack.c.l.b16 %v2665
    %v2731 = vunpack.c.l.b16 %v2666
    %v2732 = vunpack.c.l.b16 %v2667
    %v2733 = vunpack.c.l.b16 %v2668
    %v2734 = vunpack.c.l.b16 %v2669
    %v2735 = vunpack.c.l.b16 %v2670
    %v2736 = vpack.c.b16 %v2705, %v2704
    %v2737 = vpack.c.b16 %v2707, %v2706
    %v2738 = vpack.c.b16 %v2709, %v2708
    %v2739 = vpack.c.b16 %v2711, %v2710
    %v2740 = vpack.c.b16 %v2713, %v2712
    %v2741 = vpack.c.b16 %v2715, %v2714
    %v2742 = vpack.c.b16 %v2717, %v2716
    %v2743 = vpack.c.b16 %v2719, %v2718
    %v2744 = vpack.c.b16 %v2721, %v2720
    %v2745 = vpack.c.b16 %v2723, %v2722
    %v2746 = vpack.c.b16 %v2725, %v2724
    %v2747 = vpack.c.b16 %v2727, %v2726
    %v2748 = vpack.c.b16 %v2729, %v2728
    %v2749 = vpack.c.b16 %v2731, %v2730
    %v2750 = vpack.c.b16 %v2733, %v2732
    %v2751 = vpack.c.b16 %v2735, %v2734
    %2768 = vmatprep.subr.bf16.mxu0 0
    %2769 = vmatpush1.bf16.msra.mxu0 %v2736
    %2770 = vmatprep.subr.bf16.mxu0 0
    %2771 = vmatpush1.bf16.msra.mxu0 %v2737
    %2772 = vmatprep.subr.bf16.mxu0 0
    %2773 = vmatpush1.bf16.msra.mxu0 %v2738
    %2774 = vmatprep.subr.bf16.mxu0 0
    %2775 = vmatpush1.bf16.msra.mxu0 %v2739
    %2776 = vmatprep.subr.bf16.mxu0 0
    %2777 = vmatpush1.bf16.msra.mxu0 %v2740
    %2778 = vmatprep.subr.bf16.mxu0 0
    %2779 = vmatpush1.bf16.msra.mxu0 %v2741
    %2780 = vmatprep.subr.bf16.mxu0 0
    %2781 = vmatpush1.bf16.msra.mxu0 %v2742
    %2782 = vmatprep.subr.bf16.mxu0 0
    %2783 = vmatpush1.bf16.msra.mxu0 %v2743
    %2784 = vmatprep.subr.bf16.mxu0 0
    %2785 = vmatpush1.bf16.msra.mxu0 %v2744
    %2786 = vmatprep.subr.bf16.mxu0 0
    %2787 = vmatpush1.bf16.msra.mxu0 %v2745
    %2788 = vmatprep.subr.bf16.mxu0 0
    %2789 = vmatpush1.bf16.msra.mxu0 %v2746
    %2790 = vmatprep.subr.bf16.mxu0 0
    %2791 = vmatpush1.bf16.msra.mxu0 %v2747
    %2792 = vmatprep.subr.bf16.mxu0 0
    %2793 = vmatpush1.bf16.msra.mxu0 %v2748
    %2794 = vmatprep.subr.bf16.mxu0 0
    %2795 = vmatpush1.bf16.msra.mxu0 %v2749
    %2796 = vmatprep.subr.bf16.mxu0 0
    %2797 = vmatpush1.bf16.msra.mxu0 %v2750
    %2798 = vmatprep.subr.bf16.mxu0 0
    %2799 = vmatpush1.bf16.msra.mxu0 %v2751
    %2800 = vmatprep.mubr.bf16.mxu0 %v2635
    %2801 = vmatmul.mubr.bf16.gmra.mrb[0].mxu0 %v2634
    %v2802 = vpop.f32.mrb[0].mxu0
    %v2803 = vadd.f32 %v2671, %v2802
    %v2804 = vpop.f32.mrb[0].mxu0
    %v2805 = vpop.f32.mrb[0].mxu0
    %v2806 = vpop.f32.mrb[0].mxu0
    %2807 = vmatprep.mubr.bf16.mxu0 %v2637
    %2808 = vmatmul.mubr.bf16.gmra.mrb[0].mxu0 %v2636
    %v2809 = vpop.f32.mrb[0].mxu0
    %v2810 = vadd.f32 %v2671, %v2809
    %v2811 = vpop.f32.mrb[0].mxu0
    %v2812 = vpop.f32.mrb[0].mxu0
    %v2813 = vpop.f32.mrb[0].mxu0
    %2814 = vdwg.mxu0
    %v2815 = vadd.f32 %v2393, %v2803
    %v2816 = vadd.f32 %v2395, %v2810
    %v2817 = vld [vmem:[#allocation13 + $0x1e] ss:$0 sm:$0xff]
    %v2818 = vld [vmem:[#allocation13 + $0x1f] ss:$0 sm:$0xff]
    %2819 = vadd.xlane.f32.xlu0 %v2815
    %v2820 = vpop.xlane.xlu0 %2819
    %2821 = vadd.xlane.f32.xlu0 %v2816
    %v2822 = vpop.xlane.xlu0 %2821
    %v2823 = vmul.f32 %v2820, %v141
    %v2824 = vmul.f32 %v2822, %v141
    %v2825 = vsub.f32 %v2815, %v2823
    %v2826 = vsub.f32 %v2816, %v2824
    %v2827 = vmul.f32 %v2825, %v2825
    %v2828 = vmul.f32 %v2826, %v2826
    %2829 = vadd.xlane.f32.xlu0 %v2827
    %v2830 = vpop.xlane.xlu0 %2829
    %2831 = vadd.xlane.f32.xlu0 %v2828
    %v2832 = vpop.xlane.xlu0 %2831
    %v2833 = vmul.f32 %v2830, %v141
    %v2834 = vmul.f32 %v2832, %v141
    %v2835 = vadd.f32 %v2833, 1e-12
    %v2836 = vadd.f32 %v2834, 1e-12
    %v2837 = vrsqrt.pop %v2835
    %v2838 = vrsqrt.pop %v2836
    %v2839 = vmul.f32 %v2825, %v2837
    %v2840 = vmul.f32 %v2826, %v2838
    %v2841 = vmul.f32 %v2839, %v2817
    %v2842 = vmul.f32 %v2840, %v2817
    %v2843 = vadd.f32 %v2841, %v2818
    %v2844 = vadd.f32 %v2842, %v2818
    %v2845 = vpack.c.bf16 %v2843, %v2843
    %v2846 = vpack.c.bf16 %v2844, %v2844
    %v2847 = vld [vmem:[#allocation11] sm:$0xf]
    %v2848 = vld [vmem:[#allocation11 + $0x8] sm:$0xf]
    %v2849 = vld [vmem:[#allocation11 + $0x10] sm:$0xf]
    %v2850 = vld [vmem:[#allocation11 + $0x18] sm:$0xf]
    %v2851 = vld [vmem:[#allocation11 + $0x20] sm:$0xf]
    %v2852 = vld [vmem:[#allocation11 + $0x28] sm:$0xf]
    %v2853 = vld [vmem:[#allocation11 + $0x30] sm:$0xf]
    %v2854 = vld [vmem:[#allocation11 + $0x38] sm:$0xf]
    %v2855 = vld [vmem:[#allocation11 + $0x40] sm:$0xf]
    %v2856 = vld [vmem:[#allocation11 + $0x48] sm:$0xf]
    %v2857 = vld [vmem:[#allocation11 + $0x50] sm:$0xf]
    %v2858 = vld [vmem:[#allocation11 + $0x58] sm:$0xf]
    %v2859 = vld [vmem:[#allocation11 + $0x60] sm:$0xf]
    %v2860 = vld [vmem:[#allocation11 + $0x68] sm:$0xf]
    %v2861 = vld [vmem:[#allocation11 + $0x70] sm:$0xf]
    %v2862 = vld [vmem:[#allocation11 + $0x78] sm:$0xf]
    %v2863 = vld [vmem:[#allocation13 + $0x32] ss:$0 sm:$0xff]
    %v2866 = vunpack.c.l.b16 %v2845
    %v2867 = vunpack.c.l.b16 %v2846
    %v2868 = vrot.slane %v2867, 7
    %vm2869 = vcmask 1041409
    %v2870 = vsel %vm2869, %v2868, %v2866
    %v2871 = vpack.c.b16 %v2870, %v2870
    %v2889 = vunpack.c.l.b16 %v2847
    %v2890 = vunpack.c.l.b16 %v2848
    %v2891 = vunpack.c.l.b16 %v2849
    %v2892 = vunpack.c.l.b16 %v2850
    %v2893 = vunpack.c.l.b16 %v2851
    %v2894 = vunpack.c.l.b16 %v2852
    %v2895 = vunpack.c.l.b16 %v2853
    %v2896 = vunpack.c.l.b16 %v2854
    %v2897 = vunpack.c.l.b16 %v2855
    %v2898 = vunpack.c.l.b16 %v2856
    %v2899 = vunpack.c.l.b16 %v2857
    %v2900 = vunpack.c.l.b16 %v2858
    %v2901 = vunpack.c.l.b16 %v2859
    %v2902 = vunpack.c.l.b16 %v2860
    %v2903 = vunpack.c.l.b16 %v2861
    %v2904 = vunpack.c.l.b16 %v2862
    %v2905 = vpack.c.b16 %v2890, %v2889
    %v2906 = vpack.c.b16 %v2892, %v2891
    %v2907 = vpack.c.b16 %v2894, %v2893
    %v2908 = vpack.c.b16 %v2896, %v2895
    %v2909 = vpack.c.b16 %v2898, %v2897
    %v2910 = vpack.c.b16 %v2900, %v2899
    %v2911 = vpack.c.b16 %v2902, %v2901
    %v2912 = vpack.c.b16 %v2904, %v2903
    %2921 = vmatprep.subr.bf16.mxu0 0
    %2922 = vmatpush1.bf16.msra.mxu0 %v2905
    %2923 = vmatprep.subr.bf16.mxu0 0
    %2924 = vmatpush1.bf16.msra.mxu0 %v2906
    %2925 = vmatprep.subr.bf16.mxu0 0
    %2926 = vmatpush1.bf16.msra.mxu0 %v2907
    %2927 = vmatprep.subr.bf16.mxu0 0
    %2928 = vmatpush1.bf16.msra.mxu0 %v2908
    %2929 = vmatprep.subr.bf16.mxu0 0
    %2930 = vmatpush1.bf16.msra.mxu0 %v2909
    %2931 = vmatprep.subr.bf16.mxu0 0
    %2932 = vmatpush1.bf16.msra.mxu0 %v2910
    %2933 = vmatprep.subr.bf16.mxu0 0
    %2934 = vmatpush1.bf16.msra.mxu0 %v2911
    %2935 = vmatprep.subr.bf16.mxu0 0
    %2936 = vmatpush1.bf16.msra.mxu0 %v2912
    %2937 = vmatprep.subr.bf16.mxu0 0
    %2938 = vmatpush1.bf16.msra.mxu0 0
    %2939 = vmatprep.subr.bf16.mxu0 0
    %2940 = vmatpush1.bf16.msra.mxu0 0
    %2941 = vmatprep.subr.bf16.mxu0 0
    %2942 = vmatpush1.bf16.msra.mxu0 0
    %2943 = vmatprep.subr.bf16.mxu0 0
    %2944 = vmatpush1.bf16.msra.mxu0 0
    %2945 = vmatprep.subr.bf16.mxu0 0
    %2946 = vmatpush1.bf16.msra.mxu0 0
    %2947 = vmatprep.subr.bf16.mxu0 0
    %2948 = vmatpush1.bf16.msra.mxu0 0
    %2949 = vmatprep.subr.bf16.mxu0 0
    %2950 = vmatpush1.bf16.msra.mxu0 0
    %2951 = vmatprep.subr.bf16.mxu0 0
    %2952 = vmatpush1.bf16.msra.mxu0 0
    %2953 = vmatprep.mubr.bf16.mxu0 0
    %2954 = vmatmul.mubr.bf16.gmra.mrb[0].mxu0 %v2871
    %v2955 = vpop.f32.mrb[0].mxu0
    %v2956 = vadd.f32 %v2863, %v2955
    %v2957 = vpop.f32.mrb[0].mxu0
    %v2958 = vpop.f32.mrb[0].mxu0
    %v2959 = vpop.f32.mrb[0].mxu0
    %2960 = vdwg.mxu0
    %v2961 = vmax.f32 %v2956, 0.0
    %v2962 = vpack.c.bf16 %v2961, %v2961
    %v2963 = vld [vmem:[#allocation11 + $0x4] sm:$0xf]
    %v2964 = vld [vmem:[#allocation11 + $0xc] sm:$0xf]
    %v2965 = vld [vmem:[#allocation11 + $0x14] sm:$0xf]
    %v2966 = vld [vmem:[#allocation11 + $0x1c] sm:$0xf]
    %v2967 = vld [vmem:[#allocation11 + $0x24] sm:$0xf]
    %v2968 = vld [vmem:[#allocation11 + $0x2c] sm:$0xf]
    %v2969 = vld [vmem:[#allocation11 + $0x34] sm:$0xf]
    %v2970 = vld [vmem:[#allocation11 + $0x3c] sm:$0xf]
    %v2971 = vld [vmem:[#allocation11 + $0x44] sm:$0xf]
    %v2972 = vld [vmem:[#allocation11 + $0x4c] sm:$0xf]
    %v2973 = vld [vmem:[#allocation11 + $0x54] sm:$0xf]
    %v2974 = vld [vmem:[#allocation11 + $0x5c] sm:$0xf]
    %v2975 = vld [vmem:[#allocation11 + $0x64] sm:$0xf]
    %v2976 = vld [vmem:[#allocation11 + $0x6c] sm:$0xf]
    %v2977 = vld [vmem:[#allocation11 + $0x74] sm:$0xf]
    %v2978 = vld [vmem:[#allocation11 + $0x7c] sm:$0xf]
    %v2979 = vld [vmem:[#allocation13 + $0x33] ss:$0 sm:$0xff]
    %v2996 = vunpack.c.l.b16 %v2963
    %v2997 = vunpack.c.l.b16 %v2964
    %v2998 = vunpack.c.l.b16 %v2965
    %v2999 = vunpack.c.l.b16 %v2966
    %v3000 = vunpack.c.l.b16 %v2967
    %v3001 = vunpack.c.l.b16 %v2968
    %v3002 = vunpack.c.l.b16 %v2969
    %v3003 = vunpack.c.l.b16 %v2970
    %v3004 = vunpack.c.l.b16 %v2971
    %v3005 = vunpack.c.l.b16 %v2972
    %v3006 = vunpack.c.l.b16 %v2973
    %v3007 = vunpack.c.l.b16 %v2974
    %v3008 = vunpack.c.l.b16 %v2975
    %v3009 = vunpack.c.l.b16 %v2976
    %v3010 = vunpack.c.l.b16 %v2977
    %v3011 = vunpack.c.l.b16 %v2978
    %v3012 = vpack.c.b16 %v2997, %v2996
    %v3013 = vpack.c.b16 %v2999, %v2998
    %v3014 = vpack.c.b16 %v3001, %v3000
    %v3015 = vpack.c.b16 %v3003, %v3002
    %v3016 = vpack.c.b16 %v3005, %v3004
    %v3017 = vpack.c.b16 %v3007, %v3006
    %v3018 = vpack.c.b16 %v3009, %v3008
    %v3019 = vpack.c.b16 %v3011, %v3010
    %3028 = vmatprep.subr.bf16.mxu0 0
    %3029 = vmatpush1.bf16.msra.mxu0 %v3012
    %3030 = vmatprep.subr.bf16.mxu0 0
    %3031 = vmatpush1.bf16.msra.mxu0 %v3013
    %3032 = vmatprep.subr.bf16.mxu0 0
    %3033 = vmatpush1.bf16.msra.mxu0 %v3014
    %3034 = vmatprep.subr.bf16.mxu0 0
    %3035 = vmatpush1.bf16.msra.mxu0 %v3015
    %3036 = vmatprep.subr.bf16.mxu0 0
    %3037 = vmatpush1.bf16.msra.mxu0 %v3016
    %3038 = vmatprep.subr.bf16.mxu0 0
    %3039 = vmatpush1.bf16.msra.mxu0 %v3017
    %3040 = vmatprep.subr.bf16.mxu0 0
    %3041 = vmatpush1.bf16.msra.mxu0 %v3018
    %3042 = vmatprep.subr.bf16.mxu0 0
    %3043 = vmatpush1.bf16.msra.mxu0 %v3019
    %3044 = vmatprep.subr.bf16.mxu0 0
    %3045 = vmatpush1.bf16.msra.mxu0 0
    %3046 = vmatprep.subr.bf16.mxu0 0
    %3047 = vmatpush1.bf16.msra.mxu0 0
    %3048 = vmatprep.subr.bf16.mxu0 0
    %3049 = vmatpush1.bf16.msra.mxu0 0
    %3050 = vmatprep.subr.bf16.mxu0 0
    %3051 = vmatpush1.bf16.msra.mxu0 0
    %3052 = vmatprep.subr.bf16.mxu0 0
    %3053 = vmatpush1.bf16.msra.mxu0 0
    %3054 = vmatprep.subr.bf16.mxu0 0
    %3055 = vmatpush1.bf16.msra.mxu0 0
    %3056 = vmatprep.subr.bf16.mxu0 0
    %3057 = vmatpush1.bf16.msra.mxu0 0
    %3058 = vmatprep.subr.bf16.mxu0 0
    %3059 = vmatpush1.bf16.msra.mxu0 0
    %3060 = vmatprep.mubr.bf16.mxu0 0
    %3061 = vmatmul.mubr.bf16.gmra.mrb[0].mxu0 %v2962
    %v3062 = vpop.f32.mrb[0].mxu0
    %v3063 = vadd.f32 %v2979, %v3062
    %v3064 = vpop.f32.mrb[0].mxu0
    %v3065 = vpop.f32.mrb[0].mxu0
    %v3066 = vpop.f32.mrb[0].mxu0
    %3067 = vdwg.mxu0
    %3068 = vst [vmem:[#allocation14] sm:$0x3] %v3063
    // Predicated region
    $region58: #{tpu_custom_call.1} parent=1 // pred_check
      _
    $region59: #{tpu_custom_call.1} parent=1 // pred_check_branch
      %3070 = sbr.rel (0) target = $region61
    $region60: #{tpu_custom_call.1} parent=1 // pred_region
      %s3072 = ssub.s32 32, 32
      %3073 = vsyncadd [#allocation4], %s3072
      %s3075 = sshll.u32 [#allocation14], 4
      %s3076 = int_to_ptr.vmem [resolvable:$true] %s3075
      %3078 = dma.vmem_to_hbm [thread:$0]  %s3076, 32, %s7, [#allocation4]
    $region61: #{tpu_custom_call.1} parent=1 // pred_fallthru
      _
    // Predicated region
    $region62: #{tpu_custom_call.1} parent=1 // pred_check
      _
    $region63: #{tpu_custom_call.1} parent=1 // pred_check_branch
      %3080 = sbr.rel (0) target = $region65
    $region64: #{tpu_custom_call.1} parent=1 // pred_region
      %3081 = dma.done [#allocation4], 32
    $region65: #{tpu_custom_call.1} parent=1 // pred_fallthru
      _
    %3082 = vsyncpa [#allocation3], 1
    %3083 = vsyncpa [#allocation6], 1
    %3084 = vsyncpa [#allocation9], 1
    %3085 = vsyncpa [#allocation12], 1
    %3086 = vsyncpa [#allocation4], 1

</llo_original>
